<compile_context>
chip_gen: v7x
topology: tpu7x:2x2x1
jax: 0.10.0
libtpu: 0.0.40
codegen_flags: <defaults>
</compile_context>

<pallas_src>
import functools

import numpy as np
import jax
import jax.numpy as jnp
from jax import lax
from jax.experimental import pallas as pl
from jax.experimental.pallas import tpu as pltpu

H = 7
W = 7
P = H * W            # 49 valid spatial positions
P_PAD = 56           # padded to a multiple of 8 sublanes
NTAP = 9
C_IN = 96
C_MID = 576
C_PROJ = 160
C_OUT = 1280
EPS = 1e-5
INV_P = 1.0 / P


def _shift_matrix_cat():
  """(56, 9*56) 0/1 matrix.  Column block t gathers the tap-t neighbor of every
  valid spatial position.  Rows >= 49, columns with q >= 49 and out-of-image
  neighbors are all zero, so it simultaneously implements the spatial shift,
  the conv zero-padding and the sublane-pad masking."""
  s = np.zeros((P_PAD, NTAP * P_PAD), np.float32)
  for oh in (-1, 0, 1):
    for ow in (-1, 0, 1):
      t = (oh + 1) * 3 + (ow + 1)
      for p in range(P):
        h, w = divmod(p, W)
        hh, ww = h + oh, w + ow
        if 0 <= hh < H and 0 <= ww < W:
          s[p, t * P_PAD + hh * W + ww] = 1.0
  return s


_SHIFT_CAT_NP = _shift_matrix_cat()


def _bn_train(y, g, b):
  # y: (P_PAD, C) with padded rows exactly zero; biased variance over the 49
  # valid rows (PyTorch training-mode batch statistics).  Folded into a single
  # per-channel scale/shift so the (P_PAD, C) array is only touched twice.
  mean = jnp.sum(y, axis=0, keepdims=True) * INV_P
  var = jnp.sum(y * y, axis=0, keepdims=True) * INV_P - mean * mean
  scale = lax.rsqrt(var + EPS) * g
  shift = b - mean * scale
  return y * scale + shift


def _block_kernel(x_ref, smat_ref, w1_ref, g1_ref, b1_ref,
                  wdw_ref, g2_ref, b2_ref, g3_ref, b3_ref,
                  w3_hbm, w4_hbm,
                  out_ref,
                  w3_vmem, w4_vmem, dma_sem):
  # Kick off the tail-weight DMAs so they overlap the front half of the block.
  cp3 = pltpu.make_async_copy(w3_hbm, w3_vmem, dma_sem.at[0])
  cp4 = pltpu.make_async_copy(w4_hbm, w4_vmem, dma_sem.at[1])
  cp3.start()
  cp4.start()

  # --- conv2d48: 1x1, 96 -> 576 (no bias) ---
  y1 = jnp.dot(x_ref[...], w1_ref[...],
               preferred_element_type=jnp.float32)                # (56, 576)

  # --- batchnorm2d48 + relu32 ---
  # (padded rows of y1 are exact zeros because the padded rows of x are zero,
  #  so the batch sums over 56 rows equal the sums over the 49 valid rows)
  y1 = jnp.maximum(_bn_train(y1, g1_ref[...], b1_ref[...]), 0.0)

  # --- conv2d49: 3x3 depthwise, groups=576, stride 1, padding 1 ---
  # y2[p, c] = sum_{t,q} S[p, t*56+q] * (y1[q, c] * wdw[t, c])
  # Per-channel tap scaling on the VPU, one bf16 gather-matmul on the MXU.
  wdw = wdw_ref[...]                                              # (9, 576) f32
  a = jnp.concatenate([y1 * wdw[t:t + 1, :] for t in range(NTAP)],
                      axis=0).astype(jnp.bfloat16)                # (504, 576)
  y2 = jnp.dot(smat_ref[...], a,
               preferred_element_type=jnp.float32)                # (56, 576)

  # --- batchnorm2d49 + relu33 ---  (pad rows of y2 are exact zeros by construction)
  y2 = jnp.maximum(_bn_train(y2, g2_ref[...], b2_ref[...]), 0.0)

  # --- conv2d50: 1x1, 576 -> 160 (no bias) + batchnorm2d50 (no relu) ---
  cp3.wait()
  y3 = jnp.dot(y2.astype(jnp.bfloat16), w3_vmem[...],
               preferred_element_type=jnp.float32)                # (56, 160)
  # Re-zero the pad rows (BN2's shift + relu made them nonzero) so BN3's batch
  # statistics only see the 49 valid rows.  Mask the narrow (56,160) tensor
  # here instead of the wide (56,576) one.
  row_mask = (lax.broadcasted_iota(jnp.int32, (P_PAD, 1), 0) < P
              ).astype(jnp.float32)                               # (56, 1)
  y3 = _bn_train(y3 * row_mask, g3_ref[...], b3_ref[...])

  # --- conv2d51: 1x1, 160 -> 1280 (no bias) ---
  cp4.wait()
  out_ref[...] = jnp.dot(y3.astype(jnp.bfloat16), w4_vmem[...],
                         preferred_element_type=jnp.float32)      # (56, 1280)


def mnasnet_block(x_nchw, params):
  n, c, h, w = x_nchw.shape
  assert (n, c, h, w) == (1, C_IN, H, W)
  x2d = jnp.transpose(x_nchw, (0, 2, 3, 1)).reshape(P, C_IN)
  x2d = jnp.pad(x2d, ((0, P_PAD - P), (0, 0))).astype(jnp.bfloat16)  # (56, 96)

  # Weight-only bf16 (halves the dominant HBM traffic); BN math stays f32.
  w1 = params["w1"].astype(jnp.bfloat16)
  w3 = params["w3"].astype(jnp.bfloat16)
  w4 = params["w4"].astype(jnp.bfloat16)
  wdw9 = params["wdw"].reshape(NTAP, C_MID).astype(jnp.float32)
  smat = jnp.asarray(_SHIFT_CAT_NP, jnp.bfloat16)                    # exact 0/1

  kernel_inputs = (
      x2d, smat,
      w1, params["g1"], params["b1"],
      wdw9, params["g2"], params["b2"],
      params["g3"], params["b3"],
      w3, w4,
  )
  vmem = functools.partial(pl.BlockSpec, memory_space=pltpu.MemorySpace.VMEM)
  hbm = functools.partial(pl.BlockSpec, memory_space=pl.ANY)
  in_specs = [vmem() for _ in range(10)] + [hbm(), hbm()]

  out2d = pl.pallas_call(
      _block_kernel,
      out_shape=jax.ShapeDtypeStruct((P_PAD, C_OUT), jnp.float32),
      in_specs=in_specs,
      out_specs=vmem(),
      scratch_shapes=[
          pltpu.VMEM((C_MID, C_PROJ), jnp.bfloat16),   # w3 landing buffer
          pltpu.VMEM((C_PROJ, C_OUT), jnp.bfloat16),   # w4 landing buffer
          pltpu.SemaphoreType.DMA((2,)),
      ],
  )(*kernel_inputs)

  out2d = out2d[:P]
  return jnp.transpose(out2d.reshape(1, H, W, C_OUT), (0, 3, 1, 2))


# ----------------------------- pure-JAX reference -----------------------------
def _reference(x_nchw, p):
  def conv1x1(x, w2d):  # w2d: (Cin, Cout)
    return jnp.einsum("nchw,cd->ndhw", x, w2d)

  def bn_train_nchw(x, g, b):
    g = g.reshape(-1)[None, :, None, None]
    b = b.reshape(-1)[None, :, None, None]
    mean = jnp.mean(x, axis=(0, 2, 3), keepdims=True)
    var = jnp.mean((x - mean) ** 2, axis=(0, 2, 3), keepdims=True)
    return (x - mean) * lax.rsqrt(var + EPS) * g + b

  y = conv1x1(x_nchw, p["w1"])
  y = jax.nn.relu(bn_train_nchw(y, p["g1"], p["b1"]))
  wdw_oihw = jnp.transpose(p["wdw"], (2, 0, 1))[:, None, :, :]   # (576,1,3,3)
  y = lax.conv_general_dilated(
      y, wdw_oihw, window_strides=(1, 1), padding=((1, 1), (1, 1)),
      dimension_numbers=("NCHW", "OIHW", "NCHW"),
      feature_group_count=C_MID)
  y = jax.nn.relu(bn_train_nchw(y, p["g2"], p["b2"]))
  y = conv1x1(y, p["w3"])
  y = bn_train_nchw(y, p["g3"], p["b3"])
  y = conv1x1(y, p["w4"])
  return y


def _init_params(key):
  ks = jax.random.split(key, 11)
  f32 = jnp.float32
  return {
      # conv weights stored in (Cin, Cout) / (kh, kw, C) kernel layout
      "w1": jax.random.normal(ks[0], (C_IN, C_MID), f32) * 0.05,
      "g1": 1.0 + 0.1 * jax.random.normal(ks[1], (1, C_MID), f32),
      "b1": 0.1 * jax.random.normal(ks[2], (1, C_MID), f32),
      "wdw": jax.random.normal(ks[3], (3, 3, C_MID), f32) * 0.2,
      "g2": 1.0 + 0.1 * jax.random.normal(ks[4], (1, C_MID), f32),
      "b2": 0.1 * jax.random.normal(ks[5], (1, C_MID), f32),
      "w3": jax.random.normal(ks[6], (C_MID, C_PROJ), f32) * 0.05,
      "g3": 1.0 + 0.1 * jax.random.normal(ks[7], (1, C_PROJ), f32),
      "b3": 0.1 * jax.random.normal(ks[8], (1, C_PROJ), f32),
      "w4": jax.random.normal(ks[9], (C_PROJ, C_OUT), f32) * 0.05,
  }


if __name__ == "__main__":
  key = jax.random.PRNGKey(0)
  pkey, xkey = jax.random.split(key)
  params = _init_params(pkey)
  x138 = jax.random.normal(xkey, (1, C_IN, H, W), jnp.float32)

  out = jax.block_until_ready(jax.jit(mnasnet_block)(x138, params))
  assert out.shape == (1, C_OUT, H, W), out.shape

  ref = jax.block_until_ready(jax.jit(_reference)(x138, params))
  rel_err = jnp.linalg.norm(out - ref) / (jnp.linalg.norm(ref) + 1e-12)
  assert float(rel_err) < 5e-2, f"relative error too large: {float(rel_err)}"

  print("KERNEL_OK")
</pallas_src>

<mosaic_0001>
module attributes {stable_mosaic.version = 11 : i64} {
  func.func @_block_kernel(%arg0: memref<56x96xbf16, #tpu.memory_space<vmem>>, %arg1: memref<56x504xbf16, #tpu.memory_space<vmem>>, %arg2: memref<96x576xbf16, #tpu.memory_space<vmem>>, %arg3: memref<1x576xf32, #tpu.memory_space<vmem>>, %arg4: memref<1x576xf32, #tpu.memory_space<vmem>>, %arg5: memref<9x576xf32, #tpu.memory_space<vmem>>, %arg6: memref<1x576xf32, #tpu.memory_space<vmem>>, %arg7: memref<1x576xf32, #tpu.memory_space<vmem>>, %arg8: memref<1x160xf32, #tpu.memory_space<vmem>>, %arg9: memref<1x160xf32, #tpu.memory_space<vmem>>, %arg10: memref<576x160xbf16, #tpu.memory_space<any>>, %arg11: memref<160x1280xbf16, #tpu.memory_space<any>>, %arg12: memref<56x1280xf32, #tpu.memory_space<vmem>>, %arg13: memref<576x160xbf16, #tpu.memory_space<vmem>>, %arg14: memref<160x1280xbf16, #tpu.memory_space<vmem>>, %arg15: memref<2x!tpu.dma_semaphore, #tpu.memory_space<semaphore_mem>>) attributes {dimension_semantics = [], scalar_prefetch = 0 : i64, scratch_operands = 3 : i64, tpu.core_type = #tpu.core_type<tc>} {
    %c0_i32 = arith.constant 0 : i32
    %0 = tpu.memref_slice %arg15[%c0_i32] : memref<2x!tpu.dma_semaphore, #tpu.memory_space<semaphore_mem>> -> memref<1x!tpu.dma_semaphore, #tpu.memory_space<semaphore_mem>>
    %1 = tpu.memref_squeeze %0 : memref<1x!tpu.dma_semaphore, #tpu.memory_space<semaphore_mem>> -> memref<!tpu.dma_semaphore, #tpu.memory_space<semaphore_mem>>
    tpu.enqueue_dma source(%arg10 : memref<576x160xbf16, #tpu.memory_space<any>>) target(%arg13 : memref<576x160xbf16, #tpu.memory_space<vmem>>) target_semaphore(%1 : memref<!tpu.dma_semaphore, #tpu.memory_space<semaphore_mem>>)
    %c1_i32 = arith.constant 1 : i32
    %2 = tpu.memref_slice %arg15[%c1_i32] : memref<2x!tpu.dma_semaphore, #tpu.memory_space<semaphore_mem>> -> memref<1x!tpu.dma_semaphore, #tpu.memory_space<semaphore_mem>>
    %3 = tpu.memref_squeeze %2 : memref<1x!tpu.dma_semaphore, #tpu.memory_space<semaphore_mem>> -> memref<!tpu.dma_semaphore, #tpu.memory_space<semaphore_mem>>
    tpu.enqueue_dma source(%arg11 : memref<160x1280xbf16, #tpu.memory_space<any>>) target(%arg14 : memref<160x1280xbf16, #tpu.memory_space<vmem>>) target_semaphore(%3 : memref<!tpu.dma_semaphore, #tpu.memory_space<semaphore_mem>>)
    %c0 = arith.constant 0 : index
    %c0_0 = arith.constant 0 : index
    %4 = vector.load %arg0[%c0, %c0_0] : memref<56x96xbf16, #tpu.memory_space<vmem>>, vector<56x96xbf16>
    %c0_1 = arith.constant 0 : index
    %c0_2 = arith.constant 0 : index
    %5 = vector.load %arg2[%c0_1, %c0_2] : memref<96x576xbf16, #tpu.memory_space<vmem>>, vector<96x576xbf16>
    %cst = arith.constant dense<0.000000e+00> : vector<56x576xf32>
    %6 = tpu.matmul %4, %5, %cst {dimension_numbers = #tpu.dot_dimension_numbers<[1], [0], [0], [1], [0, 0, 1, 1], [], []>} : vector<56x96xbf16>, vector<96x576xbf16>, vector<56x576xf32> -> vector<56x576xf32>
    %c0_3 = arith.constant 0 : index
    %c0_4 = arith.constant 0 : index
    %7 = vector.load %arg3[%c0_3, %c0_4] : memref<1x576xf32, #tpu.memory_space<vmem>>, vector<1x576xf32>
    %c0_5 = arith.constant 0 : index
    %c0_6 = arith.constant 0 : index
    %8 = vector.load %arg4[%c0_5, %c0_6] : memref<1x576xf32, #tpu.memory_space<vmem>>, vector<1x576xf32>
    %cst_7 = arith.constant dense<0.000000e+00> : vector<576xf32>
    %9 = vector.multi_reduction <add>, %6, %cst_7 [0] : vector<56x576xf32> to vector<576xf32>
    %10 = vector.shape_cast %9 : vector<576xf32> to vector<1x576xf32>
    %cst_8 = arith.constant 0.0204081628 : f32
    %11 = vector.broadcast %cst_8 : f32 to vector<1x576xf32>
    %12 = arith.mulf %10, %11 : vector<1x576xf32>
    %13 = arith.mulf %6, %6 : vector<56x576xf32>
    %cst_9 = arith.constant dense<0.000000e+00> : vector<576xf32>
    %14 = vector.multi_reduction <add>, %13, %cst_9 [0] : vector<56x576xf32> to vector<576xf32>
    %15 = vector.shape_cast %14 : vector<576xf32> to vector<1x576xf32>
    %cst_10 = arith.constant 0.0204081628 : f32
    %16 = vector.broadcast %cst_10 : f32 to vector<1x576xf32>
    %17 = arith.mulf %15, %16 : vector<1x576xf32>
    %18 = arith.mulf %12, %12 : vector<1x576xf32>
    %19 = arith.subf %17, %18 : vector<1x576xf32>
    %cst_11 = arith.constant 9.99999974E-6 : f32
    %20 = vector.broadcast %cst_11 : f32 to vector<1x576xf32>
    %21 = arith.addf %19, %20 : vector<1x576xf32>
    %22 = math.rsqrt %21 : vector<1x576xf32>
    %23 = arith.mulf %22, %7 : vector<1x576xf32>
    %24 = arith.mulf %12, %23 : vector<1x576xf32>
    %25 = arith.subf %8, %24 : vector<1x576xf32>
    %26 = vector.broadcast %23 : vector<1x576xf32> to vector<56x576xf32>
    %27 = arith.mulf %6, %26 : vector<56x576xf32>
    %28 = vector.broadcast %25 : vector<1x576xf32> to vector<56x576xf32>
    %29 = arith.addf %27, %28 : vector<56x576xf32>
    %cst_12 = arith.constant 0.000000e+00 : f32
    %30 = vector.broadcast %cst_12 : f32 to vector<56x576xf32>
    %31 = arith.maximumf %29, %30 : vector<56x576xf32>
    %c0_13 = arith.constant 0 : index
    %c0_14 = arith.constant 0 : index
    %32 = vector.load %arg5[%c0_13, %c0_14] : memref<9x576xf32, #tpu.memory_space<vmem>>, vector<9x576xf32>
    %33 = vector.extract_strided_slice %32 {offsets = [0, 0], sizes = [1, 576], strides = [1, 1]} : vector<9x576xf32> to vector<1x576xf32>
    %34 = vector.broadcast %33 : vector<1x576xf32> to vector<56x576xf32>
    %35 = arith.mulf %31, %34 : vector<56x576xf32>
    %36 = vector.extract_strided_slice %32 {offsets = [1, 0], sizes = [1, 576], strides = [1, 1]} : vector<9x576xf32> to vector<1x576xf32>
    %37 = vector.broadcast %36 : vector<1x576xf32> to vector<56x576xf32>
    %38 = arith.mulf %31, %37 : vector<56x576xf32>
    %39 = vector.extract_strided_slice %32 {offsets = [2, 0], sizes = [1, 576], strides = [1, 1]} : vector<9x576xf32> to vector<1x576xf32>
    %40 = vector.broadcast %39 : vector<1x576xf32> to vector<56x576xf32>
    %41 = arith.mulf %31, %40 : vector<56x576xf32>
    %42 = vector.extract_strided_slice %32 {offsets = [3, 0], sizes = [1, 576], strides = [1, 1]} : vector<9x576xf32> to vector<1x576xf32>
    %43 = vector.broadcast %42 : vector<1x576xf32> to vector<56x576xf32>
    %44 = arith.mulf %31, %43 : vector<56x576xf32>
    %45 = vector.extract_strided_slice %32 {offsets = [4, 0], sizes = [1, 576], strides = [1, 1]} : vector<9x576xf32> to vector<1x576xf32>
    %46 = vector.broadcast %45 : vector<1x576xf32> to vector<56x576xf32>
    %47 = arith.mulf %31, %46 : vector<56x576xf32>
    %48 = vector.extract_strided_slice %32 {offsets = [5, 0], sizes = [1, 576], strides = [1, 1]} : vector<9x576xf32> to vector<1x576xf32>
    %49 = vector.broadcast %48 : vector<1x576xf32> to vector<56x576xf32>
    %50 = arith.mulf %31, %49 : vector<56x576xf32>
    %51 = vector.extract_strided_slice %32 {offsets = [6, 0], sizes = [1, 576], strides = [1, 1]} : vector<9x576xf32> to vector<1x576xf32>
    %52 = vector.broadcast %51 : vector<1x576xf32> to vector<56x576xf32>
    %53 = arith.mulf %31, %52 : vector<56x576xf32>
    %54 = vector.extract_strided_slice %32 {offsets = [7, 0], sizes = [1, 576], strides = [1, 1]} : vector<9x576xf32> to vector<1x576xf32>
    %55 = vector.broadcast %54 : vector<1x576xf32> to vector<56x576xf32>
    %56 = arith.mulf %31, %55 : vector<56x576xf32>
    %57 = vector.extract_strided_slice %32 {offsets = [8, 0], sizes = [1, 576], strides = [1, 1]} : vector<9x576xf32> to vector<1x576xf32>
    %58 = vector.broadcast %57 : vector<1x576xf32> to vector<56x576xf32>
    %59 = arith.mulf %31, %58 : vector<56x576xf32>
    %60 = tpu.concatenate %35, %38, %41, %44, %47, %50, %53, %56, %59 in 0 : vector<56x576xf32>, vector<56x576xf32>, vector<56x576xf32>, vector<56x576xf32>, vector<56x576xf32>, vector<56x576xf32>, vector<56x576xf32>, vector<56x576xf32>, vector<56x576xf32> -> vector<504x576xf32>
    %61 = arith.truncf %60 : vector<504x576xf32> to vector<504x576xbf16>
    %c0_15 = arith.constant 0 : index
    %c0_16 = arith.constant 0 : index
    %62 = vector.load %arg1[%c0_15, %c0_16] : memref<56x504xbf16, #tpu.memory_space<vmem>>, vector<56x504xbf16>
    %cst_17 = arith.constant dense<0.000000e+00> : vector<56x576xf32>
    %63 = tpu.matmul %62, %61, %cst_17 {dimension_numbers = #tpu.dot_dimension_numbers<[1], [0], [0], [1], [0, 0, 1, 1], [], []>} : vector<56x504xbf16>, vector<504x576xbf16>, vector<56x576xf32> -> vector<56x576xf32>
    %c0_18 = arith.constant 0 : index
    %c0_19 = arith.constant 0 : index
    %64 = vector.load %arg6[%c0_18, %c0_19] : memref<1x576xf32, #tpu.memory_space<vmem>>, vector<1x576xf32>
    %c0_20 = arith.constant 0 : index
    %c0_21 = arith.constant 0 : index
    %65 = vector.load %arg7[%c0_20, %c0_21] : memref<1x576xf32, #tpu.memory_space<vmem>>, vector<1x576xf32>
    %cst_22 = arith.constant dense<0.000000e+00> : vector<576xf32>
    %66 = vector.multi_reduction <add>, %63, %cst_22 [0] : vector<56x576xf32> to vector<576xf32>
    %67 = vector.shape_cast %66 : vector<576xf32> to vector<1x576xf32>
    %cst_23 = arith.constant 0.0204081628 : f32
    %68 = vector.broadcast %cst_23 : f32 to vector<1x576xf32>
    %69 = arith.mulf %67, %68 : vector<1x576xf32>
    %70 = arith.mulf %63, %63 : vector<56x576xf32>
    %cst_24 = arith.constant dense<0.000000e+00> : vector<576xf32>
    %71 = vector.multi_reduction <add>, %70, %cst_24 [0] : vector<56x576xf32> to vector<576xf32>
    %72 = vector.shape_cast %71 : vector<576xf32> to vector<1x576xf32>
    %cst_25 = arith.constant 0.0204081628 : f32
    %73 = vector.broadcast %cst_25 : f32 to vector<1x576xf32>
    %74 = arith.mulf %72, %73 : vector<1x576xf32>
    %75 = arith.mulf %69, %69 : vector<1x576xf32>
    %76 = arith.subf %74, %75 : vector<1x576xf32>
    %cst_26 = arith.constant 9.99999974E-6 : f32
    %77 = vector.broadcast %cst_26 : f32 to vector<1x576xf32>
    %78 = arith.addf %76, %77 : vector<1x576xf32>
    %79 = math.rsqrt %78 : vector<1x576xf32>
    %80 = arith.mulf %79, %64 : vector<1x576xf32>
    %81 = arith.mulf %69, %80 : vector<1x576xf32>
    %82 = arith.subf %65, %81 : vector<1x576xf32>
    %83 = vector.broadcast %80 : vector<1x576xf32> to vector<56x576xf32>
    %84 = arith.mulf %63, %83 : vector<56x576xf32>
    %85 = vector.broadcast %82 : vector<1x576xf32> to vector<56x576xf32>
    %86 = arith.addf %84, %85 : vector<56x576xf32>
    %cst_27 = arith.constant 0.000000e+00 : f32
    %87 = vector.broadcast %cst_27 : f32 to vector<56x576xf32>
    %88 = arith.maximumf %86, %87 : vector<56x576xf32>
    %c0_i32_28 = arith.constant 0 : i32
    %89 = tpu.memref_slice %arg15[%c0_i32_28] : memref<2x!tpu.dma_semaphore, #tpu.memory_space<semaphore_mem>> -> memref<1x!tpu.dma_semaphore, #tpu.memory_space<semaphore_mem>>
    %90 = tpu.memref_squeeze %89 : memref<1x!tpu.dma_semaphore, #tpu.memory_space<semaphore_mem>> -> memref<!tpu.dma_semaphore, #tpu.memory_space<semaphore_mem>>
    tpu.wait_dma2 semaphore(%90 : memref<!tpu.dma_semaphore, #tpu.memory_space<semaphore_mem>>) src(%arg10 : memref<576x160xbf16, #tpu.memory_space<any>>) dst(%arg13 : memref<576x160xbf16, #tpu.memory_space<vmem>>)
    %91 = arith.truncf %88 : vector<56x576xf32> to vector<56x576xbf16>
    %c0_29 = arith.constant 0 : index
    %c0_30 = arith.constant 0 : index
    %92 = vector.load %arg13[%c0_29, %c0_30] : memref<576x160xbf16, #tpu.memory_space<vmem>>, vector<576x160xbf16>
    %cst_31 = arith.constant dense<0.000000e+00> : vector<56x160xf32>
    %93 = tpu.matmul %91, %92, %cst_31 {dimension_numbers = #tpu.dot_dimension_numbers<[1], [0], [0], [1], [0, 0, 1, 1], [], []>} : vector<56x576xbf16>, vector<576x160xbf16>, vector<56x160xf32> -> vector<56x160xf32>
    %94 = tpu.iota {dimensions = array<i32: 0>} : vector<56x1xi32>
    %c49_i32 = arith.constant 49 : i32
    %95 = vector.broadcast %c49_i32 : i32 to vector<56x1xi32>
    %96 = arith.cmpi slt, %94, %95 : vector<56x1xi32>
    %97 = arith.extui %96 : vector<56x1xi1> to vector<56x1xi32>
    %98 = arith.sitofp %97 : vector<56x1xi32> to vector<56x1xf32>
    %99 = vector.broadcast %98 : vector<56x1xf32> to vector<56x160xf32>
    %100 = arith.mulf %93, %99 : vector<56x160xf32>
    %c0_32 = arith.constant 0 : index
    %c0_33 = arith.constant 0 : index
    %101 = vector.load %arg8[%c0_32, %c0_33] : memref<1x160xf32, #tpu.memory_space<vmem>>, vector<1x160xf32>
    %c0_34 = arith.constant 0 : index
    %c0_35 = arith.constant 0 : index
    %102 = vector.load %arg9[%c0_34, %c0_35] : memref<1x160xf32, #tpu.memory_space<vmem>>, vector<1x160xf32>
    %cst_36 = arith.constant dense<0.000000e+00> : vector<160xf32>
    %103 = vector.multi_reduction <add>, %100, %cst_36 [0] : vector<56x160xf32> to vector<160xf32>
    %104 = vector.shape_cast %103 : vector<160xf32> to vector<1x160xf32>
    %cst_37 = arith.constant 0.0204081628 : f32
    %105 = vector.broadcast %cst_37 : f32 to vector<1x160xf32>
    %106 = arith.mulf %104, %105 : vector<1x160xf32>
    %107 = arith.mulf %100, %100 : vector<56x160xf32>
    %cst_38 = arith.constant dense<0.000000e+00> : vector<160xf32>
    %108 = vector.multi_reduction <add>, %107, %cst_38 [0] : vector<56x160xf32> to vector<160xf32>
    %109 = vector.shape_cast %108 : vector<160xf32> to vector<1x160xf32>
    %cst_39 = arith.constant 0.0204081628 : f32
    %110 = vector.broadcast %cst_39 : f32 to vector<1x160xf32>
    %111 = arith.mulf %109, %110 : vector<1x160xf32>
    %112 = arith.mulf %106, %106 : vector<1x160xf32>
    %113 = arith.subf %111, %112 : vector<1x160xf32>
    %cst_40 = arith.constant 9.99999974E-6 : f32
    %114 = vector.broadcast %cst_40 : f32 to vector<1x160xf32>
    %115 = arith.addf %113, %114 : vector<1x160xf32>
    %116 = math.rsqrt %115 : vector<1x160xf32>
    %117 = arith.mulf %116, %101 : vector<1x160xf32>
    %118 = arith.mulf %106, %117 : vector<1x160xf32>
    %119 = arith.subf %102, %118 : vector<1x160xf32>
    %120 = vector.broadcast %117 : vector<1x160xf32> to vector<56x160xf32>
    %121 = arith.mulf %100, %120 : vector<56x160xf32>
    %122 = vector.broadcast %119 : vector<1x160xf32> to vector<56x160xf32>
    %123 = arith.addf %121, %122 : vector<56x160xf32>
    %c1_i32_41 = arith.constant 1 : i32
    %124 = tpu.memref_slice %arg15[%c1_i32_41] : memref<2x!tpu.dma_semaphore, #tpu.memory_space<semaphore_mem>> -> memref<1x!tpu.dma_semaphore, #tpu.memory_space<semaphore_mem>>
    %125 = tpu.memref_squeeze %124 : memref<1x!tpu.dma_semaphore, #tpu.memory_space<semaphore_mem>> -> memref<!tpu.dma_semaphore, #tpu.memory_space<semaphore_mem>>
    tpu.wait_dma2 semaphore(%125 : memref<!tpu.dma_semaphore, #tpu.memory_space<semaphore_mem>>) src(%arg11 : memref<160x1280xbf16, #tpu.memory_space<any>>) dst(%arg14 : memref<160x1280xbf16, #tpu.memory_space<vmem>>)
    %126 = arith.truncf %123 : vector<56x160xf32> to vector<56x160xbf16>
    %c0_42 = arith.constant 0 : index
    %c0_43 = arith.constant 0 : index
    %127 = vector.load %arg14[%c0_42, %c0_43] : memref<160x1280xbf16, #tpu.memory_space<vmem>>, vector<160x1280xbf16>
    %cst_44 = arith.constant dense<0.000000e+00> : vector<56x1280xf32>
    %128 = tpu.matmul %126, %127, %cst_44 {dimension_numbers = #tpu.dot_dimension_numbers<[1], [0], [0], [1], [0, 0, 1, 1], [], []>} : vector<56x160xbf16>, vector<160x1280xbf16>, vector<56x1280xf32> -> vector<56x1280xf32>
    %c0_45 = arith.constant 0 : index
    %c0_46 = arith.constant 0 : index
    %129 = vector.load %arg12[%c0_45, %c0_46] : memref<56x1280xf32, #tpu.memory_space<vmem>>, vector<56x1280xf32>
    tpu.vector_store %arg12[%c0_45, %c0_46], %128 {strides = array<i32>} : memref<56x1280xf32, #tpu.memory_space<vmem>>, vector<56x1280xf32>,
    return
  }
}

</mosaic_0001>

<llo_original>
// kernel: mnasnet_block.1
$region0: #{mnasnet_block.1}
  #allocation0 [shape = 'u32[]', space=smem, size = 0x4, offset = 0x4, fixed_abs, tag = 'smem constant byte address 0x4 - core index']
  #allocation1 [shape = 'u32[144,128]{1,0:T(1,128)}', space=vmem, size = 0x12000, scoped, tag = 'internal scratch']
  #allocation2 [shape = 'bf16[576,160]{1,0:T(16,128)(2,1)}', space=vmem, size = 0x48000, scoped, tag = 'scratch operand']
  #allocation3 [shape = 'bf16[160,1280]{1,0:T(16,128)(2,1)}', space=vmem, size = 0x64000, scoped, tag = 'scratch operand']
  #allocation4 [shape = 's32[2]{0}', space=sflag, size = 0x8, scoped, tag = 'scratch operand']
  #allocation5 [shape = 's32[]', space=sflag, size = 0x4, offset = 0, fixed_abs, tag = 'sflag constant byte address 0x0 - dummy sync flag']
  #allocation6 [shape = 's32[]', space=sflag, size = 0x4, offset = 0, fixed_abs, tag = 'sflag constant byte address 0x0 - dummy sync flag']
  %s0 = inlined_call_operand.vmem [shape: bf16[56,96], index: 0, kind: input, shape index: {}]
  %s1 = inlined_call_operand.vmem [shape: bf16[56,504], index: 1, kind: input, shape index: {}]
  %s2 = inlined_call_operand.vmem [shape: bf16[96,576], index: 2, kind: input, shape index: {}]
  %s3 = inlined_call_operand.vmem [shape: f32[1,576], index: 3, kind: input, shape index: {}]
  %s4 = inlined_call_operand.vmem [shape: f32[1,576], index: 4, kind: input, shape index: {}]
  %s5 = inlined_call_operand.vmem [shape: f32[9,576], index: 5, kind: input, shape index: {}]
  %s6 = inlined_call_operand.vmem [shape: f32[1,576], index: 6, kind: input, shape index: {}]
  %s7 = inlined_call_operand.vmem [shape: f32[1,576], index: 7, kind: input, shape index: {}]
  %s8 = inlined_call_operand.vmem [shape: f32[1,160], index: 8, kind: input, shape index: {}]
  %s9 = inlined_call_operand.vmem [shape: f32[1,160], index: 9, kind: input, shape index: {}]
  %s10 = inlined_call_operand.vmem [shape: bf16[576,160], index: 10, kind: input, shape index: {}]
  %s11 = inlined_call_operand.vmem [shape: bf16[160,1280], index: 11, kind: input, shape index: {}]
  %s12 = inlined_call_operand.vmem [shape: f32[56,1280], index: 12, kind: output, shape index: {}]
  %s13 = sld [smem:[#allocation0]]
  $region124: #{mnasnet_block.1} parent=0
    _
  %s15 = ssub.s32 1, %s13
  %s16 = scalar_select 0, %s15, %s13
  // Predicated region
  $region2: #{mnasnet_block.1} parent=0 // pred_check
    _
  $region3: #{mnasnet_block.1} parent=0 // pred_check_branch
    %18 = sbr.rel (0) target = $region5
  $region4: #{mnasnet_block.1} parent=0 // pred_region
    _
  $region5: #{mnasnet_block.1} parent=0 // pred_fallthru
    _
  // Predicated region
  $region6: #{mnasnet_block.1} parent=0 // pred_check
    _
  $region7: #{mnasnet_block.1} parent=0 // pred_check_branch
    %20 = sbr.rel (0) target = $region9
  $region8: #{mnasnet_block.1} parent=0 // pred_region
    _
  $region9: #{mnasnet_block.1} parent=0 // pred_fallthru
    _
  // Predicated region
  $region10: #{mnasnet_block.1} parent=0 // pred_check
    _
  $region11: #{mnasnet_block.1} parent=0 // pred_check_branch
    %22 = sbr.rel (0) target = $region13
  $region12: #{mnasnet_block.1} parent=0 // pred_region
    _
  $region13: #{mnasnet_block.1} parent=0 // pred_fallthru
    _
  // Predicated region
  $region14: #{mnasnet_block.1} parent=0 // pred_check
    _
  $region15: #{mnasnet_block.1} parent=0 // pred_check_branch
    %24 = sbr.rel (0) target = $region17
  $region16: #{mnasnet_block.1} parent=0 // pred_region
    _
  $region17: #{mnasnet_block.1} parent=0 // pred_fallthru
    _
  // Predicated region
  $region18: #{mnasnet_block.1} parent=0 // pred_check
    _
  $region19: #{mnasnet_block.1} parent=0 // pred_check_branch
    %26 = sbr.rel (0) target = $region21
  $region20: #{mnasnet_block.1} parent=0 // pred_region
    _
  $region21: #{mnasnet_block.1} parent=0 // pred_fallthru
    _
  // Predicated region
  $region22: #{mnasnet_block.1} parent=0 // pred_check
    _
  $region23: #{mnasnet_block.1} parent=0 // pred_check_branch
    %28 = sbr.rel (0) target = $region25
  $region24: #{mnasnet_block.1} parent=0 // pred_region
    _
  $region25: #{mnasnet_block.1} parent=0 // pred_fallthru
    _
  // Predicated region
  $region26: #{mnasnet_block.1} parent=0 // pred_check
    _
  $region27: #{mnasnet_block.1} parent=0 // pred_check_branch
    %30 = sbr.rel (0) target = $region29
  $region28: #{mnasnet_block.1} parent=0 // pred_region
    _
  $region29: #{mnasnet_block.1} parent=0 // pred_fallthru
    _
  // Predicated region
  $region30: #{mnasnet_block.1} parent=0 // pred_check
    _
  $region31: #{mnasnet_block.1} parent=0 // pred_check_branch
    %32 = sbr.rel (0) target = $region33
  $region32: #{mnasnet_block.1} parent=0 // pred_region
    _
  $region33: #{mnasnet_block.1} parent=0 // pred_fallthru
    _
  // Predicated region
  $region34: #{mnasnet_block.1} parent=0 // pred_check
    _
  $region35: #{mnasnet_block.1} parent=0 // pred_check_branch
    %34 = sbr.rel (0) target = $region37
  $region36: #{mnasnet_block.1} parent=0 // pred_region
    _
  $region37: #{mnasnet_block.1} parent=0 // pred_fallthru
    _
  // Predicated region
  $region38: #{mnasnet_block.1} parent=0 // pred_check
    _
  $region39: #{mnasnet_block.1} parent=0 // pred_check_branch
    %36 = sbr.rel (0) target = $region41
  $region40: #{mnasnet_block.1} parent=0 // pred_region
    _
  $region41: #{mnasnet_block.1} parent=0 // pred_fallthru
    _
  %p39 = scmp.lt.u32.totalorder 4, 8
  %p40 = pneg %p39
  // Predicated region
  $region42: #{mnasnet_block.1} parent=0 // pred_check
    _
  $region43: #{mnasnet_block.1} parent=0 // pred_check_branch
    %42 = sbr.rel (%p39) target = $region45
  $region44: #{mnasnet_block.1} parent=0 // pred_region
    %s343 = sand.u32 4, 7
    %p344 = scmp.eq.s32.totalorder %s343, 0
    %p345 = pneg %p344
    // Predicated region
    $region57: #{mnasnet_block.1} parent=44 // pred_check
      _
    $region58: #{mnasnet_block.1} parent=44 // pred_check_branch
      %347 = sbr.rel (%p344) target = $region60
    $region59: #{mnasnet_block.1} parent=44 // pred_region
      %s348 = sand.u32 4, 7
      %s349 = ssub.s32 4, %s348
      %s350 = scalar_lea.vmem %s10, %s349
      %s351 = ssub.s32 4, %s348
      %s352 = scalar_lea.vmem [#allocation2], %s351
      loop: start=0, step=1, limit=1
      $region61: #{mnasnet_block.1} parent=59 // loop_pre_header
        _
      $region62: #{mnasnet_block.1} parent=59 // loop_header
        %s354 = sphi 0, %s358
        %p355 = scmp.ge.s32.totalorder %s354, 1
        %s359 = sphi %s10, %s10
        %s360 = sphi [#allocation2], [#allocation2]
      $region63: #{mnasnet_block.1} parent=59 // loop_header_branch
        %357 = sbr.rel (%p355) target = $region67
      $region64: #{mnasnet_block.1} parent=59 // loop_body
        _
      $region65: #{mnasnet_block.1} parent=59 // loop_footer
        %s358 = sadd.s32 1, %s354
      $region66: #{mnasnet_block.1} parent=59 // loop_footer_branch
        %353 = sbr.rel target = $region62
      $region67: #{mnasnet_block.1} parent=59 // loop_exit
        _
      %s361 = sshllo.u32 0, %s348
      loop: start=0, step=1, limit=1
      $region68: #{mnasnet_block.1} parent=59 // loop_pre_header
        _
      $region69: #{mnasnet_block.1} parent=59 // loop_header
        %s363 = sphi 0, %s367
        %p364 = scmp.ge.s32.totalorder %s363, 1
        %s368 = sphi %s350, %s350
        %s369 = sphi %s352, %s352
      $region70: #{mnasnet_block.1} parent=59 // loop_header_branch
        %366 = sbr.rel (%p364) target = $region74
      $region71: #{mnasnet_block.1} parent=59 // loop_body
        %v370 = vld [vmem:[%s368] sm:%s361]
        %371 = vst [vmem:[%s369] sm:%s361] %v370
        %v372 = vld [vmem:[%s368 + $0x8] sm:%s361]
        %373 = vst [vmem:[%s369 + $0x4] sm:%s361] %v372
        %v374 = vld [vmem:[%s368 + $0x4] sm:%s361]
        %375 = vst [vmem:[%s369 + $0x8] sm:%s361] %v374
        %v376 = vld [vmem:[%s368 + $0xc] sm:%s361]
        %377 = vst [vmem:[%s369 + $0xc] sm:%s361] %v376
        %v378 = vld [vmem:[%s368 + $0x10] sm:%s361]
        %379 = vst [vmem:[%s369 + $0x10] sm:%s361] %v378
        %v380 = vld [vmem:[%s368 + $0x18] sm:%s361]
        %381 = vst [vmem:[%s369 + $0x14] sm:%s361] %v380
        %v382 = vld [vmem:[%s368 + $0x14] sm:%s361]
        %383 = vst [vmem:[%s369 + $0x18] sm:%s361] %v382
        %v384 = vld [vmem:[%s368 + $0x1c] sm:%s361]
        %385 = vst [vmem:[%s369 + $0x1c] sm:%s361] %v384
        %v386 = vld [vmem:[%s368 + $0x20] sm:%s361]
        %387 = vst [vmem:[%s369 + $0x20] sm:%s361] %v386
        %v388 = vld [vmem:[%s368 + $0x28] sm:%s361]
        %389 = vst [vmem:[%s369 + $0x24] sm:%s361] %v388
        %v390 = vld [vmem:[%s368 + $0x24] sm:%s361]
        %391 = vst [vmem:[%s369 + $0x28] sm:%s361] %v390
        %v392 = vld [vmem:[%s368 + $0x2c] sm:%s361]
        %393 = vst [vmem:[%s369 + $0x2c] sm:%s361] %v392
        %v394 = vld [vmem:[%s368 + $0x30] sm:%s361]
        %395 = vst [vmem:[%s369 + $0x30] sm:%s361] %v394
        %v396 = vld [vmem:[%s368 + $0x38] sm:%s361]
        %397 = vst [vmem:[%s369 + $0x34] sm:%s361] %v396
        %v398 = vld [vmem:[%s368 + $0x34] sm:%s361]
        %399 = vst [vmem:[%s369 + $0x38] sm:%s361] %v398
        %v400 = vld [vmem:[%s368 + $0x3c] sm:%s361]
        %401 = vst [vmem:[%s369 + $0x3c] sm:%s361] %v400
        %v402 = vld [vmem:[%s368 + $0x40] sm:%s361]
        %403 = vst [vmem:[%s369 + $0x40] sm:%s361] %v402
        %v404 = vld [vmem:[%s368 + $0x48] sm:%s361]
        %405 = vst [vmem:[%s369 + $0x44] sm:%s361] %v404
        %v406 = vld [vmem:[%s368 + $0x44] sm:%s361]
        %407 = vst [vmem:[%s369 + $0x48] sm:%s361] %v406
        %v408 = vld [vmem:[%s368 + $0x4c] sm:%s361]
        %409 = vst [vmem:[%s369 + $0x4c] sm:%s361] %v408
        %v410 = vld [vmem:[%s368 + $0x50] sm:%s361]
        %411 = vst [vmem:[%s369 + $0x50] sm:%s361] %v410
        %v412 = vld [vmem:[%s368 + $0x58] sm:%s361]
        %413 = vst [vmem:[%s369 + $0x54] sm:%s361] %v412
        %v414 = vld [vmem:[%s368 + $0x54] sm:%s361]
        %415 = vst [vmem:[%s369 + $0x58] sm:%s361] %v414
        %v416 = vld [vmem:[%s368 + $0x5c] sm:%s361]
        %417 = vst [vmem:[%s369 + $0x5c] sm:%s361] %v416
        %v418 = vld [vmem:[%s368 + $0x60] sm:%s361]
        %419 = vst [vmem:[%s369 + $0x60] sm:%s361] %v418
        %v420 = vld [vmem:[%s368 + $0x68] sm:%s361]
        %421 = vst [vmem:[%s369 + $0x64] sm:%s361] %v420
        %v422 = vld [vmem:[%s368 + $0x64] sm:%s361]
        %423 = vst [vmem:[%s369 + $0x68] sm:%s361] %v422
        %v424 = vld [vmem:[%s368 + $0x6c] sm:%s361]
        %425 = vst [vmem:[%s369 + $0x6c] sm:%s361] %v424
        %v426 = vld [vmem:[%s368 + $0x70] sm:%s361]
        %427 = vst [vmem:[%s369 + $0x70] sm:%s361] %v426
        %v428 = vld [vmem:[%s368 + $0x78] sm:%s361]
        %429 = vst [vmem:[%s369 + $0x74] sm:%s361] %v428
        %v430 = vld [vmem:[%s368 + $0x74] sm:%s361]
        %431 = vst [vmem:[%s369 + $0x78] sm:%s361] %v430
        %v432 = vld [vmem:[%s368 + $0x7c] sm:%s361]
        %433 = vst [vmem:[%s369 + $0x7c] sm:%s361] %v432
        %v434 = vld [vmem:[%s368 + $0x80] sm:%s361]
        %435 = vst [vmem:[%s369 + $0x80] sm:%s361] %v434
        %v436 = vld [vmem:[%s368 + $0x88] sm:%s361]
        %437 = vst [vmem:[%s369 + $0x84] sm:%s361] %v436
        %v438 = vld [vmem:[%s368 + $0x84] sm:%s361]
        %439 = vst [vmem:[%s369 + $0x88] sm:%s361] %v438
        %v440 = vld [vmem:[%s368 + $0x8c] sm:%s361]
        %441 = vst [vmem:[%s369 + $0x8c] sm:%s361] %v440
        %v442 = vld [vmem:[%s368 + $0x90] sm:%s361]
        %443 = vst [vmem:[%s369 + $0x90] sm:%s361] %v442
        %v444 = vld [vmem:[%s368 + $0x98] sm:%s361]
        %445 = vst [vmem:[%s369 + $0x94] sm:%s361] %v444
        %v446 = vld [vmem:[%s368 + $0x94] sm:%s361]
        %447 = vst [vmem:[%s369 + $0x98] sm:%s361] %v446
        %v448 = vld [vmem:[%s368 + $0x9c] sm:%s361]
        %449 = vst [vmem:[%s369 + $0x9c] sm:%s361] %v448
        %v450 = vld [vmem:[%s368 + $0xa0] sm:%s361]
        %451 = vst [vmem:[%s369 + $0xa0] sm:%s361] %v450
        %v452 = vld [vmem:[%s368 + $0xa8] sm:%s361]
        %453 = vst [vmem:[%s369 + $0xa4] sm:%s361] %v452
        %v454 = vld [vmem:[%s368 + $0xa4] sm:%s361]
        %455 = vst [vmem:[%s369 + $0xa8] sm:%s361] %v454
        %v456 = vld [vmem:[%s368 + $0xac] sm:%s361]
        %457 = vst [vmem:[%s369 + $0xac] sm:%s361] %v456
        %v458 = vld [vmem:[%s368 + $0xb0] sm:%s361]
        %459 = vst [vmem:[%s369 + $0xb0] sm:%s361] %v458
        %v460 = vld [vmem:[%s368 + $0xb8] sm:%s361]
        %461 = vst [vmem:[%s369 + $0xb4] sm:%s361] %v460
        %v462 = vld [vmem:[%s368 + $0xb4] sm:%s361]
        %463 = vst [vmem:[%s369 + $0xb8] sm:%s361] %v462
        %v464 = vld [vmem:[%s368 + $0xbc] sm:%s361]
        %465 = vst [vmem:[%s369 + $0xbc] sm:%s361] %v464
        %v466 = vld [vmem:[%s368 + $0xc0] sm:%s361]
        %467 = vst [vmem:[%s369 + $0xc0] sm:%s361] %v466
        %v468 = vld [vmem:[%s368 + $0xc8] sm:%s361]
        %469 = vst [vmem:[%s369 + $0xc4] sm:%s361] %v468
        %v470 = vld [vmem:[%s368 + $0xc4] sm:%s361]
        %471 = vst [vmem:[%s369 + $0xc8] sm:%s361] %v470
        %v472 = vld [vmem:[%s368 + $0xcc] sm:%s361]
        %473 = vst [vmem:[%s369 + $0xcc] sm:%s361] %v472
        %v474 = vld [vmem:[%s368 + $0xd0] sm:%s361]
        %475 = vst [vmem:[%s369 + $0xd0] sm:%s361] %v474
        %v476 = vld [vmem:[%s368 + $0xd8] sm:%s361]
        %477 = vst [vmem:[%s369 + $0xd4] sm:%s361] %v476
        %v478 = vld [vmem:[%s368 + $0xd4] sm:%s361]
        %479 = vst [vmem:[%s369 + $0xd8] sm:%s361] %v478
        %v480 = vld [vmem:[%s368 + $0xdc] sm:%s361]
        %481 = vst [vmem:[%s369 + $0xdc] sm:%s361] %v480
        %v482 = vld [vmem:[%s368 + $0xe0] sm:%s361]
        %483 = vst [vmem:[%s369 + $0xe0] sm:%s361] %v482
        %v484 = vld [vmem:[%s368 + $0xe8] sm:%s361]
        %485 = vst [vmem:[%s369 + $0xe4] sm:%s361] %v484
        %v486 = vld [vmem:[%s368 + $0xe4] sm:%s361]
        %487 = vst [vmem:[%s369 + $0xe8] sm:%s361] %v486
        %v488 = vld [vmem:[%s368 + $0xec] sm:%s361]
        %489 = vst [vmem:[%s369 + $0xec] sm:%s361] %v488
        %v490 = vld [vmem:[%s368 + $0xf0] sm:%s361]
        %491 = vst [vmem:[%s369 + $0xf0] sm:%s361] %v490
        %v492 = vld [vmem:[%s368 + $0xf8] sm:%s361]
        %493 = vst [vmem:[%s369 + $0xf4] sm:%s361] %v492
        %v494 = vld [vmem:[%s368 + $0xf4] sm:%s361]
        %495 = vst [vmem:[%s369 + $0xf8] sm:%s361] %v494
        %v496 = vld [vmem:[%s368 + $0xfc] sm:%s361]
        %497 = vst [vmem:[%s369 + $0xfc] sm:%s361] %v496
        %v498 = vld [vmem:[%s368 + $0x100] sm:%s361]
        %499 = vst [vmem:[%s369 + $0x100] sm:%s361] %v498
        %v500 = vld [vmem:[%s368 + $0x108] sm:%s361]
        %501 = vst [vmem:[%s369 + $0x104] sm:%s361] %v500
        %v502 = vld [vmem:[%s368 + $0x104] sm:%s361]
        %503 = vst [vmem:[%s369 + $0x108] sm:%s361] %v502
        %v504 = vld [vmem:[%s368 + $0x10c] sm:%s361]
        %505 = vst [vmem:[%s369 + $0x10c] sm:%s361] %v504
        %v506 = vld [vmem:[%s368 + $0x110] sm:%s361]
        %507 = vst [vmem:[%s369 + $0x110] sm:%s361] %v506
        %v508 = vld [vmem:[%s368 + $0x118] sm:%s361]
        %509 = vst [vmem:[%s369 + $0x114] sm:%s361] %v508
        %v510 = vld [vmem:[%s368 + $0x114] sm:%s361]
        %511 = vst [vmem:[%s369 + $0x118] sm:%s361] %v510
        %v512 = vld [vmem:[%s368 + $0x11c] sm:%s361]
        %513 = vst [vmem:[%s369 + $0x11c] sm:%s361] %v512
        %v514 = vld [vmem:[%s368 + $0x120] sm:%s361]
        %515 = vst [vmem:[%s369 + $0x120] sm:%s361] %v514
        %v516 = vld [vmem:[%s368 + $0x128] sm:%s361]
        %517 = vst [vmem:[%s369 + $0x124] sm:%s361] %v516
        %v518 = vld [vmem:[%s368 + $0x124] sm:%s361]
        %519 = vst [vmem:[%s369 + $0x128] sm:%s361] %v518
        %v520 = vld [vmem:[%s368 + $0x12c] sm:%s361]
        %521 = vst [vmem:[%s369 + $0x12c] sm:%s361] %v520
        %v522 = vld [vmem:[%s368 + $0x130] sm:%s361]
        %523 = vst [vmem:[%s369 + $0x130] sm:%s361] %v522
        %v524 = vld [vmem:[%s368 + $0x138] sm:%s361]
        %525 = vst [vmem:[%s369 + $0x134] sm:%s361] %v524
        %v526 = vld [vmem:[%s368 + $0x134] sm:%s361]
        %527 = vst [vmem:[%s369 + $0x138] sm:%s361] %v526
        %v528 = vld [vmem:[%s368 + $0x13c] sm:%s361]
        %529 = vst [vmem:[%s369 + $0x13c] sm:%s361] %v528
        %v530 = vld [vmem:[%s368 + $0x140] sm:%s361]
        %531 = vst [vmem:[%s369 + $0x140] sm:%s361] %v530
        %v532 = vld [vmem:[%s368 + $0x148] sm:%s361]
        %533 = vst [vmem:[%s369 + $0x144] sm:%s361] %v532
        %v534 = vld [vmem:[%s368 + $0x144] sm:%s361]
        %535 = vst [vmem:[%s369 + $0x148] sm:%s361] %v534
        %v536 = vld [vmem:[%s368 + $0x14c] sm:%s361]
        %537 = vst [vmem:[%s369 + $0x14c] sm:%s361] %v536
        %v538 = vld [vmem:[%s368 + $0x150] sm:%s361]
        %539 = vst [vmem:[%s369 + $0x150] sm:%s361] %v538
        %v540 = vld [vmem:[%s368 + $0x158] sm:%s361]
        %541 = vst [vmem:[%s369 + $0x154] sm:%s361] %v540
        %v542 = vld [vmem:[%s368 + $0x154] sm:%s361]
        %543 = vst [vmem:[%s369 + $0x158] sm:%s361] %v542
        %v544 = vld [vmem:[%s368 + $0x15c] sm:%s361]
        %545 = vst [vmem:[%s369 + $0x15c] sm:%s361] %v544
        %v546 = vld [vmem:[%s368 + $0x160] sm:%s361]
        %547 = vst [vmem:[%s369 + $0x160] sm:%s361] %v546
        %v548 = vld [vmem:[%s368 + $0x168] sm:%s361]
        %549 = vst [vmem:[%s369 + $0x164] sm:%s361] %v548
        %v550 = vld [vmem:[%s368 + $0x164] sm:%s361]
        %551 = vst [vmem:[%s369 + $0x168] sm:%s361] %v550
        %v552 = vld [vmem:[%s368 + $0x16c] sm:%s361]
        %553 = vst [vmem:[%s369 + $0x16c] sm:%s361] %v552
        %v554 = vld [vmem:[%s368 + $0x170] sm:%s361]
        %555 = vst [vmem:[%s369 + $0x170] sm:%s361] %v554
        %v556 = vld [vmem:[%s368 + $0x178] sm:%s361]
        %557 = vst [vmem:[%s369 + $0x174] sm:%s361] %v556
        %v558 = vld [vmem:[%s368 + $0x174] sm:%s361]
        %559 = vst [vmem:[%s369 + $0x178] sm:%s361] %v558
        %v560 = vld [vmem:[%s368 + $0x17c] sm:%s361]
        %561 = vst [vmem:[%s369 + $0x17c] sm:%s361] %v560
        %v562 = vld [vmem:[%s368 + $0x180] sm:%s361]
        %563 = vst [vmem:[%s369 + $0x180] sm:%s361] %v562
        %v564 = vld [vmem:[%s368 + $0x188] sm:%s361]
        %565 = vst [vmem:[%s369 + $0x184] sm:%s361] %v564
        %v566 = vld [vmem:[%s368 + $0x184] sm:%s361]
        %567 = vst [vmem:[%s369 + $0x188] sm:%s361] %v566
        %v568 = vld [vmem:[%s368 + $0x18c] sm:%s361]
        %569 = vst [vmem:[%s369 + $0x18c] sm:%s361] %v568
        %v570 = vld [vmem:[%s368 + $0x190] sm:%s361]
        %571 = vst [vmem:[%s369 + $0x190] sm:%s361] %v570
        %v572 = vld [vmem:[%s368 + $0x198] sm:%s361]
        %573 = vst [vmem:[%s369 + $0x194] sm:%s361] %v572
        %v574 = vld [vmem:[%s368 + $0x194] sm:%s361]
        %575 = vst [vmem:[%s369 + $0x198] sm:%s361] %v574
        %v576 = vld [vmem:[%s368 + $0x19c] sm:%s361]
        %577 = vst [vmem:[%s369 + $0x19c] sm:%s361] %v576
        %v578 = vld [vmem:[%s368 + $0x1a0] sm:%s361]
        %579 = vst [vmem:[%s369 + $0x1a0] sm:%s361] %v578
        %v580 = vld [vmem:[%s368 + $0x1a8] sm:%s361]
        %581 = vst [vmem:[%s369 + $0x1a4] sm:%s361] %v580
        %v582 = vld [vmem:[%s368 + $0x1a4] sm:%s361]
        %583 = vst [vmem:[%s369 + $0x1a8] sm:%s361] %v582
        %v584 = vld [vmem:[%s368 + $0x1ac] sm:%s361]
        %585 = vst [vmem:[%s369 + $0x1ac] sm:%s361] %v584
        %v586 = vld [vmem:[%s368 + $0x1b0] sm:%s361]
        %587 = vst [vmem:[%s369 + $0x1b0] sm:%s361] %v586
        %v588 = vld [vmem:[%s368 + $0x1b8] sm:%s361]
        %589 = vst [vmem:[%s369 + $0x1b4] sm:%s361] %v588
        %v590 = vld [vmem:[%s368 + $0x1b4] sm:%s361]
        %591 = vst [vmem:[%s369 + $0x1b8] sm:%s361] %v590
        %v592 = vld [vmem:[%s368 + $0x1bc] sm:%s361]
        %593 = vst [vmem:[%s369 + $0x1bc] sm:%s361] %v592
        %v594 = vld [vmem:[%s368 + $0x1c0] sm:%s361]
        %595 = vst [vmem:[%s369 + $0x1c0] sm:%s361] %v594
        %v596 = vld [vmem:[%s368 + $0x1c8] sm:%s361]
        %597 = vst [vmem:[%s369 + $0x1c4] sm:%s361] %v596
        %v598 = vld [vmem:[%s368 + $0x1c4] sm:%s361]
        %599 = vst [vmem:[%s369 + $0x1c8] sm:%s361] %v598
        %v600 = vld [vmem:[%s368 + $0x1cc] sm:%s361]
        %601 = vst [vmem:[%s369 + $0x1cc] sm:%s361] %v600
        %v602 = vld [vmem:[%s368 + $0x1d0] sm:%s361]
        %603 = vst [vmem:[%s369 + $0x1d0] sm:%s361] %v602
        %v604 = vld [vmem:[%s368 + $0x1d8] sm:%s361]
        %605 = vst [vmem:[%s369 + $0x1d4] sm:%s361] %v604
        %v606 = vld [vmem:[%s368 + $0x1d4] sm:%s361]
        %607 = vst [vmem:[%s369 + $0x1d8] sm:%s361] %v606
        %v608 = vld [vmem:[%s368 + $0x1dc] sm:%s361]
        %609 = vst [vmem:[%s369 + $0x1dc] sm:%s361] %v608
        %v610 = vld [vmem:[%s368 + $0x1e0] sm:%s361]
        %611 = vst [vmem:[%s369 + $0x1e0] sm:%s361] %v610
        %v612 = vld [vmem:[%s368 + $0x1e8] sm:%s361]
        %613 = vst [vmem:[%s369 + $0x1e4] sm:%s361] %v612
        %v614 = vld [vmem:[%s368 + $0x1e4] sm:%s361]
        %615 = vst [vmem:[%s369 + $0x1e8] sm:%s361] %v614
        %v616 = vld [vmem:[%s368 + $0x1ec] sm:%s361]
        %617 = vst [vmem:[%s369 + $0x1ec] sm:%s361] %v616
        %v618 = vld [vmem:[%s368 + $0x1f0] sm:%s361]
        %619 = vst [vmem:[%s369 + $0x1f0] sm:%s361] %v618
        %v620 = vld [vmem:[%s368 + $0x1f8] sm:%s361]
        %621 = vst [vmem:[%s369 + $0x1f4] sm:%s361] %v620
        %v622 = vld [vmem:[%s368 + $0x1f4] sm:%s361]
        %623 = vst [vmem:[%s369 + $0x1f8] sm:%s361] %v622
        %v624 = vld [vmem:[%s368 + $0x1fc] sm:%s361]
        %625 = vst [vmem:[%s369 + $0x1fc] sm:%s361] %v624
        %v626 = vld [vmem:[%s368 + $0x200] sm:%s361]
        %627 = vst [vmem:[%s369 + $0x200] sm:%s361] %v626
        %v628 = vld [vmem:[%s368 + $0x208] sm:%s361]
        %629 = vst [vmem:[%s369 + $0x204] sm:%s361] %v628
        %v630 = vld [vmem:[%s368 + $0x204] sm:%s361]
        %631 = vst [vmem:[%s369 + $0x208] sm:%s361] %v630
        %v632 = vld [vmem:[%s368 + $0x20c] sm:%s361]
        %633 = vst [vmem:[%s369 + $0x20c] sm:%s361] %v632
        %v634 = vld [vmem:[%s368 + $0x210] sm:%s361]
        %635 = vst [vmem:[%s369 + $0x210] sm:%s361] %v634
        %v636 = vld [vmem:[%s368 + $0x218] sm:%s361]
        %637 = vst [vmem:[%s369 + $0x214] sm:%s361] %v636
        %v638 = vld [vmem:[%s368 + $0x214] sm:%s361]
        %639 = vst [vmem:[%s369 + $0x218] sm:%s361] %v638
        %v640 = vld [vmem:[%s368 + $0x21c] sm:%s361]
        %641 = vst [vmem:[%s369 + $0x21c] sm:%s361] %v640
        %v642 = vld [vmem:[%s368 + $0x220] sm:%s361]
        %643 = vst [vmem:[%s369 + $0x220] sm:%s361] %v642
        %v644 = vld [vmem:[%s368 + $0x228] sm:%s361]
        %645 = vst [vmem:[%s369 + $0x224] sm:%s361] %v644
        %v646 = vld [vmem:[%s368 + $0x224] sm:%s361]
        %647 = vst [vmem:[%s369 + $0x228] sm:%s361] %v646
        %v648 = vld [vmem:[%s368 + $0x22c] sm:%s361]
        %649 = vst [vmem:[%s369 + $0x22c] sm:%s361] %v648
        %v650 = vld [vmem:[%s368 + $0x230] sm:%s361]
        %651 = vst [vmem:[%s369 + $0x230] sm:%s361] %v650
        %v652 = vld [vmem:[%s368 + $0x238] sm:%s361]
        %653 = vst [vmem:[%s369 + $0x234] sm:%s361] %v652
        %v654 = vld [vmem:[%s368 + $0x234] sm:%s361]
        %655 = vst [vmem:[%s369 + $0x238] sm:%s361] %v654
        %v656 = vld [vmem:[%s368 + $0x23c] sm:%s361]
        %657 = vst [vmem:[%s369 + $0x23c] sm:%s361] %v656
      $region72: #{mnasnet_block.1} parent=59 // loop_footer
        %s367 = sadd.s32 1, %s363
      $region73: #{mnasnet_block.1} parent=59 // loop_footer_branch
        %362 = sbr.rel target = $region69
      $region74: #{mnasnet_block.1} parent=59 // loop_exit
        _
    $region60: #{mnasnet_block.1} parent=44 // pred_fallthru
      _
  $region45: #{mnasnet_block.1} parent=0 // pred_fallthru
    _
  // Predicated region
  $region46: #{mnasnet_block.1} parent=0 // pred_check
    %p43 = pneg %p39
  $region47: #{mnasnet_block.1} parent=0 // pred_check_branch
    %45 = sbr.rel (%p43) target = $region49
  $region48: #{mnasnet_block.1} parent=0 // pred_region
    %s46 = sshllo.u32 0, 4
    loop: start=0, step=1, limit=1
    $region50: #{mnasnet_block.1} parent=48 // loop_pre_header
      _
    $region51: #{mnasnet_block.1} parent=48 // loop_header
      %s48 = sphi 0, %s52
      %p49 = scmp.ge.s32.totalorder %s48, 1
      %s53 = sphi %s10, %s10
      %s54 = sphi [#allocation2], [#allocation2]
    $region52: #{mnasnet_block.1} parent=48 // loop_header_branch
      %51 = sbr.rel (%p49) target = $region56
    $region53: #{mnasnet_block.1} parent=48 // loop_body
      %v55 = vld [vmem:[%s53] sm:%s46]
      %56 = vst [vmem:[%s54] sm:%s46] %v55
      %v57 = vld [vmem:[%s53 + $0x8] sm:%s46]
      %58 = vst [vmem:[%s54 + $0x4] sm:%s46] %v57
      %v59 = vld [vmem:[%s53 + $0x4] sm:%s46]
      %60 = vst [vmem:[%s54 + $0x8] sm:%s46] %v59
      %v61 = vld [vmem:[%s53 + $0xc] sm:%s46]
      %62 = vst [vmem:[%s54 + $0xc] sm:%s46] %v61
      %v63 = vld [vmem:[%s53 + $0x10] sm:%s46]
      %64 = vst [vmem:[%s54 + $0x10] sm:%s46] %v63
      %v65 = vld [vmem:[%s53 + $0x18] sm:%s46]
      %66 = vst [vmem:[%s54 + $0x14] sm:%s46] %v65
      %v67 = vld [vmem:[%s53 + $0x14] sm:%s46]
      %68 = vst [vmem:[%s54 + $0x18] sm:%s46] %v67
      %v69 = vld [vmem:[%s53 + $0x1c] sm:%s46]
      %70 = vst [vmem:[%s54 + $0x1c] sm:%s46] %v69
      %v71 = vld [vmem:[%s53 + $0x20] sm:%s46]
      %72 = vst [vmem:[%s54 + $0x20] sm:%s46] %v71
      %v73 = vld [vmem:[%s53 + $0x28] sm:%s46]
      %74 = vst [vmem:[%s54 + $0x24] sm:%s46] %v73
      %v75 = vld [vmem:[%s53 + $0x24] sm:%s46]
      %76 = vst [vmem:[%s54 + $0x28] sm:%s46] %v75
      %v77 = vld [vmem:[%s53 + $0x2c] sm:%s46]
      %78 = vst [vmem:[%s54 + $0x2c] sm:%s46] %v77
      %v79 = vld [vmem:[%s53 + $0x30] sm:%s46]
      %80 = vst [vmem:[%s54 + $0x30] sm:%s46] %v79
      %v81 = vld [vmem:[%s53 + $0x38] sm:%s46]
      %82 = vst [vmem:[%s54 + $0x34] sm:%s46] %v81
      %v83 = vld [vmem:[%s53 + $0x34] sm:%s46]
      %84 = vst [vmem:[%s54 + $0x38] sm:%s46] %v83
      %v85 = vld [vmem:[%s53 + $0x3c] sm:%s46]
      %86 = vst [vmem:[%s54 + $0x3c] sm:%s46] %v85
      %v87 = vld [vmem:[%s53 + $0x40] sm:%s46]
      %88 = vst [vmem:[%s54 + $0x40] sm:%s46] %v87
      %v89 = vld [vmem:[%s53 + $0x48] sm:%s46]
      %90 = vst [vmem:[%s54 + $0x44] sm:%s46] %v89
      %v91 = vld [vmem:[%s53 + $0x44] sm:%s46]
      %92 = vst [vmem:[%s54 + $0x48] sm:%s46] %v91
      %v93 = vld [vmem:[%s53 + $0x4c] sm:%s46]
      %94 = vst [vmem:[%s54 + $0x4c] sm:%s46] %v93
      %v95 = vld [vmem:[%s53 + $0x50] sm:%s46]
      %96 = vst [vmem:[%s54 + $0x50] sm:%s46] %v95
      %v97 = vld [vmem:[%s53 + $0x58] sm:%s46]
      %98 = vst [vmem:[%s54 + $0x54] sm:%s46] %v97
      %v99 = vld [vmem:[%s53 + $0x54] sm:%s46]
      %100 = vst [vmem:[%s54 + $0x58] sm:%s46] %v99
      %v101 = vld [vmem:[%s53 + $0x5c] sm:%s46]
      %102 = vst [vmem:[%s54 + $0x5c] sm:%s46] %v101
      %v103 = vld [vmem:[%s53 + $0x60] sm:%s46]
      %104 = vst [vmem:[%s54 + $0x60] sm:%s46] %v103
      %v105 = vld [vmem:[%s53 + $0x68] sm:%s46]
      %106 = vst [vmem:[%s54 + $0x64] sm:%s46] %v105
      %v107 = vld [vmem:[%s53 + $0x64] sm:%s46]
      %108 = vst [vmem:[%s54 + $0x68] sm:%s46] %v107
      %v109 = vld [vmem:[%s53 + $0x6c] sm:%s46]
      %110 = vst [vmem:[%s54 + $0x6c] sm:%s46] %v109
      %v111 = vld [vmem:[%s53 + $0x70] sm:%s46]
      %112 = vst [vmem:[%s54 + $0x70] sm:%s46] %v111
      %v113 = vld [vmem:[%s53 + $0x78] sm:%s46]
      %114 = vst [vmem:[%s54 + $0x74] sm:%s46] %v113
      %v115 = vld [vmem:[%s53 + $0x74] sm:%s46]
      %116 = vst [vmem:[%s54 + $0x78] sm:%s46] %v115
      %v117 = vld [vmem:[%s53 + $0x7c] sm:%s46]
      %118 = vst [vmem:[%s54 + $0x7c] sm:%s46] %v117
      %v119 = vld [vmem:[%s53 + $0x80] sm:%s46]
      %120 = vst [vmem:[%s54 + $0x80] sm:%s46] %v119
      %v121 = vld [vmem:[%s53 + $0x88] sm:%s46]
      %122 = vst [vmem:[%s54 + $0x84] sm:%s46] %v121
      %v123 = vld [vmem:[%s53 + $0x84] sm:%s46]
      %124 = vst [vmem:[%s54 + $0x88] sm:%s46] %v123
      %v125 = vld [vmem:[%s53 + $0x8c] sm:%s46]
      %126 = vst [vmem:[%s54 + $0x8c] sm:%s46] %v125
      %v127 = vld [vmem:[%s53 + $0x90] sm:%s46]
      %128 = vst [vmem:[%s54 + $0x90] sm:%s46] %v127
      %v129 = vld [vmem:[%s53 + $0x98] sm:%s46]
      %130 = vst [vmem:[%s54 + $0x94] sm:%s46] %v129
      %v131 = vld [vmem:[%s53 + $0x94] sm:%s46]
      %132 = vst [vmem:[%s54 + $0x98] sm:%s46] %v131
      %v133 = vld [vmem:[%s53 + $0x9c] sm:%s46]
      %134 = vst [vmem:[%s54 + $0x9c] sm:%s46] %v133
      %v135 = vld [vmem:[%s53 + $0xa0] sm:%s46]
      %136 = vst [vmem:[%s54 + $0xa0] sm:%s46] %v135
      %v137 = vld [vmem:[%s53 + $0xa8] sm:%s46]
      %138 = vst [vmem:[%s54 + $0xa4] sm:%s46] %v137
      %v139 = vld [vmem:[%s53 + $0xa4] sm:%s46]
      %140 = vst [vmem:[%s54 + $0xa8] sm:%s46] %v139
      %v141 = vld [vmem:[%s53 + $0xac] sm:%s46]
      %142 = vst [vmem:[%s54 + $0xac] sm:%s46] %v141
      %v143 = vld [vmem:[%s53 + $0xb0] sm:%s46]
      %144 = vst [vmem:[%s54 + $0xb0] sm:%s46] %v143
      %v145 = vld [vmem:[%s53 + $0xb8] sm:%s46]
      %146 = vst [vmem:[%s54 + $0xb4] sm:%s46] %v145
      %v147 = vld [vmem:[%s53 + $0xb4] sm:%s46]
      %148 = vst [vmem:[%s54 + $0xb8] sm:%s46] %v147
      %v149 = vld [vmem:[%s53 + $0xbc] sm:%s46]
      %150 = vst [vmem:[%s54 + $0xbc] sm:%s46] %v149
      %v151 = vld [vmem:[%s53 + $0xc0] sm:%s46]
      %152 = vst [vmem:[%s54 + $0xc0] sm:%s46] %v151
      %v153 = vld [vmem:[%s53 + $0xc8] sm:%s46]
      %154 = vst [vmem:[%s54 + $0xc4] sm:%s46] %v153
      %v155 = vld [vmem:[%s53 + $0xc4] sm:%s46]
      %156 = vst [vmem:[%s54 + $0xc8] sm:%s46] %v155
      %v157 = vld [vmem:[%s53 + $0xcc] sm:%s46]
      %158 = vst [vmem:[%s54 + $0xcc] sm:%s46] %v157
      %v159 = vld [vmem:[%s53 + $0xd0] sm:%s46]
      %160 = vst [vmem:[%s54 + $0xd0] sm:%s46] %v159
      %v161 = vld [vmem:[%s53 + $0xd8] sm:%s46]
      %162 = vst [vmem:[%s54 + $0xd4] sm:%s46] %v161
      %v163 = vld [vmem:[%s53 + $0xd4] sm:%s46]
      %164 = vst [vmem:[%s54 + $0xd8] sm:%s46] %v163
      %v165 = vld [vmem:[%s53 + $0xdc] sm:%s46]
      %166 = vst [vmem:[%s54 + $0xdc] sm:%s46] %v165
      %v167 = vld [vmem:[%s53 + $0xe0] sm:%s46]
      %168 = vst [vmem:[%s54 + $0xe0] sm:%s46] %v167
      %v169 = vld [vmem:[%s53 + $0xe8] sm:%s46]
      %170 = vst [vmem:[%s54 + $0xe4] sm:%s46] %v169
      %v171 = vld [vmem:[%s53 + $0xe4] sm:%s46]
      %172 = vst [vmem:[%s54 + $0xe8] sm:%s46] %v171
      %v173 = vld [vmem:[%s53 + $0xec] sm:%s46]
      %174 = vst [vmem:[%s54 + $0xec] sm:%s46] %v173
      %v175 = vld [vmem:[%s53 + $0xf0] sm:%s46]
      %176 = vst [vmem:[%s54 + $0xf0] sm:%s46] %v175
      %v177 = vld [vmem:[%s53 + $0xf8] sm:%s46]
      %178 = vst [vmem:[%s54 + $0xf4] sm:%s46] %v177
      %v179 = vld [vmem:[%s53 + $0xf4] sm:%s46]
      %180 = vst [vmem:[%s54 + $0xf8] sm:%s46] %v179
      %v181 = vld [vmem:[%s53 + $0xfc] sm:%s46]
      %182 = vst [vmem:[%s54 + $0xfc] sm:%s46] %v181
      %v183 = vld [vmem:[%s53 + $0x100] sm:%s46]
      %184 = vst [vmem:[%s54 + $0x100] sm:%s46] %v183
      %v185 = vld [vmem:[%s53 + $0x108] sm:%s46]
      %186 = vst [vmem:[%s54 + $0x104] sm:%s46] %v185
      %v187 = vld [vmem:[%s53 + $0x104] sm:%s46]
      %188 = vst [vmem:[%s54 + $0x108] sm:%s46] %v187
      %v189 = vld [vmem:[%s53 + $0x10c] sm:%s46]
      %190 = vst [vmem:[%s54 + $0x10c] sm:%s46] %v189
      %v191 = vld [vmem:[%s53 + $0x110] sm:%s46]
      %192 = vst [vmem:[%s54 + $0x110] sm:%s46] %v191
      %v193 = vld [vmem:[%s53 + $0x118] sm:%s46]
      %194 = vst [vmem:[%s54 + $0x114] sm:%s46] %v193
      %v195 = vld [vmem:[%s53 + $0x114] sm:%s46]
      %196 = vst [vmem:[%s54 + $0x118] sm:%s46] %v195
      %v197 = vld [vmem:[%s53 + $0x11c] sm:%s46]
      %198 = vst [vmem:[%s54 + $0x11c] sm:%s46] %v197
      %v199 = vld [vmem:[%s53 + $0x120] sm:%s46]
      %200 = vst [vmem:[%s54 + $0x120] sm:%s46] %v199
      %v201 = vld [vmem:[%s53 + $0x128] sm:%s46]
      %202 = vst [vmem:[%s54 + $0x124] sm:%s46] %v201
      %v203 = vld [vmem:[%s53 + $0x124] sm:%s46]
      %204 = vst [vmem:[%s54 + $0x128] sm:%s46] %v203
      %v205 = vld [vmem:[%s53 + $0x12c] sm:%s46]
      %206 = vst [vmem:[%s54 + $0x12c] sm:%s46] %v205
      %v207 = vld [vmem:[%s53 + $0x130] sm:%s46]
      %208 = vst [vmem:[%s54 + $0x130] sm:%s46] %v207
      %v209 = vld [vmem:[%s53 + $0x138] sm:%s46]
      %210 = vst [vmem:[%s54 + $0x134] sm:%s46] %v209
      %v211 = vld [vmem:[%s53 + $0x134] sm:%s46]
      %212 = vst [vmem:[%s54 + $0x138] sm:%s46] %v211
      %v213 = vld [vmem:[%s53 + $0x13c] sm:%s46]
      %214 = vst [vmem:[%s54 + $0x13c] sm:%s46] %v213
      %v215 = vld [vmem:[%s53 + $0x140] sm:%s46]
      %216 = vst [vmem:[%s54 + $0x140] sm:%s46] %v215
      %v217 = vld [vmem:[%s53 + $0x148] sm:%s46]
      %218 = vst [vmem:[%s54 + $0x144] sm:%s46] %v217
      %v219 = vld [vmem:[%s53 + $0x144] sm:%s46]
      %220 = vst [vmem:[%s54 + $0x148] sm:%s46] %v219
      %v221 = vld [vmem:[%s53 + $0x14c] sm:%s46]
      %222 = vst [vmem:[%s54 + $0x14c] sm:%s46] %v221
      %v223 = vld [vmem:[%s53 + $0x150] sm:%s46]
      %224 = vst [vmem:[%s54 + $0x150] sm:%s46] %v223
      %v225 = vld [vmem:[%s53 + $0x158] sm:%s46]
      %226 = vst [vmem:[%s54 + $0x154] sm:%s46] %v225
      %v227 = vld [vmem:[%s53 + $0x154] sm:%s46]
      %228 = vst [vmem:[%s54 + $0x158] sm:%s46] %v227
      %v229 = vld [vmem:[%s53 + $0x15c] sm:%s46]
      %230 = vst [vmem:[%s54 + $0x15c] sm:%s46] %v229
      %v231 = vld [vmem:[%s53 + $0x160] sm:%s46]
      %232 = vst [vmem:[%s54 + $0x160] sm:%s46] %v231
      %v233 = vld [vmem:[%s53 + $0x168] sm:%s46]
      %234 = vst [vmem:[%s54 + $0x164] sm:%s46] %v233
      %v235 = vld [vmem:[%s53 + $0x164] sm:%s46]
      %236 = vst [vmem:[%s54 + $0x168] sm:%s46] %v235
      %v237 = vld [vmem:[%s53 + $0x16c] sm:%s46]
      %238 = vst [vmem:[%s54 + $0x16c] sm:%s46] %v237
      %v239 = vld [vmem:[%s53 + $0x170] sm:%s46]
      %240 = vst [vmem:[%s54 + $0x170] sm:%s46] %v239
      %v241 = vld [vmem:[%s53 + $0x178] sm:%s46]
      %242 = vst [vmem:[%s54 + $0x174] sm:%s46] %v241
      %v243 = vld [vmem:[%s53 + $0x174] sm:%s46]
      %244 = vst [vmem:[%s54 + $0x178] sm:%s46] %v243
      %v245 = vld [vmem:[%s53 + $0x17c] sm:%s46]
      %246 = vst [vmem:[%s54 + $0x17c] sm:%s46] %v245
      %v247 = vld [vmem:[%s53 + $0x180] sm:%s46]
      %248 = vst [vmem:[%s54 + $0x180] sm:%s46] %v247
      %v249 = vld [vmem:[%s53 + $0x188] sm:%s46]
      %250 = vst [vmem:[%s54 + $0x184] sm:%s46] %v249
      %v251 = vld [vmem:[%s53 + $0x184] sm:%s46]
      %252 = vst [vmem:[%s54 + $0x188] sm:%s46] %v251
      %v253 = vld [vmem:[%s53 + $0x18c] sm:%s46]
      %254 = vst [vmem:[%s54 + $0x18c] sm:%s46] %v253
      %v255 = vld [vmem:[%s53 + $0x190] sm:%s46]
      %256 = vst [vmem:[%s54 + $0x190] sm:%s46] %v255
      %v257 = vld [vmem:[%s53 + $0x198] sm:%s46]
      %258 = vst [vmem:[%s54 + $0x194] sm:%s46] %v257
      %v259 = vld [vmem:[%s53 + $0x194] sm:%s46]
      %260 = vst [vmem:[%s54 + $0x198] sm:%s46] %v259
      %v261 = vld [vmem:[%s53 + $0x19c] sm:%s46]
      %262 = vst [vmem:[%s54 + $0x19c] sm:%s46] %v261
      %v263 = vld [vmem:[%s53 + $0x1a0] sm:%s46]
      %264 = vst [vmem:[%s54 + $0x1a0] sm:%s46] %v263
      %v265 = vld [vmem:[%s53 + $0x1a8] sm:%s46]
      %266 = vst [vmem:[%s54 + $0x1a4] sm:%s46] %v265
      %v267 = vld [vmem:[%s53 + $0x1a4] sm:%s46]
      %268 = vst [vmem:[%s54 + $0x1a8] sm:%s46] %v267
      %v269 = vld [vmem:[%s53 + $0x1ac] sm:%s46]
      %270 = vst [vmem:[%s54 + $0x1ac] sm:%s46] %v269
      %v271 = vld [vmem:[%s53 + $0x1b0] sm:%s46]
      %272 = vst [vmem:[%s54 + $0x1b0] sm:%s46] %v271
      %v273 = vld [vmem:[%s53 + $0x1b8] sm:%s46]
      %274 = vst [vmem:[%s54 + $0x1b4] sm:%s46] %v273
      %v275 = vld [vmem:[%s53 + $0x1b4] sm:%s46]
      %276 = vst [vmem:[%s54 + $0x1b8] sm:%s46] %v275
      %v277 = vld [vmem:[%s53 + $0x1bc] sm:%s46]
      %278 = vst [vmem:[%s54 + $0x1bc] sm:%s46] %v277
      %v279 = vld [vmem:[%s53 + $0x1c0] sm:%s46]
      %280 = vst [vmem:[%s54 + $0x1c0] sm:%s46] %v279
      %v281 = vld [vmem:[%s53 + $0x1c8] sm:%s46]
      %282 = vst [vmem:[%s54 + $0x1c4] sm:%s46] %v281
      %v283 = vld [vmem:[%s53 + $0x1c4] sm:%s46]
      %284 = vst [vmem:[%s54 + $0x1c8] sm:%s46] %v283
      %v285 = vld [vmem:[%s53 + $0x1cc] sm:%s46]
      %286 = vst [vmem:[%s54 + $0x1cc] sm:%s46] %v285
      %v287 = vld [vmem:[%s53 + $0x1d0] sm:%s46]
      %288 = vst [vmem:[%s54 + $0x1d0] sm:%s46] %v287
      %v289 = vld [vmem:[%s53 + $0x1d8] sm:%s46]
      %290 = vst [vmem:[%s54 + $0x1d4] sm:%s46] %v289
      %v291 = vld [vmem:[%s53 + $0x1d4] sm:%s46]
      %292 = vst [vmem:[%s54 + $0x1d8] sm:%s46] %v291
      %v293 = vld [vmem:[%s53 + $0x1dc] sm:%s46]
      %294 = vst [vmem:[%s54 + $0x1dc] sm:%s46] %v293
      %v295 = vld [vmem:[%s53 + $0x1e0] sm:%s46]
      %296 = vst [vmem:[%s54 + $0x1e0] sm:%s46] %v295
      %v297 = vld [vmem:[%s53 + $0x1e8] sm:%s46]
      %298 = vst [vmem:[%s54 + $0x1e4] sm:%s46] %v297
      %v299 = vld [vmem:[%s53 + $0x1e4] sm:%s46]
      %300 = vst [vmem:[%s54 + $0x1e8] sm:%s46] %v299
      %v301 = vld [vmem:[%s53 + $0x1ec] sm:%s46]
      %302 = vst [vmem:[%s54 + $0x1ec] sm:%s46] %v301
      %v303 = vld [vmem:[%s53 + $0x1f0] sm:%s46]
      %304 = vst [vmem:[%s54 + $0x1f0] sm:%s46] %v303
      %v305 = vld [vmem:[%s53 + $0x1f8] sm:%s46]
      %306 = vst [vmem:[%s54 + $0x1f4] sm:%s46] %v305
      %v307 = vld [vmem:[%s53 + $0x1f4] sm:%s46]
      %308 = vst [vmem:[%s54 + $0x1f8] sm:%s46] %v307
      %v309 = vld [vmem:[%s53 + $0x1fc] sm:%s46]
      %310 = vst [vmem:[%s54 + $0x1fc] sm:%s46] %v309
      %v311 = vld [vmem:[%s53 + $0x200] sm:%s46]
      %312 = vst [vmem:[%s54 + $0x200] sm:%s46] %v311
      %v313 = vld [vmem:[%s53 + $0x208] sm:%s46]
      %314 = vst [vmem:[%s54 + $0x204] sm:%s46] %v313
      %v315 = vld [vmem:[%s53 + $0x204] sm:%s46]
      %316 = vst [vmem:[%s54 + $0x208] sm:%s46] %v315
      %v317 = vld [vmem:[%s53 + $0x20c] sm:%s46]
      %318 = vst [vmem:[%s54 + $0x20c] sm:%s46] %v317
      %v319 = vld [vmem:[%s53 + $0x210] sm:%s46]
      %320 = vst [vmem:[%s54 + $0x210] sm:%s46] %v319
      %v321 = vld [vmem:[%s53 + $0x218] sm:%s46]
      %322 = vst [vmem:[%s54 + $0x214] sm:%s46] %v321
      %v323 = vld [vmem:[%s53 + $0x214] sm:%s46]
      %324 = vst [vmem:[%s54 + $0x218] sm:%s46] %v323
      %v325 = vld [vmem:[%s53 + $0x21c] sm:%s46]
      %326 = vst [vmem:[%s54 + $0x21c] sm:%s46] %v325
      %v327 = vld [vmem:[%s53 + $0x220] sm:%s46]
      %328 = vst [vmem:[%s54 + $0x220] sm:%s46] %v327
      %v329 = vld [vmem:[%s53 + $0x228] sm:%s46]
      %330 = vst [vmem:[%s54 + $0x224] sm:%s46] %v329
      %v331 = vld [vmem:[%s53 + $0x224] sm:%s46]
      %332 = vst [vmem:[%s54 + $0x228] sm:%s46] %v331
      %v333 = vld [vmem:[%s53 + $0x22c] sm:%s46]
      %334 = vst [vmem:[%s54 + $0x22c] sm:%s46] %v333
      %v335 = vld [vmem:[%s53 + $0x230] sm:%s46]
      %336 = vst [vmem:[%s54 + $0x230] sm:%s46] %v335
      %v337 = vld [vmem:[%s53 + $0x238] sm:%s46]
      %338 = vst [vmem:[%s54 + $0x234] sm:%s46] %v337
      %v339 = vld [vmem:[%s53 + $0x234] sm:%s46]
      %340 = vst [vmem:[%s54 + $0x238] sm:%s46] %v339
      %v341 = vld [vmem:[%s53 + $0x23c] sm:%s46]
      %342 = vst [vmem:[%s54 + $0x23c] sm:%s46] %v341
    $region54: #{mnasnet_block.1} parent=48 // loop_footer
      %s52 = sadd.s32 1, %s48
    $region55: #{mnasnet_block.1} parent=48 // loop_footer_branch
      %47 = sbr.rel target = $region51
    $region56: #{mnasnet_block.1} parent=48 // loop_exit
      _
  $region49: #{mnasnet_block.1} parent=0 // pred_fallthru
    _
  // Predicated region
  $region75: #{mnasnet_block.1} parent=0 // pred_check
    _
  $region76: #{mnasnet_block.1} parent=0 // pred_check_branch
    %660 = sbr.rel (0) target = $region78
  $region77: #{mnasnet_block.1} parent=0 // pred_region
    %661 = vsyncadd [#allocation4], 9216
  $region78: #{mnasnet_block.1} parent=0 // pred_fallthru
    _
  %s662 = scalar_lea.sflag [#allocation4], 1
  %p664 = scmp.lt.u32.totalorder 4, 8
  %p665 = pneg %p664
  // Predicated region
  $region79: #{mnasnet_block.1} parent=0 // pred_check
    _
  $region80: #{mnasnet_block.1} parent=0 // pred_check_branch
    %667 = sbr.rel (%p664) target = $region82
  $region81: #{mnasnet_block.1} parent=0 // pred_region
    %s1080 = sand.u32 4, 7
    %p1081 = scmp.eq.s32.totalorder %s1080, 0
    %p1082 = pneg %p1081
    // Predicated region
    $region94: #{mnasnet_block.1} parent=81 // pred_check
      _
    $region95: #{mnasnet_block.1} parent=81 // pred_check_branch
      %1084 = sbr.rel (%p1081) target = $region97
    $region96: #{mnasnet_block.1} parent=81 // pred_region
      %s1085 = sand.u32 4, 7
      %s1086 = ssub.s32 4, %s1085
      %s1087 = scalar_lea.vmem %s11, %s1086
      %s1088 = ssub.s32 4, %s1085
      %s1089 = scalar_lea.vmem [#allocation3], %s1088
      loop: start=0, step=1, limit=1
      $region98: #{mnasnet_block.1} parent=96 // loop_pre_header
        _
      $region99: #{mnasnet_block.1} parent=96 // loop_header
        %s1091 = sphi 0, %s1095
        %p1092 = scmp.ge.s32.totalorder %s1091, 1
        %s1096 = sphi %s11, %s11
        %s1097 = sphi [#allocation3], [#allocation3]
      $region100: #{mnasnet_block.1} parent=96 // loop_header_branch
        %1094 = sbr.rel (%p1092) target = $region104
      $region101: #{mnasnet_block.1} parent=96 // loop_body
        _
      $region102: #{mnasnet_block.1} parent=96 // loop_footer
        %s1095 = sadd.s32 1, %s1091
      $region103: #{mnasnet_block.1} parent=96 // loop_footer_branch
        %1090 = sbr.rel target = $region99
      $region104: #{mnasnet_block.1} parent=96 // loop_exit
        _
      %s1098 = sshllo.u32 0, %s1085
      loop: start=0, step=1, limit=1
      $region105: #{mnasnet_block.1} parent=96 // loop_pre_header
        _
      $region106: #{mnasnet_block.1} parent=96 // loop_header
        %s1100 = sphi 0, %s1104
        %p1101 = scmp.ge.s32.totalorder %s1100, 1
        %s1105 = sphi %s1087, %s1087
        %s1106 = sphi %s1089, %s1089
      $region107: #{mnasnet_block.1} parent=96 // loop_header_branch
        %1103 = sbr.rel (%p1101) target = $region111
      $region108: #{mnasnet_block.1} parent=96 // loop_body
        %v1107 = vld [vmem:[%s1105] sm:%s1098]
        %1108 = vst [vmem:[%s1106] sm:%s1098] %v1107
        %v1109 = vld [vmem:[%s1105 + $0x28] sm:%s1098]
        %1110 = vst [vmem:[%s1106 + $0x4] sm:%s1098] %v1109
        %v1111 = vld [vmem:[%s1105 + $0x4] sm:%s1098]
        %1112 = vst [vmem:[%s1106 + $0x8] sm:%s1098] %v1111
        %v1113 = vld [vmem:[%s1105 + $0x2c] sm:%s1098]
        %1114 = vst [vmem:[%s1106 + $0xc] sm:%s1098] %v1113
        %v1115 = vld [vmem:[%s1105 + $0x8] sm:%s1098]
        %1116 = vst [vmem:[%s1106 + $0x10] sm:%s1098] %v1115
        %v1117 = vld [vmem:[%s1105 + $0x30] sm:%s1098]
        %1118 = vst [vmem:[%s1106 + $0x14] sm:%s1098] %v1117
        %v1119 = vld [vmem:[%s1105 + $0xc] sm:%s1098]
        %1120 = vst [vmem:[%s1106 + $0x18] sm:%s1098] %v1119
        %v1121 = vld [vmem:[%s1105 + $0x34] sm:%s1098]
        %1122 = vst [vmem:[%s1106 + $0x1c] sm:%s1098] %v1121
        %v1123 = vld [vmem:[%s1105 + $0x10] sm:%s1098]
        %1124 = vst [vmem:[%s1106 + $0x20] sm:%s1098] %v1123
        %v1125 = vld [vmem:[%s1105 + $0x38] sm:%s1098]
        %1126 = vst [vmem:[%s1106 + $0x24] sm:%s1098] %v1125
        %v1127 = vld [vmem:[%s1105 + $0x14] sm:%s1098]
        %1128 = vst [vmem:[%s1106 + $0x28] sm:%s1098] %v1127
        %v1129 = vld [vmem:[%s1105 + $0x3c] sm:%s1098]
        %1130 = vst [vmem:[%s1106 + $0x2c] sm:%s1098] %v1129
        %v1131 = vld [vmem:[%s1105 + $0x18] sm:%s1098]
        %1132 = vst [vmem:[%s1106 + $0x30] sm:%s1098] %v1131
        %v1133 = vld [vmem:[%s1105 + $0x40] sm:%s1098]
        %1134 = vst [vmem:[%s1106 + $0x34] sm:%s1098] %v1133
        %v1135 = vld [vmem:[%s1105 + $0x1c] sm:%s1098]
        %1136 = vst [vmem:[%s1106 + $0x38] sm:%s1098] %v1135
        %v1137 = vld [vmem:[%s1105 + $0x44] sm:%s1098]
        %1138 = vst [vmem:[%s1106 + $0x3c] sm:%s1098] %v1137
        %v1139 = vld [vmem:[%s1105 + $0x20] sm:%s1098]
        %1140 = vst [vmem:[%s1106 + $0x40] sm:%s1098] %v1139
        %v1141 = vld [vmem:[%s1105 + $0x48] sm:%s1098]
        %1142 = vst [vmem:[%s1106 + $0x44] sm:%s1098] %v1141
        %v1143 = vld [vmem:[%s1105 + $0x24] sm:%s1098]
        %1144 = vst [vmem:[%s1106 + $0x48] sm:%s1098] %v1143
        %v1145 = vld [vmem:[%s1105 + $0x4c] sm:%s1098]
        %1146 = vst [vmem:[%s1106 + $0x4c] sm:%s1098] %v1145
        %v1147 = vld [vmem:[%s1105 + $0x50] sm:%s1098]
        %1148 = vst [vmem:[%s1106 + $0x50] sm:%s1098] %v1147
        %v1149 = vld [vmem:[%s1105 + $0x78] sm:%s1098]
        %1150 = vst [vmem:[%s1106 + $0x54] sm:%s1098] %v1149
        %v1151 = vld [vmem:[%s1105 + $0x54] sm:%s1098]
        %1152 = vst [vmem:[%s1106 + $0x58] sm:%s1098] %v1151
        %v1153 = vld [vmem:[%s1105 + $0x7c] sm:%s1098]
        %1154 = vst [vmem:[%s1106 + $0x5c] sm:%s1098] %v1153
        %v1155 = vld [vmem:[%s1105 + $0x58] sm:%s1098]
        %1156 = vst [vmem:[%s1106 + $0x60] sm:%s1098] %v1155
        %v1157 = vld [vmem:[%s1105 + $0x80] sm:%s1098]
        %1158 = vst [vmem:[%s1106 + $0x64] sm:%s1098] %v1157
        %v1159 = vld [vmem:[%s1105 + $0x5c] sm:%s1098]
        %1160 = vst [vmem:[%s1106 + $0x68] sm:%s1098] %v1159
        %v1161 = vld [vmem:[%s1105 + $0x84] sm:%s1098]
        %1162 = vst [vmem:[%s1106 + $0x6c] sm:%s1098] %v1161
        %v1163 = vld [vmem:[%s1105 + $0x60] sm:%s1098]
        %1164 = vst [vmem:[%s1106 + $0x70] sm:%s1098] %v1163
        %v1165 = vld [vmem:[%s1105 + $0x88] sm:%s1098]
        %1166 = vst [vmem:[%s1106 + $0x74] sm:%s1098] %v1165
        %v1167 = vld [vmem:[%s1105 + $0x64] sm:%s1098]
        %1168 = vst [vmem:[%s1106 + $0x78] sm:%s1098] %v1167
        %v1169 = vld [vmem:[%s1105 + $0x8c] sm:%s1098]
        %1170 = vst [vmem:[%s1106 + $0x7c] sm:%s1098] %v1169
        %v1171 = vld [vmem:[%s1105 + $0x68] sm:%s1098]
        %1172 = vst [vmem:[%s1106 + $0x80] sm:%s1098] %v1171
        %v1173 = vld [vmem:[%s1105 + $0x90] sm:%s1098]
        %1174 = vst [vmem:[%s1106 + $0x84] sm:%s1098] %v1173
        %v1175 = vld [vmem:[%s1105 + $0x6c] sm:%s1098]
        %1176 = vst [vmem:[%s1106 + $0x88] sm:%s1098] %v1175
        %v1177 = vld [vmem:[%s1105 + $0x94] sm:%s1098]
        %1178 = vst [vmem:[%s1106 + $0x8c] sm:%s1098] %v1177
        %v1179 = vld [vmem:[%s1105 + $0x70] sm:%s1098]
        %1180 = vst [vmem:[%s1106 + $0x90] sm:%s1098] %v1179
        %v1181 = vld [vmem:[%s1105 + $0x98] sm:%s1098]
        %1182 = vst [vmem:[%s1106 + $0x94] sm:%s1098] %v1181
        %v1183 = vld [vmem:[%s1105 + $0x74] sm:%s1098]
        %1184 = vst [vmem:[%s1106 + $0x98] sm:%s1098] %v1183
        %v1185 = vld [vmem:[%s1105 + $0x9c] sm:%s1098]
        %1186 = vst [vmem:[%s1106 + $0x9c] sm:%s1098] %v1185
        %v1187 = vld [vmem:[%s1105 + $0xa0] sm:%s1098]
        %1188 = vst [vmem:[%s1106 + $0xa0] sm:%s1098] %v1187
        %v1189 = vld [vmem:[%s1105 + $0xc8] sm:%s1098]
        %1190 = vst [vmem:[%s1106 + $0xa4] sm:%s1098] %v1189
        %v1191 = vld [vmem:[%s1105 + $0xa4] sm:%s1098]
        %1192 = vst [vmem:[%s1106 + $0xa8] sm:%s1098] %v1191
        %v1193 = vld [vmem:[%s1105 + $0xcc] sm:%s1098]
        %1194 = vst [vmem:[%s1106 + $0xac] sm:%s1098] %v1193
        %v1195 = vld [vmem:[%s1105 + $0xa8] sm:%s1098]
        %1196 = vst [vmem:[%s1106 + $0xb0] sm:%s1098] %v1195
        %v1197 = vld [vmem:[%s1105 + $0xd0] sm:%s1098]
        %1198 = vst [vmem:[%s1106 + $0xb4] sm:%s1098] %v1197
        %v1199 = vld [vmem:[%s1105 + $0xac] sm:%s1098]
        %1200 = vst [vmem:[%s1106 + $0xb8] sm:%s1098] %v1199
        %v1201 = vld [vmem:[%s1105 + $0xd4] sm:%s1098]
        %1202 = vst [vmem:[%s1106 + $0xbc] sm:%s1098] %v1201
        %v1203 = vld [vmem:[%s1105 + $0xb0] sm:%s1098]
        %1204 = vst [vmem:[%s1106 + $0xc0] sm:%s1098] %v1203
        %v1205 = vld [vmem:[%s1105 + $0xd8] sm:%s1098]
        %1206 = vst [vmem:[%s1106 + $0xc4] sm:%s1098] %v1205
        %v1207 = vld [vmem:[%s1105 + $0xb4] sm:%s1098]
        %1208 = vst [vmem:[%s1106 + $0xc8] sm:%s1098] %v1207
        %v1209 = vld [vmem:[%s1105 + $0xdc] sm:%s1098]
        %1210 = vst [vmem:[%s1106 + $0xcc] sm:%s1098] %v1209
        %v1211 = vld [vmem:[%s1105 + $0xb8] sm:%s1098]
        %1212 = vst [vmem:[%s1106 + $0xd0] sm:%s1098] %v1211
        %v1213 = vld [vmem:[%s1105 + $0xe0] sm:%s1098]
        %1214 = vst [vmem:[%s1106 + $0xd4] sm:%s1098] %v1213
        %v1215 = vld [vmem:[%s1105 + $0xbc] sm:%s1098]
        %1216 = vst [vmem:[%s1106 + $0xd8] sm:%s1098] %v1215
        %v1217 = vld [vmem:[%s1105 + $0xe4] sm:%s1098]
        %1218 = vst [vmem:[%s1106 + $0xdc] sm:%s1098] %v1217
        %v1219 = vld [vmem:[%s1105 + $0xc0] sm:%s1098]
        %1220 = vst [vmem:[%s1106 + $0xe0] sm:%s1098] %v1219
        %v1221 = vld [vmem:[%s1105 + $0xe8] sm:%s1098]
        %1222 = vst [vmem:[%s1106 + $0xe4] sm:%s1098] %v1221
        %v1223 = vld [vmem:[%s1105 + $0xc4] sm:%s1098]
        %1224 = vst [vmem:[%s1106 + $0xe8] sm:%s1098] %v1223
        %v1225 = vld [vmem:[%s1105 + $0xec] sm:%s1098]
        %1226 = vst [vmem:[%s1106 + $0xec] sm:%s1098] %v1225
        %v1227 = vld [vmem:[%s1105 + $0xf0] sm:%s1098]
        %1228 = vst [vmem:[%s1106 + $0xf0] sm:%s1098] %v1227
        %v1229 = vld [vmem:[%s1105 + $0x118] sm:%s1098]
        %1230 = vst [vmem:[%s1106 + $0xf4] sm:%s1098] %v1229
        %v1231 = vld [vmem:[%s1105 + $0xf4] sm:%s1098]
        %1232 = vst [vmem:[%s1106 + $0xf8] sm:%s1098] %v1231
        %v1233 = vld [vmem:[%s1105 + $0x11c] sm:%s1098]
        %1234 = vst [vmem:[%s1106 + $0xfc] sm:%s1098] %v1233
        %v1235 = vld [vmem:[%s1105 + $0xf8] sm:%s1098]
        %1236 = vst [vmem:[%s1106 + $0x100] sm:%s1098] %v1235
        %v1237 = vld [vmem:[%s1105 + $0x120] sm:%s1098]
        %1238 = vst [vmem:[%s1106 + $0x104] sm:%s1098] %v1237
        %v1239 = vld [vmem:[%s1105 + $0xfc] sm:%s1098]
        %1240 = vst [vmem:[%s1106 + $0x108] sm:%s1098] %v1239
        %v1241 = vld [vmem:[%s1105 + $0x124] sm:%s1098]
        %1242 = vst [vmem:[%s1106 + $0x10c] sm:%s1098] %v1241
        %v1243 = vld [vmem:[%s1105 + $0x100] sm:%s1098]
        %1244 = vst [vmem:[%s1106 + $0x110] sm:%s1098] %v1243
        %v1245 = vld [vmem:[%s1105 + $0x128] sm:%s1098]
        %1246 = vst [vmem:[%s1106 + $0x114] sm:%s1098] %v1245
        %v1247 = vld [vmem:[%s1105 + $0x104] sm:%s1098]
        %1248 = vst [vmem:[%s1106 + $0x118] sm:%s1098] %v1247
        %v1249 = vld [vmem:[%s1105 + $0x12c] sm:%s1098]
        %1250 = vst [vmem:[%s1106 + $0x11c] sm:%s1098] %v1249
        %v1251 = vld [vmem:[%s1105 + $0x108] sm:%s1098]
        %1252 = vst [vmem:[%s1106 + $0x120] sm:%s1098] %v1251
        %v1253 = vld [vmem:[%s1105 + $0x130] sm:%s1098]
        %1254 = vst [vmem:[%s1106 + $0x124] sm:%s1098] %v1253
        %v1255 = vld [vmem:[%s1105 + $0x10c] sm:%s1098]
        %1256 = vst [vmem:[%s1106 + $0x128] sm:%s1098] %v1255
        %v1257 = vld [vmem:[%s1105 + $0x134] sm:%s1098]
        %1258 = vst [vmem:[%s1106 + $0x12c] sm:%s1098] %v1257
        %v1259 = vld [vmem:[%s1105 + $0x110] sm:%s1098]
        %1260 = vst [vmem:[%s1106 + $0x130] sm:%s1098] %v1259
        %v1261 = vld [vmem:[%s1105 + $0x138] sm:%s1098]
        %1262 = vst [vmem:[%s1106 + $0x134] sm:%s1098] %v1261
        %v1263 = vld [vmem:[%s1105 + $0x114] sm:%s1098]
        %1264 = vst [vmem:[%s1106 + $0x138] sm:%s1098] %v1263
        %v1265 = vld [vmem:[%s1105 + $0x13c] sm:%s1098]
        %1266 = vst [vmem:[%s1106 + $0x13c] sm:%s1098] %v1265
        %v1267 = vld [vmem:[%s1105 + $0x140] sm:%s1098]
        %1268 = vst [vmem:[%s1106 + $0x140] sm:%s1098] %v1267
        %v1269 = vld [vmem:[%s1105 + $0x168] sm:%s1098]
        %1270 = vst [vmem:[%s1106 + $0x144] sm:%s1098] %v1269
        %v1271 = vld [vmem:[%s1105 + $0x144] sm:%s1098]
        %1272 = vst [vmem:[%s1106 + $0x148] sm:%s1098] %v1271
        %v1273 = vld [vmem:[%s1105 + $0x16c] sm:%s1098]
        %1274 = vst [vmem:[%s1106 + $0x14c] sm:%s1098] %v1273
        %v1275 = vld [vmem:[%s1105 + $0x148] sm:%s1098]
        %1276 = vst [vmem:[%s1106 + $0x150] sm:%s1098] %v1275
        %v1277 = vld [vmem:[%s1105 + $0x170] sm:%s1098]
        %1278 = vst [vmem:[%s1106 + $0x154] sm:%s1098] %v1277
        %v1279 = vld [vmem:[%s1105 + $0x14c] sm:%s1098]
        %1280 = vst [vmem:[%s1106 + $0x158] sm:%s1098] %v1279
        %v1281 = vld [vmem:[%s1105 + $0x174] sm:%s1098]
        %1282 = vst [vmem:[%s1106 + $0x15c] sm:%s1098] %v1281
        %v1283 = vld [vmem:[%s1105 + $0x150] sm:%s1098]
        %1284 = vst [vmem:[%s1106 + $0x160] sm:%s1098] %v1283
        %v1285 = vld [vmem:[%s1105 + $0x178] sm:%s1098]
        %1286 = vst [vmem:[%s1106 + $0x164] sm:%s1098] %v1285
        %v1287 = vld [vmem:[%s1105 + $0x154] sm:%s1098]
        %1288 = vst [vmem:[%s1106 + $0x168] sm:%s1098] %v1287
        %v1289 = vld [vmem:[%s1105 + $0x17c] sm:%s1098]
        %1290 = vst [vmem:[%s1106 + $0x16c] sm:%s1098] %v1289
        %v1291 = vld [vmem:[%s1105 + $0x158] sm:%s1098]
        %1292 = vst [vmem:[%s1106 + $0x170] sm:%s1098] %v1291
        %v1293 = vld [vmem:[%s1105 + $0x180] sm:%s1098]
        %1294 = vst [vmem:[%s1106 + $0x174] sm:%s1098] %v1293
        %v1295 = vld [vmem:[%s1105 + $0x15c] sm:%s1098]
        %1296 = vst [vmem:[%s1106 + $0x178] sm:%s1098] %v1295
        %v1297 = vld [vmem:[%s1105 + $0x184] sm:%s1098]
        %1298 = vst [vmem:[%s1106 + $0x17c] sm:%s1098] %v1297
        %v1299 = vld [vmem:[%s1105 + $0x160] sm:%s1098]
        %1300 = vst [vmem:[%s1106 + $0x180] sm:%s1098] %v1299
        %v1301 = vld [vmem:[%s1105 + $0x188] sm:%s1098]
        %1302 = vst [vmem:[%s1106 + $0x184] sm:%s1098] %v1301
        %v1303 = vld [vmem:[%s1105 + $0x164] sm:%s1098]
        %1304 = vst [vmem:[%s1106 + $0x188] sm:%s1098] %v1303
        %v1305 = vld [vmem:[%s1105 + $0x18c] sm:%s1098]
        %1306 = vst [vmem:[%s1106 + $0x18c] sm:%s1098] %v1305
        %v1307 = vld [vmem:[%s1105 + $0x190] sm:%s1098]
        %1308 = vst [vmem:[%s1106 + $0x190] sm:%s1098] %v1307
        %v1309 = vld [vmem:[%s1105 + $0x1b8] sm:%s1098]
        %1310 = vst [vmem:[%s1106 + $0x194] sm:%s1098] %v1309
        %v1311 = vld [vmem:[%s1105 + $0x194] sm:%s1098]
        %1312 = vst [vmem:[%s1106 + $0x198] sm:%s1098] %v1311
        %v1313 = vld [vmem:[%s1105 + $0x1bc] sm:%s1098]
        %1314 = vst [vmem:[%s1106 + $0x19c] sm:%s1098] %v1313
        %v1315 = vld [vmem:[%s1105 + $0x198] sm:%s1098]
        %1316 = vst [vmem:[%s1106 + $0x1a0] sm:%s1098] %v1315
        %v1317 = vld [vmem:[%s1105 + $0x1c0] sm:%s1098]
        %1318 = vst [vmem:[%s1106 + $0x1a4] sm:%s1098] %v1317
        %v1319 = vld [vmem:[%s1105 + $0x19c] sm:%s1098]
        %1320 = vst [vmem:[%s1106 + $0x1a8] sm:%s1098] %v1319
        %v1321 = vld [vmem:[%s1105 + $0x1c4] sm:%s1098]
        %1322 = vst [vmem:[%s1106 + $0x1ac] sm:%s1098] %v1321
        %v1323 = vld [vmem:[%s1105 + $0x1a0] sm:%s1098]
        %1324 = vst [vmem:[%s1106 + $0x1b0] sm:%s1098] %v1323
        %v1325 = vld [vmem:[%s1105 + $0x1c8] sm:%s1098]
        %1326 = vst [vmem:[%s1106 + $0x1b4] sm:%s1098] %v1325
        %v1327 = vld [vmem:[%s1105 + $0x1a4] sm:%s1098]
        %1328 = vst [vmem:[%s1106 + $0x1b8] sm:%s1098] %v1327
        %v1329 = vld [vmem:[%s1105 + $0x1cc] sm:%s1098]
        %1330 = vst [vmem:[%s1106 + $0x1bc] sm:%s1098] %v1329
        %v1331 = vld [vmem:[%s1105 + $0x1a8] sm:%s1098]
        %1332 = vst [vmem:[%s1106 + $0x1c0] sm:%s1098] %v1331
        %v1333 = vld [vmem:[%s1105 + $0x1d0] sm:%s1098]
        %1334 = vst [vmem:[%s1106 + $0x1c4] sm:%s1098] %v1333
        %v1335 = vld [vmem:[%s1105 + $0x1ac] sm:%s1098]
        %1336 = vst [vmem:[%s1106 + $0x1c8] sm:%s1098] %v1335
        %v1337 = vld [vmem:[%s1105 + $0x1d4] sm:%s1098]
        %1338 = vst [vmem:[%s1106 + $0x1cc] sm:%s1098] %v1337
        %v1339 = vld [vmem:[%s1105 + $0x1b0] sm:%s1098]
        %1340 = vst [vmem:[%s1106 + $0x1d0] sm:%s1098] %v1339
        %v1341 = vld [vmem:[%s1105 + $0x1d8] sm:%s1098]
        %1342 = vst [vmem:[%s1106 + $0x1d4] sm:%s1098] %v1341
        %v1343 = vld [vmem:[%s1105 + $0x1b4] sm:%s1098]
        %1344 = vst [vmem:[%s1106 + $0x1d8] sm:%s1098] %v1343
        %v1345 = vld [vmem:[%s1105 + $0x1dc] sm:%s1098]
        %1346 = vst [vmem:[%s1106 + $0x1dc] sm:%s1098] %v1345
        %v1347 = vld [vmem:[%s1105 + $0x1e0] sm:%s1098]
        %1348 = vst [vmem:[%s1106 + $0x1e0] sm:%s1098] %v1347
        %v1349 = vld [vmem:[%s1105 + $0x208] sm:%s1098]
        %1350 = vst [vmem:[%s1106 + $0x1e4] sm:%s1098] %v1349
        %v1351 = vld [vmem:[%s1105 + $0x1e4] sm:%s1098]
        %1352 = vst [vmem:[%s1106 + $0x1e8] sm:%s1098] %v1351
        %v1353 = vld [vmem:[%s1105 + $0x20c] sm:%s1098]
        %1354 = vst [vmem:[%s1106 + $0x1ec] sm:%s1098] %v1353
        %v1355 = vld [vmem:[%s1105 + $0x1e8] sm:%s1098]
        %1356 = vst [vmem:[%s1106 + $0x1f0] sm:%s1098] %v1355
        %v1357 = vld [vmem:[%s1105 + $0x210] sm:%s1098]
        %1358 = vst [vmem:[%s1106 + $0x1f4] sm:%s1098] %v1357
        %v1359 = vld [vmem:[%s1105 + $0x1ec] sm:%s1098]
        %1360 = vst [vmem:[%s1106 + $0x1f8] sm:%s1098] %v1359
        %v1361 = vld [vmem:[%s1105 + $0x214] sm:%s1098]
        %1362 = vst [vmem:[%s1106 + $0x1fc] sm:%s1098] %v1361
        %v1363 = vld [vmem:[%s1105 + $0x1f0] sm:%s1098]
        %1364 = vst [vmem:[%s1106 + $0x200] sm:%s1098] %v1363
        %v1365 = vld [vmem:[%s1105 + $0x218] sm:%s1098]
        %1366 = vst [vmem:[%s1106 + $0x204] sm:%s1098] %v1365
        %v1367 = vld [vmem:[%s1105 + $0x1f4] sm:%s1098]
        %1368 = vst [vmem:[%s1106 + $0x208] sm:%s1098] %v1367
        %v1369 = vld [vmem:[%s1105 + $0x21c] sm:%s1098]
        %1370 = vst [vmem:[%s1106 + $0x20c] sm:%s1098] %v1369
        %v1371 = vld [vmem:[%s1105 + $0x1f8] sm:%s1098]
        %1372 = vst [vmem:[%s1106 + $0x210] sm:%s1098] %v1371
        %v1373 = vld [vmem:[%s1105 + $0x220] sm:%s1098]
        %1374 = vst [vmem:[%s1106 + $0x214] sm:%s1098] %v1373
        %v1375 = vld [vmem:[%s1105 + $0x1fc] sm:%s1098]
        %1376 = vst [vmem:[%s1106 + $0x218] sm:%s1098] %v1375
        %v1377 = vld [vmem:[%s1105 + $0x224] sm:%s1098]
        %1378 = vst [vmem:[%s1106 + $0x21c] sm:%s1098] %v1377
        %v1379 = vld [vmem:[%s1105 + $0x200] sm:%s1098]
        %1380 = vst [vmem:[%s1106 + $0x220] sm:%s1098] %v1379
        %v1381 = vld [vmem:[%s1105 + $0x228] sm:%s1098]
        %1382 = vst [vmem:[%s1106 + $0x224] sm:%s1098] %v1381
        %v1383 = vld [vmem:[%s1105 + $0x204] sm:%s1098]
        %1384 = vst [vmem:[%s1106 + $0x228] sm:%s1098] %v1383
        %v1385 = vld [vmem:[%s1105 + $0x22c] sm:%s1098]
        %1386 = vst [vmem:[%s1106 + $0x22c] sm:%s1098] %v1385
        %v1387 = vld [vmem:[%s1105 + $0x230] sm:%s1098]
        %1388 = vst [vmem:[%s1106 + $0x230] sm:%s1098] %v1387
        %v1389 = vld [vmem:[%s1105 + $0x258] sm:%s1098]
        %1390 = vst [vmem:[%s1106 + $0x234] sm:%s1098] %v1389
        %v1391 = vld [vmem:[%s1105 + $0x234] sm:%s1098]
        %1392 = vst [vmem:[%s1106 + $0x238] sm:%s1098] %v1391
        %v1393 = vld [vmem:[%s1105 + $0x25c] sm:%s1098]
        %1394 = vst [vmem:[%s1106 + $0x23c] sm:%s1098] %v1393
        %v1395 = vld [vmem:[%s1105 + $0x238] sm:%s1098]
        %1396 = vst [vmem:[%s1106 + $0x240] sm:%s1098] %v1395
        %v1397 = vld [vmem:[%s1105 + $0x260] sm:%s1098]
        %1398 = vst [vmem:[%s1106 + $0x244] sm:%s1098] %v1397
        %v1399 = vld [vmem:[%s1105 + $0x23c] sm:%s1098]
        %1400 = vst [vmem:[%s1106 + $0x248] sm:%s1098] %v1399
        %v1401 = vld [vmem:[%s1105 + $0x264] sm:%s1098]
        %1402 = vst [vmem:[%s1106 + $0x24c] sm:%s1098] %v1401
        %v1403 = vld [vmem:[%s1105 + $0x240] sm:%s1098]
        %1404 = vst [vmem:[%s1106 + $0x250] sm:%s1098] %v1403
        %v1405 = vld [vmem:[%s1105 + $0x268] sm:%s1098]
        %1406 = vst [vmem:[%s1106 + $0x254] sm:%s1098] %v1405
        %v1407 = vld [vmem:[%s1105 + $0x244] sm:%s1098]
        %1408 = vst [vmem:[%s1106 + $0x258] sm:%s1098] %v1407
        %v1409 = vld [vmem:[%s1105 + $0x26c] sm:%s1098]
        %1410 = vst [vmem:[%s1106 + $0x25c] sm:%s1098] %v1409
        %v1411 = vld [vmem:[%s1105 + $0x248] sm:%s1098]
        %1412 = vst [vmem:[%s1106 + $0x260] sm:%s1098] %v1411
        %v1413 = vld [vmem:[%s1105 + $0x270] sm:%s1098]
        %1414 = vst [vmem:[%s1106 + $0x264] sm:%s1098] %v1413
        %v1415 = vld [vmem:[%s1105 + $0x24c] sm:%s1098]
        %1416 = vst [vmem:[%s1106 + $0x268] sm:%s1098] %v1415
        %v1417 = vld [vmem:[%s1105 + $0x274] sm:%s1098]
        %1418 = vst [vmem:[%s1106 + $0x26c] sm:%s1098] %v1417
        %v1419 = vld [vmem:[%s1105 + $0x250] sm:%s1098]
        %1420 = vst [vmem:[%s1106 + $0x270] sm:%s1098] %v1419
        %v1421 = vld [vmem:[%s1105 + $0x278] sm:%s1098]
        %1422 = vst [vmem:[%s1106 + $0x274] sm:%s1098] %v1421
        %v1423 = vld [vmem:[%s1105 + $0x254] sm:%s1098]
        %1424 = vst [vmem:[%s1106 + $0x278] sm:%s1098] %v1423
        %v1425 = vld [vmem:[%s1105 + $0x27c] sm:%s1098]
        %1426 = vst [vmem:[%s1106 + $0x27c] sm:%s1098] %v1425
        %v1427 = vld [vmem:[%s1105 + $0x280] sm:%s1098]
        %1428 = vst [vmem:[%s1106 + $0x280] sm:%s1098] %v1427
        %v1429 = vld [vmem:[%s1105 + $0x2a8] sm:%s1098]
        %1430 = vst [vmem:[%s1106 + $0x284] sm:%s1098] %v1429
        %v1431 = vld [vmem:[%s1105 + $0x284] sm:%s1098]
        %1432 = vst [vmem:[%s1106 + $0x288] sm:%s1098] %v1431
        %v1433 = vld [vmem:[%s1105 + $0x2ac] sm:%s1098]
        %1434 = vst [vmem:[%s1106 + $0x28c] sm:%s1098] %v1433
        %v1435 = vld [vmem:[%s1105 + $0x288] sm:%s1098]
        %1436 = vst [vmem:[%s1106 + $0x290] sm:%s1098] %v1435
        %v1437 = vld [vmem:[%s1105 + $0x2b0] sm:%s1098]
        %1438 = vst [vmem:[%s1106 + $0x294] sm:%s1098] %v1437
        %v1439 = vld [vmem:[%s1105 + $0x28c] sm:%s1098]
        %1440 = vst [vmem:[%s1106 + $0x298] sm:%s1098] %v1439
        %v1441 = vld [vmem:[%s1105 + $0x2b4] sm:%s1098]
        %1442 = vst [vmem:[%s1106 + $0x29c] sm:%s1098] %v1441
        %v1443 = vld [vmem:[%s1105 + $0x290] sm:%s1098]
        %1444 = vst [vmem:[%s1106 + $0x2a0] sm:%s1098] %v1443
        %v1445 = vld [vmem:[%s1105 + $0x2b8] sm:%s1098]
        %1446 = vst [vmem:[%s1106 + $0x2a4] sm:%s1098] %v1445
        %v1447 = vld [vmem:[%s1105 + $0x294] sm:%s1098]
        %1448 = vst [vmem:[%s1106 + $0x2a8] sm:%s1098] %v1447
        %v1449 = vld [vmem:[%s1105 + $0x2bc] sm:%s1098]
        %1450 = vst [vmem:[%s1106 + $0x2ac] sm:%s1098] %v1449
        %v1451 = vld [vmem:[%s1105 + $0x298] sm:%s1098]
        %1452 = vst [vmem:[%s1106 + $0x2b0] sm:%s1098] %v1451
        %v1453 = vld [vmem:[%s1105 + $0x2c0] sm:%s1098]
        %1454 = vst [vmem:[%s1106 + $0x2b4] sm:%s1098] %v1453
        %v1455 = vld [vmem:[%s1105 + $0x29c] sm:%s1098]
        %1456 = vst [vmem:[%s1106 + $0x2b8] sm:%s1098] %v1455
        %v1457 = vld [vmem:[%s1105 + $0x2c4] sm:%s1098]
        %1458 = vst [vmem:[%s1106 + $0x2bc] sm:%s1098] %v1457
        %v1459 = vld [vmem:[%s1105 + $0x2a0] sm:%s1098]
        %1460 = vst [vmem:[%s1106 + $0x2c0] sm:%s1098] %v1459
        %v1461 = vld [vmem:[%s1105 + $0x2c8] sm:%s1098]
        %1462 = vst [vmem:[%s1106 + $0x2c4] sm:%s1098] %v1461
        %v1463 = vld [vmem:[%s1105 + $0x2a4] sm:%s1098]
        %1464 = vst [vmem:[%s1106 + $0x2c8] sm:%s1098] %v1463
        %v1465 = vld [vmem:[%s1105 + $0x2cc] sm:%s1098]
        %1466 = vst [vmem:[%s1106 + $0x2cc] sm:%s1098] %v1465
        %v1467 = vld [vmem:[%s1105 + $0x2d0] sm:%s1098]
        %1468 = vst [vmem:[%s1106 + $0x2d0] sm:%s1098] %v1467
        %v1469 = vld [vmem:[%s1105 + $0x2f8] sm:%s1098]
        %1470 = vst [vmem:[%s1106 + $0x2d4] sm:%s1098] %v1469
        %v1471 = vld [vmem:[%s1105 + $0x2d4] sm:%s1098]
        %1472 = vst [vmem:[%s1106 + $0x2d8] sm:%s1098] %v1471
        %v1473 = vld [vmem:[%s1105 + $0x2fc] sm:%s1098]
        %1474 = vst [vmem:[%s1106 + $0x2dc] sm:%s1098] %v1473
        %v1475 = vld [vmem:[%s1105 + $0x2d8] sm:%s1098]
        %1476 = vst [vmem:[%s1106 + $0x2e0] sm:%s1098] %v1475
        %v1477 = vld [vmem:[%s1105 + $0x300] sm:%s1098]
        %1478 = vst [vmem:[%s1106 + $0x2e4] sm:%s1098] %v1477
        %v1479 = vld [vmem:[%s1105 + $0x2dc] sm:%s1098]
        %1480 = vst [vmem:[%s1106 + $0x2e8] sm:%s1098] %v1479
        %v1481 = vld [vmem:[%s1105 + $0x304] sm:%s1098]
        %1482 = vst [vmem:[%s1106 + $0x2ec] sm:%s1098] %v1481
        %v1483 = vld [vmem:[%s1105 + $0x2e0] sm:%s1098]
        %1484 = vst [vmem:[%s1106 + $0x2f0] sm:%s1098] %v1483
        %v1485 = vld [vmem:[%s1105 + $0x308] sm:%s1098]
        %1486 = vst [vmem:[%s1106 + $0x2f4] sm:%s1098] %v1485
        %v1487 = vld [vmem:[%s1105 + $0x2e4] sm:%s1098]
        %1488 = vst [vmem:[%s1106 + $0x2f8] sm:%s1098] %v1487
        %v1489 = vld [vmem:[%s1105 + $0x30c] sm:%s1098]
        %1490 = vst [vmem:[%s1106 + $0x2fc] sm:%s1098] %v1489
        %v1491 = vld [vmem:[%s1105 + $0x2e8] sm:%s1098]
        %1492 = vst [vmem:[%s1106 + $0x300] sm:%s1098] %v1491
        %v1493 = vld [vmem:[%s1105 + $0x310] sm:%s1098]
        %1494 = vst [vmem:[%s1106 + $0x304] sm:%s1098] %v1493
        %v1495 = vld [vmem:[%s1105 + $0x2ec] sm:%s1098]
        %1496 = vst [vmem:[%s1106 + $0x308] sm:%s1098] %v1495
        %v1497 = vld [vmem:[%s1105 + $0x314] sm:%s1098]
        %1498 = vst [vmem:[%s1106 + $0x30c] sm:%s1098] %v1497
        %v1499 = vld [vmem:[%s1105 + $0x2f0] sm:%s1098]
        %1500 = vst [vmem:[%s1106 + $0x310] sm:%s1098] %v1499
        %v1501 = vld [vmem:[%s1105 + $0x318] sm:%s1098]
        %1502 = vst [vmem:[%s1106 + $0x314] sm:%s1098] %v1501
        %v1503 = vld [vmem:[%s1105 + $0x2f4] sm:%s1098]
        %1504 = vst [vmem:[%s1106 + $0x318] sm:%s1098] %v1503
        %v1505 = vld [vmem:[%s1105 + $0x31c] sm:%s1098]
        %1506 = vst [vmem:[%s1106 + $0x31c] sm:%s1098] %v1505
      $region109: #{mnasnet_block.1} parent=96 // loop_footer
        %s1104 = sadd.s32 1, %s1100
      $region110: #{mnasnet_block.1} parent=96 // loop_footer_branch
        %1099 = sbr.rel target = $region106
      $region111: #{mnasnet_block.1} parent=96 // loop_exit
        _
    $region97: #{mnasnet_block.1} parent=81 // pred_fallthru
      _
  $region82: #{mnasnet_block.1} parent=0 // pred_fallthru
    _
  // Predicated region
  $region83: #{mnasnet_block.1} parent=0 // pred_check
    %p668 = pneg %p664
  $region84: #{mnasnet_block.1} parent=0 // pred_check_branch
    %670 = sbr.rel (%p668) target = $region86
  $region85: #{mnasnet_block.1} parent=0 // pred_region
    %s671 = sshllo.u32 0, 4
    loop: start=0, step=1, limit=1
    $region87: #{mnasnet_block.1} parent=85 // loop_pre_header
      _
    $region88: #{mnasnet_block.1} parent=85 // loop_header
      %s673 = sphi 0, %s677
      %p674 = scmp.ge.s32.totalorder %s673, 1
      %s678 = sphi %s11, %s11
      %s679 = sphi [#allocation3], [#allocation3]
    $region89: #{mnasnet_block.1} parent=85 // loop_header_branch
      %676 = sbr.rel (%p674) target = $region93
    $region90: #{mnasnet_block.1} parent=85 // loop_body
      %v680 = vld [vmem:[%s678] sm:%s671]
      %681 = vst [vmem:[%s679] sm:%s671] %v680
      %v682 = vld [vmem:[%s678 + $0x28] sm:%s671]
      %683 = vst [vmem:[%s679 + $0x4] sm:%s671] %v682
      %v684 = vld [vmem:[%s678 + $0x4] sm:%s671]
      %685 = vst [vmem:[%s679 + $0x8] sm:%s671] %v684
      %v686 = vld [vmem:[%s678 + $0x2c] sm:%s671]
      %687 = vst [vmem:[%s679 + $0xc] sm:%s671] %v686
      %v688 = vld [vmem:[%s678 + $0x8] sm:%s671]
      %689 = vst [vmem:[%s679 + $0x10] sm:%s671] %v688
      %v690 = vld [vmem:[%s678 + $0x30] sm:%s671]
      %691 = vst [vmem:[%s679 + $0x14] sm:%s671] %v690
      %v692 = vld [vmem:[%s678 + $0xc] sm:%s671]
      %693 = vst [vmem:[%s679 + $0x18] sm:%s671] %v692
      %v694 = vld [vmem:[%s678 + $0x34] sm:%s671]
      %695 = vst [vmem:[%s679 + $0x1c] sm:%s671] %v694
      %v696 = vld [vmem:[%s678 + $0x10] sm:%s671]
      %697 = vst [vmem:[%s679 + $0x20] sm:%s671] %v696
      %v698 = vld [vmem:[%s678 + $0x38] sm:%s671]
      %699 = vst [vmem:[%s679 + $0x24] sm:%s671] %v698
      %v700 = vld [vmem:[%s678 + $0x14] sm:%s671]
      %701 = vst [vmem:[%s679 + $0x28] sm:%s671] %v700
      %v702 = vld [vmem:[%s678 + $0x3c] sm:%s671]
      %703 = vst [vmem:[%s679 + $0x2c] sm:%s671] %v702
      %v704 = vld [vmem:[%s678 + $0x18] sm:%s671]
      %705 = vst [vmem:[%s679 + $0x30] sm:%s671] %v704
      %v706 = vld [vmem:[%s678 + $0x40] sm:%s671]
      %707 = vst [vmem:[%s679 + $0x34] sm:%s671] %v706
      %v708 = vld [vmem:[%s678 + $0x1c] sm:%s671]
      %709 = vst [vmem:[%s679 + $0x38] sm:%s671] %v708
      %v710 = vld [vmem:[%s678 + $0x44] sm:%s671]
      %711 = vst [vmem:[%s679 + $0x3c] sm:%s671] %v710
      %v712 = vld [vmem:[%s678 + $0x20] sm:%s671]
      %713 = vst [vmem:[%s679 + $0x40] sm:%s671] %v712
      %v714 = vld [vmem:[%s678 + $0x48] sm:%s671]
      %715 = vst [vmem:[%s679 + $0x44] sm:%s671] %v714
      %v716 = vld [vmem:[%s678 + $0x24] sm:%s671]
      %717 = vst [vmem:[%s679 + $0x48] sm:%s671] %v716
      %v718 = vld [vmem:[%s678 + $0x4c] sm:%s671]
      %719 = vst [vmem:[%s679 + $0x4c] sm:%s671] %v718
      %v720 = vld [vmem:[%s678 + $0x50] sm:%s671]
      %721 = vst [vmem:[%s679 + $0x50] sm:%s671] %v720
      %v722 = vld [vmem:[%s678 + $0x78] sm:%s671]
      %723 = vst [vmem:[%s679 + $0x54] sm:%s671] %v722
      %v724 = vld [vmem:[%s678 + $0x54] sm:%s671]
      %725 = vst [vmem:[%s679 + $0x58] sm:%s671] %v724
      %v726 = vld [vmem:[%s678 + $0x7c] sm:%s671]
      %727 = vst [vmem:[%s679 + $0x5c] sm:%s671] %v726
      %v728 = vld [vmem:[%s678 + $0x58] sm:%s671]
      %729 = vst [vmem:[%s679 + $0x60] sm:%s671] %v728
      %v730 = vld [vmem:[%s678 + $0x80] sm:%s671]
      %731 = vst [vmem:[%s679 + $0x64] sm:%s671] %v730
      %v732 = vld [vmem:[%s678 + $0x5c] sm:%s671]
      %733 = vst [vmem:[%s679 + $0x68] sm:%s671] %v732
      %v734 = vld [vmem:[%s678 + $0x84] sm:%s671]
      %735 = vst [vmem:[%s679 + $0x6c] sm:%s671] %v734
      %v736 = vld [vmem:[%s678 + $0x60] sm:%s671]
      %737 = vst [vmem:[%s679 + $0x70] sm:%s671] %v736
      %v738 = vld [vmem:[%s678 + $0x88] sm:%s671]
      %739 = vst [vmem:[%s679 + $0x74] sm:%s671] %v738
      %v740 = vld [vmem:[%s678 + $0x64] sm:%s671]
      %741 = vst [vmem:[%s679 + $0x78] sm:%s671] %v740
      %v742 = vld [vmem:[%s678 + $0x8c] sm:%s671]
      %743 = vst [vmem:[%s679 + $0x7c] sm:%s671] %v742
      %v744 = vld [vmem:[%s678 + $0x68] sm:%s671]
      %745 = vst [vmem:[%s679 + $0x80] sm:%s671] %v744
      %v746 = vld [vmem:[%s678 + $0x90] sm:%s671]
      %747 = vst [vmem:[%s679 + $0x84] sm:%s671] %v746
      %v748 = vld [vmem:[%s678 + $0x6c] sm:%s671]
      %749 = vst [vmem:[%s679 + $0x88] sm:%s671] %v748
      %v750 = vld [vmem:[%s678 + $0x94] sm:%s671]
      %751 = vst [vmem:[%s679 + $0x8c] sm:%s671] %v750
      %v752 = vld [vmem:[%s678 + $0x70] sm:%s671]
      %753 = vst [vmem:[%s679 + $0x90] sm:%s671] %v752
      %v754 = vld [vmem:[%s678 + $0x98] sm:%s671]
      %755 = vst [vmem:[%s679 + $0x94] sm:%s671] %v754
      %v756 = vld [vmem:[%s678 + $0x74] sm:%s671]
      %757 = vst [vmem:[%s679 + $0x98] sm:%s671] %v756
      %v758 = vld [vmem:[%s678 + $0x9c] sm:%s671]
      %759 = vst [vmem:[%s679 + $0x9c] sm:%s671] %v758
      %v760 = vld [vmem:[%s678 + $0xa0] sm:%s671]
      %761 = vst [vmem:[%s679 + $0xa0] sm:%s671] %v760
      %v762 = vld [vmem:[%s678 + $0xc8] sm:%s671]
      %763 = vst [vmem:[%s679 + $0xa4] sm:%s671] %v762
      %v764 = vld [vmem:[%s678 + $0xa4] sm:%s671]
      %765 = vst [vmem:[%s679 + $0xa8] sm:%s671] %v764
      %v766 = vld [vmem:[%s678 + $0xcc] sm:%s671]
      %767 = vst [vmem:[%s679 + $0xac] sm:%s671] %v766
      %v768 = vld [vmem:[%s678 + $0xa8] sm:%s671]
      %769 = vst [vmem:[%s679 + $0xb0] sm:%s671] %v768
      %v770 = vld [vmem:[%s678 + $0xd0] sm:%s671]
      %771 = vst [vmem:[%s679 + $0xb4] sm:%s671] %v770
      %v772 = vld [vmem:[%s678 + $0xac] sm:%s671]
      %773 = vst [vmem:[%s679 + $0xb8] sm:%s671] %v772
      %v774 = vld [vmem:[%s678 + $0xd4] sm:%s671]
      %775 = vst [vmem:[%s679 + $0xbc] sm:%s671] %v774
      %v776 = vld [vmem:[%s678 + $0xb0] sm:%s671]
      %777 = vst [vmem:[%s679 + $0xc0] sm:%s671] %v776
      %v778 = vld [vmem:[%s678 + $0xd8] sm:%s671]
      %779 = vst [vmem:[%s679 + $0xc4] sm:%s671] %v778
      %v780 = vld [vmem:[%s678 + $0xb4] sm:%s671]
      %781 = vst [vmem:[%s679 + $0xc8] sm:%s671] %v780
      %v782 = vld [vmem:[%s678 + $0xdc] sm:%s671]
      %783 = vst [vmem:[%s679 + $0xcc] sm:%s671] %v782
      %v784 = vld [vmem:[%s678 + $0xb8] sm:%s671]
      %785 = vst [vmem:[%s679 + $0xd0] sm:%s671] %v784
      %v786 = vld [vmem:[%s678 + $0xe0] sm:%s671]
      %787 = vst [vmem:[%s679 + $0xd4] sm:%s671] %v786
      %v788 = vld [vmem:[%s678 + $0xbc] sm:%s671]
      %789 = vst [vmem:[%s679 + $0xd8] sm:%s671] %v788
      %v790 = vld [vmem:[%s678 + $0xe4] sm:%s671]
      %791 = vst [vmem:[%s679 + $0xdc] sm:%s671] %v790
      %v792 = vld [vmem:[%s678 + $0xc0] sm:%s671]
      %793 = vst [vmem:[%s679 + $0xe0] sm:%s671] %v792
      %v794 = vld [vmem:[%s678 + $0xe8] sm:%s671]
      %795 = vst [vmem:[%s679 + $0xe4] sm:%s671] %v794
      %v796 = vld [vmem:[%s678 + $0xc4] sm:%s671]
      %797 = vst [vmem:[%s679 + $0xe8] sm:%s671] %v796
      %v798 = vld [vmem:[%s678 + $0xec] sm:%s671]
      %799 = vst [vmem:[%s679 + $0xec] sm:%s671] %v798
      %v800 = vld [vmem:[%s678 + $0xf0] sm:%s671]
      %801 = vst [vmem:[%s679 + $0xf0] sm:%s671] %v800
      %v802 = vld [vmem:[%s678 + $0x118] sm:%s671]
      %803 = vst [vmem:[%s679 + $0xf4] sm:%s671] %v802
      %v804 = vld [vmem:[%s678 + $0xf4] sm:%s671]
      %805 = vst [vmem:[%s679 + $0xf8] sm:%s671] %v804
      %v806 = vld [vmem:[%s678 + $0x11c] sm:%s671]
      %807 = vst [vmem:[%s679 + $0xfc] sm:%s671] %v806
      %v808 = vld [vmem:[%s678 + $0xf8] sm:%s671]
      %809 = vst [vmem:[%s679 + $0x100] sm:%s671] %v808
      %v810 = vld [vmem:[%s678 + $0x120] sm:%s671]
      %811 = vst [vmem:[%s679 + $0x104] sm:%s671] %v810
      %v812 = vld [vmem:[%s678 + $0xfc] sm:%s671]
      %813 = vst [vmem:[%s679 + $0x108] sm:%s671] %v812
      %v814 = vld [vmem:[%s678 + $0x124] sm:%s671]
      %815 = vst [vmem:[%s679 + $0x10c] sm:%s671] %v814
      %v816 = vld [vmem:[%s678 + $0x100] sm:%s671]
      %817 = vst [vmem:[%s679 + $0x110] sm:%s671] %v816
      %v818 = vld [vmem:[%s678 + $0x128] sm:%s671]
      %819 = vst [vmem:[%s679 + $0x114] sm:%s671] %v818
      %v820 = vld [vmem:[%s678 + $0x104] sm:%s671]
      %821 = vst [vmem:[%s679 + $0x118] sm:%s671] %v820
      %v822 = vld [vmem:[%s678 + $0x12c] sm:%s671]
      %823 = vst [vmem:[%s679 + $0x11c] sm:%s671] %v822
      %v824 = vld [vmem:[%s678 + $0x108] sm:%s671]
      %825 = vst [vmem:[%s679 + $0x120] sm:%s671] %v824
      %v826 = vld [vmem:[%s678 + $0x130] sm:%s671]
      %827 = vst [vmem:[%s679 + $0x124] sm:%s671] %v826
      %v828 = vld [vmem:[%s678 + $0x10c] sm:%s671]
      %829 = vst [vmem:[%s679 + $0x128] sm:%s671] %v828
      %v830 = vld [vmem:[%s678 + $0x134] sm:%s671]
      %831 = vst [vmem:[%s679 + $0x12c] sm:%s671] %v830
      %v832 = vld [vmem:[%s678 + $0x110] sm:%s671]
      %833 = vst [vmem:[%s679 + $0x130] sm:%s671] %v832
      %v834 = vld [vmem:[%s678 + $0x138] sm:%s671]
      %835 = vst [vmem:[%s679 + $0x134] sm:%s671] %v834
      %v836 = vld [vmem:[%s678 + $0x114] sm:%s671]
      %837 = vst [vmem:[%s679 + $0x138] sm:%s671] %v836
      %v838 = vld [vmem:[%s678 + $0x13c] sm:%s671]
      %839 = vst [vmem:[%s679 + $0x13c] sm:%s671] %v838
      %v840 = vld [vmem:[%s678 + $0x140] sm:%s671]
      %841 = vst [vmem:[%s679 + $0x140] sm:%s671] %v840
      %v842 = vld [vmem:[%s678 + $0x168] sm:%s671]
      %843 = vst [vmem:[%s679 + $0x144] sm:%s671] %v842
      %v844 = vld [vmem:[%s678 + $0x144] sm:%s671]
      %845 = vst [vmem:[%s679 + $0x148] sm:%s671] %v844
      %v846 = vld [vmem:[%s678 + $0x16c] sm:%s671]
      %847 = vst [vmem:[%s679 + $0x14c] sm:%s671] %v846
      %v848 = vld [vmem:[%s678 + $0x148] sm:%s671]
      %849 = vst [vmem:[%s679 + $0x150] sm:%s671] %v848
      %v850 = vld [vmem:[%s678 + $0x170] sm:%s671]
      %851 = vst [vmem:[%s679 + $0x154] sm:%s671] %v850
      %v852 = vld [vmem:[%s678 + $0x14c] sm:%s671]
      %853 = vst [vmem:[%s679 + $0x158] sm:%s671] %v852
      %v854 = vld [vmem:[%s678 + $0x174] sm:%s671]
      %855 = vst [vmem:[%s679 + $0x15c] sm:%s671] %v854
      %v856 = vld [vmem:[%s678 + $0x150] sm:%s671]
      %857 = vst [vmem:[%s679 + $0x160] sm:%s671] %v856
      %v858 = vld [vmem:[%s678 + $0x178] sm:%s671]
      %859 = vst [vmem:[%s679 + $0x164] sm:%s671] %v858
      %v860 = vld [vmem:[%s678 + $0x154] sm:%s671]
      %861 = vst [vmem:[%s679 + $0x168] sm:%s671] %v860
      %v862 = vld [vmem:[%s678 + $0x17c] sm:%s671]
      %863 = vst [vmem:[%s679 + $0x16c] sm:%s671] %v862
      %v864 = vld [vmem:[%s678 + $0x158] sm:%s671]
      %865 = vst [vmem:[%s679 + $0x170] sm:%s671] %v864
      %v866 = vld [vmem:[%s678 + $0x180] sm:%s671]
      %867 = vst [vmem:[%s679 + $0x174] sm:%s671] %v866
      %v868 = vld [vmem:[%s678 + $0x15c] sm:%s671]
      %869 = vst [vmem:[%s679 + $0x178] sm:%s671] %v868
      %v870 = vld [vmem:[%s678 + $0x184] sm:%s671]
      %871 = vst [vmem:[%s679 + $0x17c] sm:%s671] %v870
      %v872 = vld [vmem:[%s678 + $0x160] sm:%s671]
      %873 = vst [vmem:[%s679 + $0x180] sm:%s671] %v872
      %v874 = vld [vmem:[%s678 + $0x188] sm:%s671]
      %875 = vst [vmem:[%s679 + $0x184] sm:%s671] %v874
      %v876 = vld [vmem:[%s678 + $0x164] sm:%s671]
      %877 = vst [vmem:[%s679 + $0x188] sm:%s671] %v876
      %v878 = vld [vmem:[%s678 + $0x18c] sm:%s671]
      %879 = vst [vmem:[%s679 + $0x18c] sm:%s671] %v878
      %v880 = vld [vmem:[%s678 + $0x190] sm:%s671]
      %881 = vst [vmem:[%s679 + $0x190] sm:%s671] %v880
      %v882 = vld [vmem:[%s678 + $0x1b8] sm:%s671]
      %883 = vst [vmem:[%s679 + $0x194] sm:%s671] %v882
      %v884 = vld [vmem:[%s678 + $0x194] sm:%s671]
      %885 = vst [vmem:[%s679 + $0x198] sm:%s671] %v884
      %v886 = vld [vmem:[%s678 + $0x1bc] sm:%s671]
      %887 = vst [vmem:[%s679 + $0x19c] sm:%s671] %v886
      %v888 = vld [vmem:[%s678 + $0x198] sm:%s671]
      %889 = vst [vmem:[%s679 + $0x1a0] sm:%s671] %v888
      %v890 = vld [vmem:[%s678 + $0x1c0] sm:%s671]
      %891 = vst [vmem:[%s679 + $0x1a4] sm:%s671] %v890
      %v892 = vld [vmem:[%s678 + $0x19c] sm:%s671]
      %893 = vst [vmem:[%s679 + $0x1a8] sm:%s671] %v892
      %v894 = vld [vmem:[%s678 + $0x1c4] sm:%s671]
      %895 = vst [vmem:[%s679 + $0x1ac] sm:%s671] %v894
      %v896 = vld [vmem:[%s678 + $0x1a0] sm:%s671]
      %897 = vst [vmem:[%s679 + $0x1b0] sm:%s671] %v896
      %v898 = vld [vmem:[%s678 + $0x1c8] sm:%s671]
      %899 = vst [vmem:[%s679 + $0x1b4] sm:%s671] %v898
      %v900 = vld [vmem:[%s678 + $0x1a4] sm:%s671]
      %901 = vst [vmem:[%s679 + $0x1b8] sm:%s671] %v900
      %v902 = vld [vmem:[%s678 + $0x1cc] sm:%s671]
      %903 = vst [vmem:[%s679 + $0x1bc] sm:%s671] %v902
      %v904 = vld [vmem:[%s678 + $0x1a8] sm:%s671]
      %905 = vst [vmem:[%s679 + $0x1c0] sm:%s671] %v904
      %v906 = vld [vmem:[%s678 + $0x1d0] sm:%s671]
      %907 = vst [vmem:[%s679 + $0x1c4] sm:%s671] %v906
      %v908 = vld [vmem:[%s678 + $0x1ac] sm:%s671]
      %909 = vst [vmem:[%s679 + $0x1c8] sm:%s671] %v908
      %v910 = vld [vmem:[%s678 + $0x1d4] sm:%s671]
      %911 = vst [vmem:[%s679 + $0x1cc] sm:%s671] %v910
      %v912 = vld [vmem:[%s678 + $0x1b0] sm:%s671]
      %913 = vst [vmem:[%s679 + $0x1d0] sm:%s671] %v912
      %v914 = vld [vmem:[%s678 + $0x1d8] sm:%s671]
      %915 = vst [vmem:[%s679 + $0x1d4] sm:%s671] %v914
      %v916 = vld [vmem:[%s678 + $0x1b4] sm:%s671]
      %917 = vst [vmem:[%s679 + $0x1d8] sm:%s671] %v916
      %v918 = vld [vmem:[%s678 + $0x1dc] sm:%s671]
      %919 = vst [vmem:[%s679 + $0x1dc] sm:%s671] %v918
      %v920 = vld [vmem:[%s678 + $0x1e0] sm:%s671]
      %921 = vst [vmem:[%s679 + $0x1e0] sm:%s671] %v920
      %v922 = vld [vmem:[%s678 + $0x208] sm:%s671]
      %923 = vst [vmem:[%s679 + $0x1e4] sm:%s671] %v922
      %v924 = vld [vmem:[%s678 + $0x1e4] sm:%s671]
      %925 = vst [vmem:[%s679 + $0x1e8] sm:%s671] %v924
      %v926 = vld [vmem:[%s678 + $0x20c] sm:%s671]
      %927 = vst [vmem:[%s679 + $0x1ec] sm:%s671] %v926
      %v928 = vld [vmem:[%s678 + $0x1e8] sm:%s671]
      %929 = vst [vmem:[%s679 + $0x1f0] sm:%s671] %v928
      %v930 = vld [vmem:[%s678 + $0x210] sm:%s671]
      %931 = vst [vmem:[%s679 + $0x1f4] sm:%s671] %v930
      %v932 = vld [vmem:[%s678 + $0x1ec] sm:%s671]
      %933 = vst [vmem:[%s679 + $0x1f8] sm:%s671] %v932
      %v934 = vld [vmem:[%s678 + $0x214] sm:%s671]
      %935 = vst [vmem:[%s679 + $0x1fc] sm:%s671] %v934
      %v936 = vld [vmem:[%s678 + $0x1f0] sm:%s671]
      %937 = vst [vmem:[%s679 + $0x200] sm:%s671] %v936
      %v938 = vld [vmem:[%s678 + $0x218] sm:%s671]
      %939 = vst [vmem:[%s679 + $0x204] sm:%s671] %v938
      %v940 = vld [vmem:[%s678 + $0x1f4] sm:%s671]
      %941 = vst [vmem:[%s679 + $0x208] sm:%s671] %v940
      %v942 = vld [vmem:[%s678 + $0x21c] sm:%s671]
      %943 = vst [vmem:[%s679 + $0x20c] sm:%s671] %v942
      %v944 = vld [vmem:[%s678 + $0x1f8] sm:%s671]
      %945 = vst [vmem:[%s679 + $0x210] sm:%s671] %v944
      %v946 = vld [vmem:[%s678 + $0x220] sm:%s671]
      %947 = vst [vmem:[%s679 + $0x214] sm:%s671] %v946
      %v948 = vld [vmem:[%s678 + $0x1fc] sm:%s671]
      %949 = vst [vmem:[%s679 + $0x218] sm:%s671] %v948
      %v950 = vld [vmem:[%s678 + $0x224] sm:%s671]
      %951 = vst [vmem:[%s679 + $0x21c] sm:%s671] %v950
      %v952 = vld [vmem:[%s678 + $0x200] sm:%s671]
      %953 = vst [vmem:[%s679 + $0x220] sm:%s671] %v952
      %v954 = vld [vmem:[%s678 + $0x228] sm:%s671]
      %955 = vst [vmem:[%s679 + $0x224] sm:%s671] %v954
      %v956 = vld [vmem:[%s678 + $0x204] sm:%s671]
      %957 = vst [vmem:[%s679 + $0x228] sm:%s671] %v956
      %v958 = vld [vmem:[%s678 + $0x22c] sm:%s671]
      %959 = vst [vmem:[%s679 + $0x22c] sm:%s671] %v958
      %v960 = vld [vmem:[%s678 + $0x230] sm:%s671]
      %961 = vst [vmem:[%s679 + $0x230] sm:%s671] %v960
      %v962 = vld [vmem:[%s678 + $0x258] sm:%s671]
      %963 = vst [vmem:[%s679 + $0x234] sm:%s671] %v962
      %v964 = vld [vmem:[%s678 + $0x234] sm:%s671]
      %965 = vst [vmem:[%s679 + $0x238] sm:%s671] %v964
      %v966 = vld [vmem:[%s678 + $0x25c] sm:%s671]
      %967 = vst [vmem:[%s679 + $0x23c] sm:%s671] %v966
      %v968 = vld [vmem:[%s678 + $0x238] sm:%s671]
      %969 = vst [vmem:[%s679 + $0x240] sm:%s671] %v968
      %v970 = vld [vmem:[%s678 + $0x260] sm:%s671]
      %971 = vst [vmem:[%s679 + $0x244] sm:%s671] %v970
      %v972 = vld [vmem:[%s678 + $0x23c] sm:%s671]
      %973 = vst [vmem:[%s679 + $0x248] sm:%s671] %v972
      %v974 = vld [vmem:[%s678 + $0x264] sm:%s671]
      %975 = vst [vmem:[%s679 + $0x24c] sm:%s671] %v974
      %v976 = vld [vmem:[%s678 + $0x240] sm:%s671]
      %977 = vst [vmem:[%s679 + $0x250] sm:%s671] %v976
      %v978 = vld [vmem:[%s678 + $0x268] sm:%s671]
      %979 = vst [vmem:[%s679 + $0x254] sm:%s671] %v978
      %v980 = vld [vmem:[%s678 + $0x244] sm:%s671]
      %981 = vst [vmem:[%s679 + $0x258] sm:%s671] %v980
      %v982 = vld [vmem:[%s678 + $0x26c] sm:%s671]
      %983 = vst [vmem:[%s679 + $0x25c] sm:%s671] %v982
      %v984 = vld [vmem:[%s678 + $0x248] sm:%s671]
      %985 = vst [vmem:[%s679 + $0x260] sm:%s671] %v984
      %v986 = vld [vmem:[%s678 + $0x270] sm:%s671]
      %987 = vst [vmem:[%s679 + $0x264] sm:%s671] %v986
      %v988 = vld [vmem:[%s678 + $0x24c] sm:%s671]
      %989 = vst [vmem:[%s679 + $0x268] sm:%s671] %v988
      %v990 = vld [vmem:[%s678 + $0x274] sm:%s671]
      %991 = vst [vmem:[%s679 + $0x26c] sm:%s671] %v990
      %v992 = vld [vmem:[%s678 + $0x250] sm:%s671]
      %993 = vst [vmem:[%s679 + $0x270] sm:%s671] %v992
      %v994 = vld [vmem:[%s678 + $0x278] sm:%s671]
      %995 = vst [vmem:[%s679 + $0x274] sm:%s671] %v994
      %v996 = vld [vmem:[%s678 + $0x254] sm:%s671]
      %997 = vst [vmem:[%s679 + $0x278] sm:%s671] %v996
      %v998 = vld [vmem:[%s678 + $0x27c] sm:%s671]
      %999 = vst [vmem:[%s679 + $0x27c] sm:%s671] %v998
      %v1000 = vld [vmem:[%s678 + $0x280] sm:%s671]
      %1001 = vst [vmem:[%s679 + $0x280] sm:%s671] %v1000
      %v1002 = vld [vmem:[%s678 + $0x2a8] sm:%s671]
      %1003 = vst [vmem:[%s679 + $0x284] sm:%s671] %v1002
      %v1004 = vld [vmem:[%s678 + $0x284] sm:%s671]
      %1005 = vst [vmem:[%s679 + $0x288] sm:%s671] %v1004
      %v1006 = vld [vmem:[%s678 + $0x2ac] sm:%s671]
      %1007 = vst [vmem:[%s679 + $0x28c] sm:%s671] %v1006
      %v1008 = vld [vmem:[%s678 + $0x288] sm:%s671]
      %1009 = vst [vmem:[%s679 + $0x290] sm:%s671] %v1008
      %v1010 = vld [vmem:[%s678 + $0x2b0] sm:%s671]
      %1011 = vst [vmem:[%s679 + $0x294] sm:%s671] %v1010
      %v1012 = vld [vmem:[%s678 + $0x28c] sm:%s671]
      %1013 = vst [vmem:[%s679 + $0x298] sm:%s671] %v1012
      %v1014 = vld [vmem:[%s678 + $0x2b4] sm:%s671]
      %1015 = vst [vmem:[%s679 + $0x29c] sm:%s671] %v1014
      %v1016 = vld [vmem:[%s678 + $0x290] sm:%s671]
      %1017 = vst [vmem:[%s679 + $0x2a0] sm:%s671] %v1016
      %v1018 = vld [vmem:[%s678 + $0x2b8] sm:%s671]
      %1019 = vst [vmem:[%s679 + $0x2a4] sm:%s671] %v1018
      %v1020 = vld [vmem:[%s678 + $0x294] sm:%s671]
      %1021 = vst [vmem:[%s679 + $0x2a8] sm:%s671] %v1020
      %v1022 = vld [vmem:[%s678 + $0x2bc] sm:%s671]
      %1023 = vst [vmem:[%s679 + $0x2ac] sm:%s671] %v1022
      %v1024 = vld [vmem:[%s678 + $0x298] sm:%s671]
      %1025 = vst [vmem:[%s679 + $0x2b0] sm:%s671] %v1024
      %v1026 = vld [vmem:[%s678 + $0x2c0] sm:%s671]
      %1027 = vst [vmem:[%s679 + $0x2b4] sm:%s671] %v1026
      %v1028 = vld [vmem:[%s678 + $0x29c] sm:%s671]
      %1029 = vst [vmem:[%s679 + $0x2b8] sm:%s671] %v1028
      %v1030 = vld [vmem:[%s678 + $0x2c4] sm:%s671]
      %1031 = vst [vmem:[%s679 + $0x2bc] sm:%s671] %v1030
      %v1032 = vld [vmem:[%s678 + $0x2a0] sm:%s671]
      %1033 = vst [vmem:[%s679 + $0x2c0] sm:%s671] %v1032
      %v1034 = vld [vmem:[%s678 + $0x2c8] sm:%s671]
      %1035 = vst [vmem:[%s679 + $0x2c4] sm:%s671] %v1034
      %v1036 = vld [vmem:[%s678 + $0x2a4] sm:%s671]
      %1037 = vst [vmem:[%s679 + $0x2c8] sm:%s671] %v1036
      %v1038 = vld [vmem:[%s678 + $0x2cc] sm:%s671]
      %1039 = vst [vmem:[%s679 + $0x2cc] sm:%s671] %v1038
      %v1040 = vld [vmem:[%s678 + $0x2d0] sm:%s671]
      %1041 = vst [vmem:[%s679 + $0x2d0] sm:%s671] %v1040
      %v1042 = vld [vmem:[%s678 + $0x2f8] sm:%s671]
      %1043 = vst [vmem:[%s679 + $0x2d4] sm:%s671] %v1042
      %v1044 = vld [vmem:[%s678 + $0x2d4] sm:%s671]
      %1045 = vst [vmem:[%s679 + $0x2d8] sm:%s671] %v1044
      %v1046 = vld [vmem:[%s678 + $0x2fc] sm:%s671]
      %1047 = vst [vmem:[%s679 + $0x2dc] sm:%s671] %v1046
      %v1048 = vld [vmem:[%s678 + $0x2d8] sm:%s671]
      %1049 = vst [vmem:[%s679 + $0x2e0] sm:%s671] %v1048
      %v1050 = vld [vmem:[%s678 + $0x300] sm:%s671]
      %1051 = vst [vmem:[%s679 + $0x2e4] sm:%s671] %v1050
      %v1052 = vld [vmem:[%s678 + $0x2dc] sm:%s671]
      %1053 = vst [vmem:[%s679 + $0x2e8] sm:%s671] %v1052
      %v1054 = vld [vmem:[%s678 + $0x304] sm:%s671]
      %1055 = vst [vmem:[%s679 + $0x2ec] sm:%s671] %v1054
      %v1056 = vld [vmem:[%s678 + $0x2e0] sm:%s671]
      %1057 = vst [vmem:[%s679 + $0x2f0] sm:%s671] %v1056
      %v1058 = vld [vmem:[%s678 + $0x308] sm:%s671]
      %1059 = vst [vmem:[%s679 + $0x2f4] sm:%s671] %v1058
      %v1060 = vld [vmem:[%s678 + $0x2e4] sm:%s671]
      %1061 = vst [vmem:[%s679 + $0x2f8] sm:%s671] %v1060
      %v1062 = vld [vmem:[%s678 + $0x30c] sm:%s671]
      %1063 = vst [vmem:[%s679 + $0x2fc] sm:%s671] %v1062
      %v1064 = vld [vmem:[%s678 + $0x2e8] sm:%s671]
      %1065 = vst [vmem:[%s679 + $0x300] sm:%s671] %v1064
      %v1066 = vld [vmem:[%s678 + $0x310] sm:%s671]
      %1067 = vst [vmem:[%s679 + $0x304] sm:%s671] %v1066
      %v1068 = vld [vmem:[%s678 + $0x2ec] sm:%s671]
      %1069 = vst [vmem:[%s679 + $0x308] sm:%s671] %v1068
      %v1070 = vld [vmem:[%s678 + $0x314] sm:%s671]
      %1071 = vst [vmem:[%s679 + $0x30c] sm:%s671] %v1070
      %v1072 = vld [vmem:[%s678 + $0x2f0] sm:%s671]
      %1073 = vst [vmem:[%s679 + $0x310] sm:%s671] %v1072
      %v1074 = vld [vmem:[%s678 + $0x318] sm:%s671]
      %1075 = vst [vmem:[%s679 + $0x314] sm:%s671] %v1074
      %v1076 = vld [vmem:[%s678 + $0x2f4] sm:%s671]
      %1077 = vst [vmem:[%s679 + $0x318] sm:%s671] %v1076
      %v1078 = vld [vmem:[%s678 + $0x31c] sm:%s671]
      %1079 = vst [vmem:[%s679 + $0x31c] sm:%s671] %v1078
    $region91: #{mnasnet_block.1} parent=85 // loop_footer
      %s677 = sadd.s32 1, %s673
    $region92: #{mnasnet_block.1} parent=85 // loop_footer_branch
      %672 = sbr.rel target = $region88
    $region93: #{mnasnet_block.1} parent=85 // loop_exit
      _
  $region86: #{mnasnet_block.1} parent=0 // pred_fallthru
    _
  // Predicated region
  $region112: #{mnasnet_block.1} parent=0 // pred_check
    _
  $region113: #{mnasnet_block.1} parent=0 // pred_check_branch
    %1509 = sbr.rel (0) target = $region115
  $region114: #{mnasnet_block.1} parent=0 // pred_region
    %1510 = vsyncadd %s662, 12800
  $region115: #{mnasnet_block.1} parent=0 // pred_fallthru
    _
  %v1511 = vld [vmem:[%s0] sm:$0xf]
  %v1512 = vld [vmem:[%s0 + $0x4] sm:$0xf]
  %v1513 = vld [vmem:[%s0 + $0x8] sm:$0xf]
  %v1514 = vld [vmem:[%s0 + $0xc] sm:$0xf]
  %v1515 = vld [vmem:[%s0 + $0x10] sm:$0xf]
  %v1516 = vld [vmem:[%s0 + $0x14] sm:$0xf]
  %v1517 = vld [vmem:[%s0 + $0x18] sm:$0xf]
  %v1518 = vld [vmem:[%s2] sm:$0xff]
  %v1519 = vld [vmem:[%s2 + $0x8] sm:$0xff]
  %v1520 = vld [vmem:[%s2 + $0x10] sm:$0xf]
  %v1521 = vld [vmem:[%s2 + $0x14] sm:$0xff]
  %v1522 = vld [vmem:[%s2 + $0x1c] sm:$0xff]
  %v1523 = vld [vmem:[%s2 + $0x24] sm:$0xf]
  %v1524 = vld [vmem:[%s2 + $0x28] sm:$0xff]
  %v1525 = vld [vmem:[%s2 + $0x30] sm:$0xff]
  %v1526 = vld [vmem:[%s2 + $0x38] sm:$0xf]
  %v1527 = vld [vmem:[%s2 + $0x3c] sm:$0xff]
  %v1528 = vld [vmem:[%s2 + $0x44] sm:$0xff]
  %v1529 = vld [vmem:[%s2 + $0x4c] sm:$0xf]
  %v1530 = vld [vmem:[%s2 + $0x50] sm:$0xff]
  %v1531 = vld [vmem:[%s2 + $0x58] sm:$0xff]
  %v1532 = vld [vmem:[%s2 + $0x60] sm:$0xf]
  %v1533 = vld [vmem:[%s2 + $0x64] sm:$0xff]
  %v1534 = vld [vmem:[%s2 + $0x6c] sm:$0xff]
  %v1535 = vld [vmem:[%s2 + $0x74] sm:$0xf]
  %v1536 = vld [vmem:[%s2 + $0x78] sm:$0xff]
  %v1537 = vld [vmem:[%s2 + $0x80] sm:$0xff]
  %v1538 = vld [vmem:[%s2 + $0x88] sm:$0xf]
  %v1539 = vld [vmem:[%s2 + $0x8c] sm:$0xff]
  %v1540 = vld [vmem:[%s2 + $0x94] sm:$0xff]
  %v1541 = vld [vmem:[%s2 + $0x9c] sm:$0xf]
  %v1542 = vld [vmem:[%s2 + $0xa0] sm:$0xff]
  %v1543 = vld [vmem:[%s2 + $0xa8] sm:$0xff]
  %v1544 = vld [vmem:[%s2 + $0xb0] sm:$0xf]
  %v1545 = vld [vmem:[%s2 + $0xb4] sm:$0xff]
  %v1546 = vld [vmem:[%s2 + $0xbc] sm:$0xff]
  %v1547 = vld [vmem:[%s2 + $0xc4] sm:$0xf]
  %v1548 = vld [vmem:[%s2 + $0xc8] sm:$0xff]
  %v1549 = vld [vmem:[%s2 + $0xd0] sm:$0xff]
  %v1550 = vld [vmem:[%s2 + $0xd8] sm:$0xf]
  %v1551 = vld [vmem:[%s2 + $0xdc] sm:$0xff]
  %v1552 = vld [vmem:[%s2 + $0xe4] sm:$0xff]
  %v1553 = vld [vmem:[%s2 + $0xec] sm:$0xf]
  %v1561 = vunpack.c.l.b16 %v1511
  %v1562 = vunpack.c.l.b16 %v1512
  %v1563 = vunpack.c.l.b16 %v1513
  %v1564 = vunpack.c.l.b16 %v1514
  %v1565 = vunpack.c.l.b16 %v1515
  %v1566 = vunpack.c.l.b16 %v1516
  %v1567 = vunpack.c.l.b16 %v1517
  %v1568 = vpack.c.b16 %v1562, %v1561
  %v1569 = vpack.c.b16 %v1564, %v1563
  %v1570 = vpack.c.b16 %v1566, %v1565
  %v1571 = vpack.c.b16 %v1567, %v1567
  %v1608 = vunpack.c.l.b16 %v1518
  %v1609 = vunpack.c.h.b16 %v1518
  %v1610 = vunpack.c.l.b16 %v1519
  %v1611 = vunpack.c.h.b16 %v1519
  %v1612 = vunpack.c.l.b16 %v1520
  %v1613 = vunpack.c.l.b16 %v1521
  %v1614 = vunpack.c.h.b16 %v1521
  %v1615 = vunpack.c.l.b16 %v1522
  %v1616 = vunpack.c.h.b16 %v1522
  %v1617 = vunpack.c.l.b16 %v1523
  %v1618 = vunpack.c.l.b16 %v1524
  %v1619 = vunpack.c.h.b16 %v1524
  %v1620 = vunpack.c.l.b16 %v1525
  %v1621 = vunpack.c.h.b16 %v1525
  %v1622 = vunpack.c.l.b16 %v1526
  %v1623 = vunpack.c.l.b16 %v1527
  %v1624 = vunpack.c.h.b16 %v1527
  %v1625 = vunpack.c.l.b16 %v1528
  %v1626 = vunpack.c.h.b16 %v1528
  %v1627 = vunpack.c.l.b16 %v1529
  %v1628 = vunpack.c.l.b16 %v1530
  %v1629 = vunpack.c.h.b16 %v1530
  %v1630 = vunpack.c.l.b16 %v1531
  %v1631 = vunpack.c.h.b16 %v1531
  %v1632 = vunpack.c.l.b16 %v1532
  %v1633 = vunpack.c.l.b16 %v1533
  %v1634 = vunpack.c.h.b16 %v1533
  %v1635 = vunpack.c.l.b16 %v1534
  %v1636 = vunpack.c.h.b16 %v1534
  %v1637 = vunpack.c.l.b16 %v1535
  %v1638 = vunpack.c.l.b16 %v1536
  %v1639 = vunpack.c.h.b16 %v1536
  %v1640 = vunpack.c.l.b16 %v1537
  %v1641 = vunpack.c.h.b16 %v1537
  %v1642 = vunpack.c.l.b16 %v1538
  %v1643 = vunpack.c.l.b16 %v1539
  %v1644 = vunpack.c.h.b16 %v1539
  %v1645 = vunpack.c.l.b16 %v1540
  %v1646 = vunpack.c.h.b16 %v1540
  %v1647 = vunpack.c.l.b16 %v1541
  %v1648 = vunpack.c.l.b16 %v1542
  %v1649 = vunpack.c.h.b16 %v1542
  %v1650 = vunpack.c.l.b16 %v1543
  %v1651 = vunpack.c.h.b16 %v1543
  %v1652 = vunpack.c.l.b16 %v1544
  %v1653 = vunpack.c.l.b16 %v1545
  %v1654 = vunpack.c.h.b16 %v1545
  %v1655 = vunpack.c.l.b16 %v1546
  %v1656 = vunpack.c.h.b16 %v1546
  %v1657 = vunpack.c.l.b16 %v1547
  %v1658 = vunpack.c.l.b16 %v1548
  %v1659 = vunpack.c.h.b16 %v1548
  %v1660 = vunpack.c.l.b16 %v1549
  %v1661 = vunpack.c.h.b16 %v1549
  %v1662 = vunpack.c.l.b16 %v1550
  %v1663 = vunpack.c.l.b16 %v1551
  %v1664 = vunpack.c.h.b16 %v1551
  %v1665 = vunpack.c.l.b16 %v1552
  %v1666 = vunpack.c.h.b16 %v1552
  %v1667 = vunpack.c.l.b16 %v1553
  %v1668 = vpack.c.b16 %v1613, %v1608
  %v1669 = vpack.c.b16 %v1614, %v1609
  %v1670 = vpack.c.b16 %v1615, %v1610
  %v1671 = vpack.c.b16 %v1616, %v1611
  %v1672 = vpack.c.b16 %v1617, %v1612
  %v1673 = vpack.c.b16 %v1623, %v1618
  %v1674 = vpack.c.b16 %v1624, %v1619
  %v1675 = vpack.c.b16 %v1625, %v1620
  %v1676 = vpack.c.b16 %v1626, %v1621
  %v1677 = vpack.c.b16 %v1627, %v1622
  %v1678 = vpack.c.b16 %v1633, %v1628
  %v1679 = vpack.c.b16 %v1634, %v1629
  %v1680 = vpack.c.b16 %v1635, %v1630
  %v1681 = vpack.c.b16 %v1636, %v1631
  %v1682 = vpack.c.b16 %v1637, %v1632
  %v1683 = vpack.c.b16 %v1643, %v1638
  %v1684 = vpack.c.b16 %v1644, %v1639
  %v1685 = vpack.c.b16 %v1645, %v1640
  %v1686 = vpack.c.b16 %v1646, %v1641
  %v1687 = vpack.c.b16 %v1647, %v1642
  %v1688 = vpack.c.b16 %v1653, %v1648
  %v1689 = vpack.c.b16 %v1654, %v1649
  %v1690 = vpack.c.b16 %v1655, %v1650
  %v1691 = vpack.c.b16 %v1656, %v1651
  %v1692 = vpack.c.b16 %v1657, %v1652
  %v1693 = vpack.c.b16 %v1663, %v1658
  %v1694 = vpack.c.b16 %v1664, %v1659
  %v1695 = vpack.c.b16 %v1665, %v1660
  %v1696 = vpack.c.b16 %v1666, %v1661
  %v1697 = vpack.c.b16 %v1667, %v1662
  %vm1728 = vcmask 785408
  %v1730 = vsel %vm1728, %v1568, 0
  %v1733 = vsel %vm1728, %v1569, 0
  %v1736 = vsel %vm1728, %v1570, 0
  %v1739 = vsel %vm1728, %v1571, 0
  %1741 = vmatprep.subr.bf16.mxu0 %v1669
  %1742 = vmatpush1.bf16.msra.mxu0 %v1668
  %1743 = vmatprep.subr.bf16.mxu0 %v1674
  %1744 = vmatpush1.bf16.msra.mxu0 %v1673
  %1745 = vmatprep.subr.bf16.mxu0 %v1679
  %1746 = vmatpush1.bf16.msra.mxu0 %v1678
  %1747 = vmatprep.subr.bf16.mxu0 %v1684
  %1748 = vmatpush1.bf16.msra.mxu0 %v1683
  %1749 = vmatprep.subr.bf16.mxu0 %v1689
  %1750 = vmatpush1.bf16.msra.mxu0 %v1688
  %1751 = vmatprep.subr.bf16.mxu0 %v1694
  %1752 = vmatpush1.bf16.msra.mxu0 %v1693
  %1753 = vmatprep.subr.bf16.mxu0 0
  %1754 = vmatpush1.bf16.msra.mxu0 0
  %1755 = vmatprep.subr.bf16.mxu0 0
  %1756 = vmatpush1.bf16.msra.mxu0 0
  %1757 = vmatprep.subr.bf16.mxu0 0
  %1758 = vmatpush1.bf16.msra.mxu0 0
  %1759 = vmatprep.subr.bf16.mxu0 0
  %1760 = vmatpush1.bf16.msra.mxu0 0
  %1761 = vmatprep.subr.bf16.mxu0 0
  %1762 = vmatpush1.bf16.msra.mxu0 0
  %1763 = vmatprep.subr.bf16.mxu0 0
  %1764 = vmatpush1.bf16.msra.mxu0 0
  %1765 = vmatprep.subr.bf16.mxu0 0
  %1766 = vmatpush1.bf16.msra.mxu0 0
  %1767 = vmatprep.subr.bf16.mxu0 0
  %1768 = vmatpush1.bf16.msra.mxu0 0
  %1769 = vmatprep.subr.bf16.mxu0 0
  %1770 = vmatpush1.bf16.msra.mxu0 0
  %1771 = vmatprep.subr.bf16.mxu0 0
  %1772 = vmatpush1.bf16.msra.mxu0 0
  %1773 = vmatprep.mubr.bf16.mxu0 0
  %1774 = vmatmul.mubr.bf16.gmra.mrb[0].mxu0 %v1730
  %v1775 = vpop.f32.mrb[0].mxu0
  %v1776 = vadd.f32 0.0, %v1775
  %v1777 = vpop.f32.mrb[0].mxu0
  %v1778 = vadd.f32 0.0, %v1777
  %v1779 = vpop.f32.mrb[0].mxu0
  %v1780 = vadd.f32 0.0, %v1779
  %v1781 = vpop.f32.mrb[0].mxu0
  %v1782 = vadd.f32 0.0, %v1781
  %1783 = vmatprep.mubr.bf16.mxu0 0
  %1784 = vmatmul.mubr.bf16.gmra.mrb[0].mxu0 %v1733
  %v1785 = vpop.f32.mrb[0].mxu0
  %v1786 = vadd.f32 0.0, %v1785
  %v1787 = vpop.f32.mrb[0].mxu0
  %v1788 = vadd.f32 0.0, %v1787
  %v1789 = vpop.f32.mrb[0].mxu0
  %v1790 = vadd.f32 0.0, %v1789
  %v1791 = vpop.f32.mrb[0].mxu0
  %v1792 = vadd.f32 0.0, %v1791
  %1793 = vmatprep.mubr.bf16.mxu0 0
  %1794 = vmatmul.mubr.bf16.gmra.mrb[0].mxu0 %v1736
  %v1795 = vpop.f32.mrb[0].mxu0
  %v1796 = vadd.f32 0.0, %v1795
  %v1797 = vpop.f32.mrb[0].mxu0
  %v1798 = vadd.f32 0.0, %v1797
  %v1799 = vpop.f32.mrb[0].mxu0
  %v1800 = vadd.f32 0.0, %v1799
  %v1801 = vpop.f32.mrb[0].mxu0
  %v1802 = vadd.f32 0.0, %v1801
  %1803 = vmatprep.mubr.bf16.mxu0 0
  %1804 = vmatmul.mubr.bf16.gmra.mrb[0].mxu0 %v1739
  %v1805 = vpop.f32.mrb[0].mxu0
  %v1806 = vadd.f32 0.0, %v1805
  %v1807 = vpop.f32.mrb[0].mxu0
  %v1808 = vadd.f32 0.0, %v1807
  %v1809 = vpop.f32.mrb[0].mxu0
  %v1810 = vpop.f32.mrb[0].mxu0
  %1811 = vdwg.mxu0
  %1812 = vmatprep.subr.bf16.mxu0 %v1671
  %1813 = vmatpush1.bf16.msra.mxu0 %v1670
  %1814 = vmatprep.subr.bf16.mxu0 %v1676
  %1815 = vmatpush1.bf16.msra.mxu0 %v1675
  %1816 = vmatprep.subr.bf16.mxu0 %v1681
  %1817 = vmatpush1.bf16.msra.mxu0 %v1680
  %1818 = vmatprep.subr.bf16.mxu0 %v1686
  %1819 = vmatpush1.bf16.msra.mxu0 %v1685
  %1820 = vmatprep.subr.bf16.mxu0 %v1691
  %1821 = vmatpush1.bf16.msra.mxu0 %v1690
  %1822 = vmatprep.subr.bf16.mxu0 %v1696
  %1823 = vmatpush1.bf16.msra.mxu0 %v1695
  %1824 = vmatprep.subr.bf16.mxu0 0
  %1825 = vmatpush1.bf16.msra.mxu0 0
  %1826 = vmatprep.subr.bf16.mxu0 0
  %1827 = vmatpush1.bf16.msra.mxu0 0
  %1828 = vmatprep.subr.bf16.mxu0 0
  %1829 = vmatpush1.bf16.msra.mxu0 0
  %1830 = vmatprep.subr.bf16.mxu0 0
  %1831 = vmatpush1.bf16.msra.mxu0 0
  %1832 = vmatprep.subr.bf16.mxu0 0
  %1833 = vmatpush1.bf16.msra.mxu0 0
  %1834 = vmatprep.subr.bf16.mxu0 0
  %1835 = vmatpush1.bf16.msra.mxu0 0
  %1836 = vmatprep.subr.bf16.mxu0 0
  %1837 = vmatpush1.bf16.msra.mxu0 0
  %1838 = vmatprep.subr.bf16.mxu0 0
  %1839 = vmatpush1.bf16.msra.mxu0 0
  %1840 = vmatprep.subr.bf16.mxu0 0
  %1841 = vmatpush1.bf16.msra.mxu0 0
  %1842 = vmatprep.subr.bf16.mxu0 0
  %1843 = vmatpush1.bf16.msra.mxu0 0
  %1844 = vmatprep.mubr.bf16.mxu0 0
  %1845 = vmatmul.mubr.bf16.gmra.mrb[0].mxu0 %v1730
  %v1846 = vpop.f32.mrb[0].mxu0
  %v1847 = vadd.f32 0.0, %v1846
  %v1848 = vpop.f32.mrb[0].mxu0
  %v1849 = vadd.f32 0.0, %v1848
  %v1850 = vpop.f32.mrb[0].mxu0
  %v1851 = vadd.f32 0.0, %v1850
  %v1852 = vpop.f32.mrb[0].mxu0
  %v1853 = vadd.f32 0.0, %v1852
  %1854 = vmatprep.mubr.bf16.mxu0 0
  %1855 = vmatmul.mubr.bf16.gmra.mrb[0].mxu0 %v1733
  %v1856 = vpop.f32.mrb[0].mxu0
  %v1857 = vadd.f32 0.0, %v1856
  %v1858 = vpop.f32.mrb[0].mxu0
  %v1859 = vadd.f32 0.0, %v1858
  %v1860 = vpop.f32.mrb[0].mxu0
  %v1861 = vadd.f32 0.0, %v1860
  %v1862 = vpop.f32.mrb[0].mxu0
  %v1863 = vadd.f32 0.0, %v1862
  %1864 = vmatprep.mubr.bf16.mxu0 0
  %1865 = vmatmul.mubr.bf16.gmra.mrb[0].mxu0 %v1736
  %v1866 = vpop.f32.mrb[0].mxu0
  %v1867 = vadd.f32 0.0, %v1866
  %v1868 = vpop.f32.mrb[0].mxu0
  %v1869 = vadd.f32 0.0, %v1868
  %v1870 = vpop.f32.mrb[0].mxu0
  %v1871 = vadd.f32 0.0, %v1870
  %v1872 = vpop.f32.mrb[0].mxu0
  %v1873 = vadd.f32 0.0, %v1872
  %1874 = vmatprep.mubr.bf16.mxu0 0
  %1875 = vmatmul.mubr.bf16.gmra.mrb[0].mxu0 %v1739
  %v1876 = vpop.f32.mrb[0].mxu0
  %v1877 = vadd.f32 0.0, %v1876
  %v1878 = vpop.f32.mrb[0].mxu0
  %v1879 = vadd.f32 0.0, %v1878
  %v1880 = vpop.f32.mrb[0].mxu0
  %v1881 = vpop.f32.mrb[0].mxu0
  %1882 = vdwg.mxu0
  %1883 = vmatprep.subr.bf16.mxu0 0
  %1884 = vmatpush1.bf16.msra.mxu0 %v1672
  %1885 = vmatprep.subr.bf16.mxu0 0
  %1886 = vmatpush1.bf16.msra.mxu0 %v1677
  %1887 = vmatprep.subr.bf16.mxu0 0
  %1888 = vmatpush1.bf16.msra.mxu0 %v1682
  %1889 = vmatprep.subr.bf16.mxu0 0
  %1890 = vmatpush1.bf16.msra.mxu0 %v1687
  %1891 = vmatprep.subr.bf16.mxu0 0
  %1892 = vmatpush1.bf16.msra.mxu0 %v1692
  %1893 = vmatprep.subr.bf16.mxu0 0
  %1894 = vmatpush1.bf16.msra.mxu0 %v1697
  %1895 = vmatprep.subr.bf16.mxu0 0
  %1896 = vmatpush1.bf16.msra.mxu0 0
  %1897 = vmatprep.subr.bf16.mxu0 0
  %1898 = vmatpush1.bf16.msra.mxu0 0
  %1899 = vmatprep.subr.bf16.mxu0 0
  %1900 = vmatpush1.bf16.msra.mxu0 0
  %1901 = vmatprep.subr.bf16.mxu0 0
  %1902 = vmatpush1.bf16.msra.mxu0 0
  %1903 = vmatprep.subr.bf16.mxu0 0
  %1904 = vmatpush1.bf16.msra.mxu0 0
  %1905 = vmatprep.subr.bf16.mxu0 0
  %1906 = vmatpush1.bf16.msra.mxu0 0
  %1907 = vmatprep.subr.bf16.mxu0 0
  %1908 = vmatpush1.bf16.msra.mxu0 0
  %1909 = vmatprep.subr.bf16.mxu0 0
  %1910 = vmatpush1.bf16.msra.mxu0 0
  %1911 = vmatprep.subr.bf16.mxu0 0
  %1912 = vmatpush1.bf16.msra.mxu0 0
  %1913 = vmatprep.subr.bf16.mxu0 0
  %1914 = vmatpush1.bf16.msra.mxu0 0
  %1915 = vmatprep.mubr.bf16.mxu0 0
  %1916 = vmatmul.mubr.bf16.gmra.mrb[0].mxu0 %v1730
  %v1917 = vpop.f32.mrb[0].mxu0
  %v1918 = vadd.f32 0.0, %v1917
  %v1919 = vpop.f32.mrb[0].mxu0
  %v1920 = vpop.f32.mrb[0].mxu0
  %v1921 = vadd.f32 0.0, %v1920
  %v1922 = vpop.f32.mrb[0].mxu0
  %1923 = vmatprep.mubr.bf16.mxu0 0
  %1924 = vmatmul.mubr.bf16.gmra.mrb[0].mxu0 %v1733
  %v1925 = vpop.f32.mrb[0].mxu0
  %v1926 = vadd.f32 0.0, %v1925
  %v1927 = vpop.f32.mrb[0].mxu0
  %v1928 = vpop.f32.mrb[0].mxu0
  %v1929 = vadd.f32 0.0, %v1928
  %v1930 = vpop.f32.mrb[0].mxu0
  %1931 = vmatprep.mubr.bf16.mxu0 0
  %1932 = vmatmul.mubr.bf16.gmra.mrb[0].mxu0 %v1736
  %v1933 = vpop.f32.mrb[0].mxu0
  %v1934 = vadd.f32 0.0, %v1933
  %v1935 = vpop.f32.mrb[0].mxu0
  %v1936 = vpop.f32.mrb[0].mxu0
  %v1937 = vadd.f32 0.0, %v1936
  %v1938 = vpop.f32.mrb[0].mxu0
  %1939 = vmatprep.mubr.bf16.mxu0 0
  %1940 = vmatmul.mubr.bf16.gmra.mrb[0].mxu0 %v1739
  %v1941 = vpop.f32.mrb[0].mxu0
  %v1942 = vadd.f32 0.0, %v1941
  %v1943 = vpop.f32.mrb[0].mxu0
  %v1944 = vpop.f32.mrb[0].mxu0
  %v1945 = vpop.f32.mrb[0].mxu0
  %1946 = vdwg.mxu0
  %v1947 = vld [vmem:[%s3] sm:$0x1f]
  %v1948 = vld [vmem:[%s4] sm:$0x1f]
  %v1949 = vadd.f32 %v1776, %v1780
  %v1950 = vadd.f32 %v1949, %v1786
  %v1951 = vadd.f32 %v1950, %v1790
  %v1952 = vadd.f32 %v1951, %v1796
  %v1953 = vadd.f32 %v1952, %v1800
  %v1954 = vadd.f32 %v1953, %v1806
  %v1955 = vrot.slane %v1954, 4
  %v1956 = vadd.f32 %v1954, %v1955
  %v1957 = vrot.slane %v1956, 2
  %v1958 = vadd.f32 %v1956, %v1957
  %v1959 = vrot.slane %v1958, 1
  %v1960 = vadd.f32 %v1958, %v1959
  %v1961 = vadd.f32 %v1778, %v1782
  %v1962 = vadd.f32 %v1961, %v1788
  %v1963 = vadd.f32 %v1962, %v1792
  %v1964 = vadd.f32 %v1963, %v1798
  %v1965 = vadd.f32 %v1964, %v1802
  %v1966 = vadd.f32 %v1965, %v1808
  %v1967 = vrot.slane %v1966, 4
  %v1968 = vadd.f32 %v1966, %v1967
  %v1969 = vrot.slane %v1968, 2
  %v1970 = vadd.f32 %v1968, %v1969
  %v1971 = vrot.slane %v1970, 1
  %v1972 = vadd.f32 %v1970, %v1971
  %v1973 = vadd.f32 %v1847, %v1851
  %v1974 = vadd.f32 %v1973, %v1857
  %v1975 = vadd.f32 %v1974, %v1861
  %v1976 = vadd.f32 %v1975, %v1867
  %v1977 = vadd.f32 %v1976, %v1871
  %v1978 = vadd.f32 %v1977, %v1877
  %v1979 = vrot.slane %v1978, 4
  %v1980 = vadd.f32 %v1978, %v1979
  %v1981 = vrot.slane %v1980, 2
  %v1982 = vadd.f32 %v1980, %v1981
  %v1983 = vrot.slane %v1982, 1
  %v1984 = vadd.f32 %v1982, %v1983
  %v1985 = vadd.f32 %v1849, %v1853
  %v1986 = vadd.f32 %v1985, %v1859
  %v1987 = vadd.f32 %v1986, %v1863
  %v1988 = vadd.f32 %v1987, %v1869
  %v1989 = vadd.f32 %v1988, %v1873
  %v1990 = vadd.f32 %v1989, %v1879
  %v1991 = vrot.slane %v1990, 4
  %v1992 = vadd.f32 %v1990, %v1991
  %v1993 = vrot.slane %v1992, 2
  %v1994 = vadd.f32 %v1992, %v1993
  %v1995 = vrot.slane %v1994, 1
  %v1996 = vadd.f32 %v1994, %v1995
  %vm1997 = vcmask 523264
  %v1998 = vsel %vm1997, %v1918, 0.0
  %v1999 = vsel %vm1997, %v1921, 0.0
  %v2000 = vadd.f32 %v1998, %v1999
  %v2001 = vsel %vm1997, %v1926, 0.0
  %v2002 = vadd.f32 %v2000, %v2001
  %v2003 = vsel %vm1997, %v1929, 0.0
  %v2004 = vadd.f32 %v2002, %v2003
  %v2005 = vsel %vm1997, %v1934, 0.0
  %v2006 = vadd.f32 %v2004, %v2005
  %v2007 = vsel %vm1997, %v1937, 0.0
  %v2008 = vadd.f32 %v2006, %v2007
  %v2009 = vsel %vm1997, %v1942, 0.0
  %v2010 = vadd.f32 %v2008, %v2009
  %v2011 = vrot.slane %v2010, 4
  %v2012 = vadd.f32 %v2010, %v2011
  %v2013 = vrot.slane %v2012, 2
  %v2014 = vadd.f32 %v2012, %v2013
  %v2015 = vrot.slane %v2014, 1
  %v2016 = vadd.f32 %v2014, %v2015
  %v2017 = vmul.f32 %v1960, 0.020408163
  %v2018 = vmul.f32 %v1972, 0.020408163
  %v2019 = vmul.f32 %v1984, 0.020408163
  %v2020 = vmul.f32 %v1996, 0.020408163
  %v2021 = vmul.f32 %v2016, 0.020408163
  %v2022 = vmul.f32 %v1776, %v1776
  %v2023 = vmul.f32 %v1778, %v1778
  %v2024 = vmul.f32 %v1847, %v1847
  %v2025 = vmul.f32 %v1849, %v1849
  %v2026 = vmul.f32 %v1918, %v1918
  %v2027 = vmul.f32 %v1780, %v1780
  %v2028 = vmul.f32 %v1782, %v1782
  %v2029 = vmul.f32 %v1851, %v1851
  %v2030 = vmul.f32 %v1853, %v1853
  %v2031 = vmul.f32 %v1921, %v1921
  %v2032 = vmul.f32 %v1786, %v1786
  %v2033 = vmul.f32 %v1788, %v1788
  %v2034 = vmul.f32 %v1857, %v1857
  %v2035 = vmul.f32 %v1859, %v1859
  %v2036 = vmul.f32 %v1926, %v1926
  %v2037 = vmul.f32 %v1790, %v1790
  %v2038 = vmul.f32 %v1792, %v1792
  %v2039 = vmul.f32 %v1861, %v1861
  %v2040 = vmul.f32 %v1863, %v1863
  %v2041 = vmul.f32 %v1929, %v1929
  %v2042 = vmul.f32 %v1796, %v1796
  %v2043 = vmul.f32 %v1798, %v1798
  %v2044 = vmul.f32 %v1867, %v1867
  %v2045 = vmul.f32 %v1869, %v1869
  %v2046 = vmul.f32 %v1934, %v1934
  %v2047 = vmul.f32 %v1800, %v1800
  %v2048 = vmul.f32 %v1802, %v1802
  %v2049 = vmul.f32 %v1871, %v1871
  %v2050 = vmul.f32 %v1873, %v1873
  %v2051 = vmul.f32 %v1937, %v1937
  %v2052 = vmul.f32 %v1806, %v1806
  %v2053 = vmul.f32 %v1808, %v1808
  %v2054 = vmul.f32 %v1877, %v1877
  %v2055 = vmul.f32 %v1879, %v1879
  %v2056 = vmul.f32 %v1942, %v1942
  %v2057 = vadd.f32 %v2022, %v2027
  %v2058 = vadd.f32 %v2057, %v2032
  %v2059 = vadd.f32 %v2058, %v2037
  %v2060 = vadd.f32 %v2059, %v2042
  %v2061 = vadd.f32 %v2060, %v2047
  %v2062 = vadd.f32 %v2061, %v2052
  %v2063 = vrot.slane %v2062, 4
  %v2064 = vadd.f32 %v2062, %v2063
  %v2065 = vrot.slane %v2064, 2
  %v2066 = vadd.f32 %v2064, %v2065
  %v2067 = vrot.slane %v2066, 1
  %v2068 = vadd.f32 %v2066, %v2067
  %v2069 = vadd.f32 %v2023, %v2028
  %v2070 = vadd.f32 %v2069, %v2033
  %v2071 = vadd.f32 %v2070, %v2038
  %v2072 = vadd.f32 %v2071, %v2043
  %v2073 = vadd.f32 %v2072, %v2048
  %v2074 = vadd.f32 %v2073, %v2053
  %v2075 = vrot.slane %v2074, 4
  %v2076 = vadd.f32 %v2074, %v2075
  %v2077 = vrot.slane %v2076, 2
  %v2078 = vadd.f32 %v2076, %v2077
  %v2079 = vrot.slane %v2078, 1
  %v2080 = vadd.f32 %v2078, %v2079
  %v2081 = vadd.f32 %v2024, %v2029
  %v2082 = vadd.f32 %v2081, %v2034
  %v2083 = vadd.f32 %v2082, %v2039
  %v2084 = vadd.f32 %v2083, %v2044
  %v2085 = vadd.f32 %v2084, %v2049
  %v2086 = vadd.f32 %v2085, %v2054
  %v2087 = vrot.slane %v2086, 4
  %v2088 = vadd.f32 %v2086, %v2087
  %v2089 = vrot.slane %v2088, 2
  %v2090 = vadd.f32 %v2088, %v2089
  %v2091 = vrot.slane %v2090, 1
  %v2092 = vadd.f32 %v2090, %v2091
  %v2093 = vadd.f32 %v2025, %v2030
  %v2094 = vadd.f32 %v2093, %v2035
  %v2095 = vadd.f32 %v2094, %v2040
  %v2096 = vadd.f32 %v2095, %v2045
  %v2097 = vadd.f32 %v2096, %v2050
  %v2098 = vadd.f32 %v2097, %v2055
  %v2099 = vrot.slane %v2098, 4
  %v2100 = vadd.f32 %v2098, %v2099
  %v2101 = vrot.slane %v2100, 2
  %v2102 = vadd.f32 %v2100, %v2101
  %v2103 = vrot.slane %v2102, 1
  %v2104 = vadd.f32 %v2102, %v2103
  %v2105 = vsel %vm1997, %v2026, 0.0
  %v2106 = vsel %vm1997, %v2031, 0.0
  %v2107 = vadd.f32 %v2105, %v2106
  %v2108 = vsel %vm1997, %v2036, 0.0
  %v2109 = vadd.f32 %v2107, %v2108
  %v2110 = vsel %vm1997, %v2041, 0.0
  %v2111 = vadd.f32 %v2109, %v2110
  %v2112 = vsel %vm1997, %v2046, 0.0
  %v2113 = vadd.f32 %v2111, %v2112
  %v2114 = vsel %vm1997, %v2051, 0.0
  %v2115 = vadd.f32 %v2113, %v2114
  %v2116 = vsel %vm1997, %v2056, 0.0
  %v2117 = vadd.f32 %v2115, %v2116
  %v2118 = vrot.slane %v2117, 4
  %v2119 = vadd.f32 %v2117, %v2118
  %v2120 = vrot.slane %v2119, 2
  %v2121 = vadd.f32 %v2119, %v2120
  %v2122 = vrot.slane %v2121, 1
  %v2123 = vadd.f32 %v2121, %v2122
  %v2124 = vmul.f32 %v2068, 0.020408163
  %v2125 = vmul.f32 %v2080, 0.020408163
  %v2126 = vmul.f32 %v2092, 0.020408163
  %v2127 = vmul.f32 %v2104, 0.020408163
  %v2128 = vmul.f32 %v2123, 0.020408163
  %v2129 = vmul.f32 %v2017, %v2017
  %v2130 = vmul.f32 %v2018, %v2018
  %v2131 = vmul.f32 %v2019, %v2019
  %v2132 = vmul.f32 %v2020, %v2020
  %v2133 = vmul.f32 %v2021, %v2021
  %v2134 = vsub.f32 %v2124, %v2129
  %v2135 = vsub.f32 %v2125, %v2130
  %v2136 = vsub.f32 %v2126, %v2131
  %v2137 = vsub.f32 %v2127, %v2132
  %v2138 = vsub.f32 %v2128, %v2133
  %v2139 = vadd.f32 %v2134, 1e-05
  %v2140 = vadd.f32 %v2135, 1e-05
  %v2141 = vadd.f32 %v2136, 1e-05
  %v2142 = vadd.f32 %v2137, 1e-05
  %v2143 = vadd.f32 %v2138, 1e-05
  %v2144 = vrsqrt.pop %v2139
  %v2145 = vrsqrt.pop %v2140
  %v2146 = vrsqrt.pop %v2141
  %v2147 = vrsqrt.pop %v2142
  %v2148 = vrsqrt.pop %v2143
  %v2150 = vlaneseq
  %v2151 = vshrl.u32 %v2150, 7
  %v2152 = vsub.s32 0, %v2151
  %v2153 = vrot.slane %v1947, %v2152
  %v2154 = vlaneseq
  %v2155 = vshrl.u32 %v2154, 7
  %v2156 = vsub.s32 1, %v2155
  %v2157 = vrot.slane %v1947, %v2156
  %v2158 = vlaneseq
  %v2159 = vshrl.u32 %v2158, 7
  %v2160 = vsub.s32 2, %v2159
  %v2161 = vrot.slane %v1947, %v2160
  %v2162 = vlaneseq
  %v2163 = vshrl.u32 %v2162, 7
  %v2164 = vsub.s32 3, %v2163
  %v2165 = vrot.slane %v1947, %v2164
  %v2166 = vlaneseq
  %v2167 = vshrl.u32 %v2166, 7
  %v2168 = vsub.s32 4, %v2167
  %v2169 = vrot.slane %v1947, %v2168
  %v2175 = vmul.f32 %v2144, %v2153
  %v2176 = vmul.f32 %v2145, %v2157
  %v2177 = vmul.f32 %v2146, %v2161
  %v2178 = vmul.f32 %v2147, %v2165
  %v2179 = vmul.f32 %v2148, %v2169
  %v2180 = vmul.f32 %v2017, %v2175
  %v2181 = vmul.f32 %v2018, %v2176
  %v2182 = vmul.f32 %v2019, %v2177
  %v2183 = vmul.f32 %v2020, %v2178
  %v2184 = vmul.f32 %v2021, %v2179
  %v2190 = vcombine.low %v2180, %v2181
  %v2191 = vcombine.low %v2182, %v2183
  %v2193 = vunpack.c.l.s4 1966171168
  %v2194 = vunpack.c.0.s8 %v2193
  %v2195 = vlaneseq
  %v2196 = vshrl.u32 %v2195, 7
  %v2197 = vsub.s32 %v2194, %v2196
  %v2198 = vrot.slane %v2190, %v2197
  %v2200 = vunpack.c.l.s4 1966171168
  %v2201 = vunpack.c.0.s8 %v2200
  %v2202 = vlaneseq
  %v2203 = vshrl.u32 %v2202, 7
  %v2204 = vsub.s32 %v2201, %v2203
  %v2205 = vrot.slane %v2191, %v2204
  %v2207 = vunpack.c.l.s4 1966171168
  %v2208 = vunpack.c.0.s8 %v2207
  %v2209 = vlaneseq
  %v2210 = vshrl.u32 %v2209, 7
  %v2211 = vsub.s32 %v2208, %v2210
  %v2212 = vrot.slane %v2184, %v2211
  %v2213 = vcombine.low %v2198, %v2205
  %v2215 = vunpack.c.l.s4 1966171168
  %v2216 = vunpack.c.0.s8 %v2215
  %v2217 = vlaneseq
  %v2218 = vshrl.u32 %v2217, 7
  %v2219 = vsub.s32 %v2216, %v2218
  %v2220 = vrot.slane %v2213, %v2219
  %v2222 = vunpack.c.l.s4 1966171168
  %v2223 = vunpack.c.0.s8 %v2222
  %v2224 = vlaneseq
  %v2225 = vshrl.u32 %v2224, 7
  %v2226 = vsub.s32 %v2223, %v2225
  %v2227 = vrot.slane %v2212, %v2226
  %v2228 = vcombine.low %v2220, %v2227
  %v2230 = vsub.f32 %v1948, %v2228
  %v2231 = vlaneseq
  %v2232 = vshrl.u32 %v2231, 7
  %v2233 = vsub.s32 0, %v2232
  %v2234 = vrot.slane %v2175, %v2233
  %v2235 = vlaneseq
  %v2236 = vshrl.u32 %v2235, 7
  %v2237 = vsub.s32 0, %v2236
  %v2238 = vrot.slane %v2176, %v2237
  %v2239 = vlaneseq
  %v2240 = vshrl.u32 %v2239, 7
  %v2241 = vsub.s32 0, %v2240
  %v2242 = vrot.slane %v2177, %v2241
  %v2243 = vlaneseq
  %v2244 = vshrl.u32 %v2243, 7
  %v2245 = vsub.s32 0, %v2244
  %v2246 = vrot.slane %v2178, %v2245
  %v2247 = vlaneseq
  %v2248 = vshrl.u32 %v2247, 7
  %v2249 = vsub.s32 0, %v2248
  %v2250 = vrot.slane %v2179, %v2249
  %v2251 = vmul.f32 %v1776, %v2234
  %v2252 = vmul.f32 %v1778, %v2238
  %v2253 = vmul.f32 %v1847, %v2242
  %v2254 = vmul.f32 %v1849, %v2246
  %v2255 = vmul.f32 %v1918, %v2250
  %v2256 = vmul.f32 %v1780, %v2234
  %v2257 = vmul.f32 %v1782, %v2238
  %v2258 = vmul.f32 %v1851, %v2242
  %v2259 = vmul.f32 %v1853, %v2246
  %v2260 = vmul.f32 %v1921, %v2250
  %v2261 = vmul.f32 %v1786, %v2234
  %v2262 = vmul.f32 %v1788, %v2238
  %v2263 = vmul.f32 %v1857, %v2242
  %v2264 = vmul.f32 %v1859, %v2246
  %v2265 = vmul.f32 %v1926, %v2250
  %v2266 = vmul.f32 %v1790, %v2234
  %v2267 = vmul.f32 %v1792, %v2238
  %v2268 = vmul.f32 %v1861, %v2242
  %v2269 = vmul.f32 %v1863, %v2246
  %v2270 = vmul.f32 %v1929, %v2250
  %v2271 = vmul.f32 %v1796, %v2234
  %v2272 = vmul.f32 %v1798, %v2238
  %v2273 = vmul.f32 %v1867, %v2242
  %v2274 = vmul.f32 %v1869, %v2246
  %v2275 = vmul.f32 %v1934, %v2250
  %v2276 = vmul.f32 %v1800, %v2234
  %v2277 = vmul.f32 %v1802, %v2238
  %v2278 = vmul.f32 %v1871, %v2242
  %v2279 = vmul.f32 %v1873, %v2246
  %v2280 = vmul.f32 %v1937, %v2250
  %v2281 = vmul.f32 %v1806, %v2234
  %v2282 = vmul.f32 %v1808, %v2238
  %v2283 = vmul.f32 %v1877, %v2242
  %v2284 = vmul.f32 %v1879, %v2246
  %v2285 = vmul.f32 %v1942, %v2250
  %v2287 = vlaneseq
  %v2288 = vshrl.u32 %v2287, 7
  %v2289 = vsub.s32 0, %v2288
  %v2290 = vrot.slane %v2230, %v2289
  %v2291 = vlaneseq
  %v2292 = vshrl.u32 %v2291, 7
  %v2293 = vsub.s32 1, %v2292
  %v2294 = vrot.slane %v2230, %v2293
  %v2295 = vlaneseq
  %v2296 = vshrl.u32 %v2295, 7
  %v2297 = vsub.s32 2, %v2296
  %v2298 = vrot.slane %v2230, %v2297
  %v2299 = vlaneseq
  %v2300 = vshrl.u32 %v2299, 7
  %v2301 = vsub.s32 3, %v2300
  %v2302 = vrot.slane %v2230, %v2301
  %v2303 = vlaneseq
  %v2304 = vshrl.u32 %v2303, 7
  %v2305 = vsub.s32 4, %v2304
  %v2306 = vrot.slane %v2230, %v2305
  %v2312 = vadd.f32 %v2251, %v2290
  %v2313 = vadd.f32 %v2252, %v2294
  %v2314 = vadd.f32 %v2253, %v2298
  %v2315 = vadd.f32 %v2254, %v2302
  %v2316 = vadd.f32 %v2255, %v2306
  %v2317 = vadd.f32 %v2256, %v2290
  %v2318 = vadd.f32 %v2257, %v2294
  %v2319 = vadd.f32 %v2258, %v2298
  %v2320 = vadd.f32 %v2259, %v2302
  %v2321 = vadd.f32 %v2260, %v2306
  %v2322 = vadd.f32 %v2261, %v2290
  %v2323 = vadd.f32 %v2262, %v2294
  %v2324 = vadd.f32 %v2263, %v2298
  %v2325 = vadd.f32 %v2264, %v2302
  %v2326 = vadd.f32 %v2265, %v2306
  %v2327 = vadd.f32 %v2266, %v2290
  %v2328 = vadd.f32 %v2267, %v2294
  %v2329 = vadd.f32 %v2268, %v2298
  %v2330 = vadd.f32 %v2269, %v2302
  %v2331 = vadd.f32 %v2270, %v2306
  %v2332 = vadd.f32 %v2271, %v2290
  %v2333 = vadd.f32 %v2272, %v2294
  %v2334 = vadd.f32 %v2273, %v2298
  %v2335 = vadd.f32 %v2274, %v2302
  %v2336 = vadd.f32 %v2275, %v2306
  %v2337 = vadd.f32 %v2276, %v2290
  %v2338 = vadd.f32 %v2277, %v2294
  %v2339 = vadd.f32 %v2278, %v2298
  %v2340 = vadd.f32 %v2279, %v2302
  %v2341 = vadd.f32 %v2280, %v2306
  %v2342 = vadd.f32 %v2281, %v2290
  %v2343 = vadd.f32 %v2282, %v2294
  %v2344 = vadd.f32 %v2283, %v2298
  %v2345 = vadd.f32 %v2284, %v2302
  %v2346 = vadd.f32 %v2285, %v2306
  %v2347 = vmax.f32 %v2312, 0.0
  %v2348 = vmax.f32 %v2313, 0.0
  %v2349 = vmax.f32 %v2314, 0.0
  %v2350 = vmax.f32 %v2315, 0.0
  %v2351 = vmax.f32 %v2316, 0.0
  %v2352 = vmax.f32 %v2317, 0.0
  %v2353 = vmax.f32 %v2318, 0.0
  %v2354 = vmax.f32 %v2319, 0.0
  %v2355 = vmax.f32 %v2320, 0.0
  %v2356 = vmax.f32 %v2321, 0.0
  %v2357 = vmax.f32 %v2322, 0.0
  %v2358 = vmax.f32 %v2323, 0.0
  %v2359 = vmax.f32 %v2324, 0.0
  %v2360 = vmax.f32 %v2325, 0.0
  %v2361 = vmax.f32 %v2326, 0.0
  %v2362 = vmax.f32 %v2327, 0.0
  %v2363 = vmax.f32 %v2328, 0.0
  %v2364 = vmax.f32 %v2329, 0.0
  %v2365 = vmax.f32 %v2330, 0.0
  %v2366 = vmax.f32 %v2331, 0.0
  %v2367 = vmax.f32 %v2332, 0.0
  %v2368 = vmax.f32 %v2333, 0.0
  %v2369 = vmax.f32 %v2334, 0.0
  %v2370 = vmax.f32 %v2335, 0.0
  %v2371 = vmax.f32 %v2336, 0.0
  %v2372 = vmax.f32 %v2337, 0.0
  %v2373 = vmax.f32 %v2338, 0.0
  %v2374 = vmax.f32 %v2339, 0.0
  %v2375 = vmax.f32 %v2340, 0.0
  %v2376 = vmax.f32 %v2341, 0.0
  %v2377 = vmax.f32 %v2342, 0.0
  %v2378 = vmax.f32 %v2343, 0.0
  %v2379 = vmax.f32 %v2344, 0.0
  %v2380 = vmax.f32 %v2345, 0.0
  %v2381 = vmax.f32 %v2346, 0.0
  %v2382 = vld [vmem:[%s5] sm:$0xff]
  %v2383 = vld [vmem:[%s5 + $0x8] sm:$0xff]
  %v2384 = vld [vmem:[%s5 + $0x10] sm:$0xff]
  %v2385 = vld [vmem:[%s5 + $0x18] sm:$0xff]
  %v2386 = vld [vmem:[%s5 + $0x20] sm:$0xff]
  %v2387 = vld [vmem:[%s5 + $0x28] sm:$0x1]
  %v2388 = vld [vmem:[%s5 + $0x30] sm:$0x1]
  %v2389 = vld [vmem:[%s5 + $0x38] sm:$0x1]
  %v2390 = vld [vmem:[%s5 + $0x40] sm:$0x1]
  %v2391 = vld [vmem:[%s5 + $0x48] sm:$0x1]
  %v2392 = vlaneseq
  %v2393 = vshrl.u32 %v2392, 7
  %v2394 = vsub.s32 0, %v2393
  %v2395 = vrot.slane %v2382, %v2394
  %v2396 = vlaneseq
  %v2397 = vshrl.u32 %v2396, 7
  %v2398 = vsub.s32 0, %v2397
  %v2399 = vrot.slane %v2383, %v2398
  %v2400 = vlaneseq
  %v2401 = vshrl.u32 %v2400, 7
  %v2402 = vsub.s32 0, %v2401
  %v2403 = vrot.slane %v2384, %v2402
  %v2404 = vlaneseq
  %v2405 = vshrl.u32 %v2404, 7
  %v2406 = vsub.s32 0, %v2405
  %v2407 = vrot.slane %v2385, %v2406
  %v2408 = vlaneseq
  %v2409 = vshrl.u32 %v2408, 7
  %v2410 = vsub.s32 0, %v2409
  %v2411 = vrot.slane %v2386, %v2410
  %v2412 = vmul.f32 %v2347, %v2395
  %v2413 = vmul.f32 %v2348, %v2399
  %v2414 = vmul.f32 %v2349, %v2403
  %v2415 = vmul.f32 %v2350, %v2407
  %v2416 = vmul.f32 %v2351, %v2411
  %v2417 = vmul.f32 %v2352, %v2395
  %v2418 = vmul.f32 %v2353, %v2399
  %v2419 = vmul.f32 %v2354, %v2403
  %v2420 = vmul.f32 %v2355, %v2407
  %v2421 = vmul.f32 %v2356, %v2411
  %v2422 = vmul.f32 %v2357, %v2395
  %v2423 = vmul.f32 %v2358, %v2399
  %v2424 = vmul.f32 %v2359, %v2403
  %v2425 = vmul.f32 %v2360, %v2407
  %v2426 = vmul.f32 %v2361, %v2411
  %v2427 = vmul.f32 %v2362, %v2395
  %v2428 = vmul.f32 %v2363, %v2399
  %v2429 = vmul.f32 %v2364, %v2403
  %v2430 = vmul.f32 %v2365, %v2407
  %v2431 = vmul.f32 %v2366, %v2411
  %v2432 = vmul.f32 %v2367, %v2395
  %v2433 = vmul.f32 %v2368, %v2399
  %v2434 = vmul.f32 %v2369, %v2403
  %v2435 = vmul.f32 %v2370, %v2407
  %v2436 = vmul.f32 %v2371, %v2411
  %v2437 = vmul.f32 %v2372, %v2395
  %v2438 = vmul.f32 %v2373, %v2399
  %v2439 = vmul.f32 %v2374, %v2403
  %v2440 = vmul.f32 %v2375, %v2407
  %v2441 = vmul.f32 %v2376, %v2411
  %v2442 = vmul.f32 %v2377, %v2395
  %v2443 = vmul.f32 %v2378, %v2399
  %v2444 = vmul.f32 %v2379, %v2403
  %v2445 = vmul.f32 %v2380, %v2407
  %v2446 = vmul.f32 %v2381, %v2411
  %v2447 = vlaneseq
  %v2448 = vshrl.u32 %v2447, 7
  %v2449 = vsub.s32 1, %v2448
  %v2450 = vrot.slane %v2382, %v2449
  %v2451 = vlaneseq
  %v2452 = vshrl.u32 %v2451, 7
  %v2453 = vsub.s32 1, %v2452
  %v2454 = vrot.slane %v2383, %v2453
  %v2455 = vlaneseq
  %v2456 = vshrl.u32 %v2455, 7
  %v2457 = vsub.s32 1, %v2456
  %v2458 = vrot.slane %v2384, %v2457
  %v2459 = vlaneseq
  %v2460 = vshrl.u32 %v2459, 7
  %v2461 = vsub.s32 1, %v2460
  %v2462 = vrot.slane %v2385, %v2461
  %v2463 = vlaneseq
  %v2464 = vshrl.u32 %v2463, 7
  %v2465 = vsub.s32 1, %v2464
  %v2466 = vrot.slane %v2386, %v2465
  %v2467 = vmul.f32 %v2347, %v2450
  %v2468 = vmul.f32 %v2348, %v2454
  %v2469 = vmul.f32 %v2349, %v2458
  %v2470 = vmul.f32 %v2350, %v2462
  %v2471 = vmul.f32 %v2351, %v2466
  %v2472 = vmul.f32 %v2352, %v2450
  %v2473 = vmul.f32 %v2353, %v2454
  %v2474 = vmul.f32 %v2354, %v2458
  %v2475 = vmul.f32 %v2355, %v2462
  %v2476 = vmul.f32 %v2356, %v2466
  %v2477 = vmul.f32 %v2357, %v2450
  %v2478 = vmul.f32 %v2358, %v2454
  %v2479 = vmul.f32 %v2359, %v2458
  %v2480 = vmul.f32 %v2360, %v2462
  %v2481 = vmul.f32 %v2361, %v2466
  %v2482 = vmul.f32 %v2362, %v2450
  %v2483 = vmul.f32 %v2363, %v2454
  %v2484 = vmul.f32 %v2364, %v2458
  %v2485 = vmul.f32 %v2365, %v2462
  %v2486 = vmul.f32 %v2366, %v2466
  %v2487 = vmul.f32 %v2367, %v2450
  %v2488 = vmul.f32 %v2368, %v2454
  %v2489 = vmul.f32 %v2369, %v2458
  %v2490 = vmul.f32 %v2370, %v2462
  %v2491 = vmul.f32 %v2371, %v2466
  %v2492 = vmul.f32 %v2372, %v2450
  %v2493 = vmul.f32 %v2373, %v2454
  %v2494 = vmul.f32 %v2374, %v2458
  %v2495 = vmul.f32 %v2375, %v2462
  %v2496 = vmul.f32 %v2376, %v2466
  %v2497 = vmul.f32 %v2377, %v2450
  %v2498 = vmul.f32 %v2378, %v2454
  %v2499 = vmul.f32 %v2379, %v2458
  %v2500 = vmul.f32 %v2380, %v2462
  %v2501 = vmul.f32 %v2381, %v2466
  %v2502 = vlaneseq
  %v2503 = vshrl.u32 %v2502, 7
  %v2504 = vsub.s32 2, %v2503
  %v2505 = vrot.slane %v2382, %v2504
  %v2506 = vlaneseq
  %v2507 = vshrl.u32 %v2506, 7
  %v2508 = vsub.s32 2, %v2507
  %v2509 = vrot.slane %v2383, %v2508
  %v2510 = vlaneseq
  %v2511 = vshrl.u32 %v2510, 7
  %v2512 = vsub.s32 2, %v2511
  %v2513 = vrot.slane %v2384, %v2512
  %v2514 = vlaneseq
  %v2515 = vshrl.u32 %v2514, 7
  %v2516 = vsub.s32 2, %v2515
  %v2517 = vrot.slane %v2385, %v2516
  %v2518 = vlaneseq
  %v2519 = vshrl.u32 %v2518, 7
  %v2520 = vsub.s32 2, %v2519
  %v2521 = vrot.slane %v2386, %v2520
  %v2522 = vmul.f32 %v2347, %v2505
  %v2523 = vmul.f32 %v2348, %v2509
  %v2524 = vmul.f32 %v2349, %v2513
  %v2525 = vmul.f32 %v2350, %v2517
  %v2526 = vmul.f32 %v2351, %v2521
  %v2527 = vmul.f32 %v2352, %v2505
  %v2528 = vmul.f32 %v2353, %v2509
  %v2529 = vmul.f32 %v2354, %v2513
  %v2530 = vmul.f32 %v2355, %v2517
  %v2531 = vmul.f32 %v2356, %v2521
  %v2532 = vmul.f32 %v2357, %v2505
  %v2533 = vmul.f32 %v2358, %v2509
  %v2534 = vmul.f32 %v2359, %v2513
  %v2535 = vmul.f32 %v2360, %v2517
  %v2536 = vmul.f32 %v2361, %v2521
  %v2537 = vmul.f32 %v2362, %v2505
  %v2538 = vmul.f32 %v2363, %v2509
  %v2539 = vmul.f32 %v2364, %v2513
  %v2540 = vmul.f32 %v2365, %v2517
  %v2541 = vmul.f32 %v2366, %v2521
  %v2542 = vmul.f32 %v2367, %v2505
  %v2543 = vmul.f32 %v2368, %v2509
  %v2544 = vmul.f32 %v2369, %v2513
  %v2545 = vmul.f32 %v2370, %v2517
  %v2546 = vmul.f32 %v2371, %v2521
  %v2547 = vmul.f32 %v2372, %v2505
  %v2548 = vmul.f32 %v2373, %v2509
  %v2549 = vmul.f32 %v2374, %v2513
  %v2550 = vmul.f32 %v2375, %v2517
  %v2551 = vmul.f32 %v2376, %v2521
  %v2552 = vmul.f32 %v2377, %v2505
  %v2553 = vmul.f32 %v2378, %v2509
  %v2554 = vmul.f32 %v2379, %v2513
  %v2555 = vmul.f32 %v2380, %v2517
  %v2556 = vmul.f32 %v2381, %v2521
  %v2557 = vlaneseq
  %v2558 = vshrl.u32 %v2557, 7
  %v2559 = vsub.s32 3, %v2558
  %v2560 = vrot.slane %v2382, %v2559
  %v2561 = vlaneseq
  %v2562 = vshrl.u32 %v2561, 7
  %v2563 = vsub.s32 3, %v2562
  %v2564 = vrot.slane %v2383, %v2563
  %v2565 = vlaneseq
  %v2566 = vshrl.u32 %v2565, 7
  %v2567 = vsub.s32 3, %v2566
  %v2568 = vrot.slane %v2384, %v2567
  %v2569 = vlaneseq
  %v2570 = vshrl.u32 %v2569, 7
  %v2571 = vsub.s32 3, %v2570
  %v2572 = vrot.slane %v2385, %v2571
  %v2573 = vlaneseq
  %v2574 = vshrl.u32 %v2573, 7
  %v2575 = vsub.s32 3, %v2574
  %v2576 = vrot.slane %v2386, %v2575
  %v2577 = vmul.f32 %v2347, %v2560
  %v2578 = vmul.f32 %v2348, %v2564
  %v2579 = vmul.f32 %v2349, %v2568
  %v2580 = vmul.f32 %v2350, %v2572
  %v2581 = vmul.f32 %v2351, %v2576
  %v2582 = vmul.f32 %v2352, %v2560
  %v2583 = vmul.f32 %v2353, %v2564
  %v2584 = vmul.f32 %v2354, %v2568
  %v2585 = vmul.f32 %v2355, %v2572
  %v2586 = vmul.f32 %v2356, %v2576
  %v2587 = vmul.f32 %v2357, %v2560
  %v2588 = vmul.f32 %v2358, %v2564
  %v2589 = vmul.f32 %v2359, %v2568
  %v2590 = vmul.f32 %v2360, %v2572
  %v2591 = vmul.f32 %v2361, %v2576
  %v2592 = vmul.f32 %v2362, %v2560
  %v2593 = vmul.f32 %v2363, %v2564
  %v2594 = vmul.f32 %v2364, %v2568
  %v2595 = vmul.f32 %v2365, %v2572
  %v2596 = vmul.f32 %v2366, %v2576
  %v2597 = vmul.f32 %v2367, %v2560
  %v2598 = vmul.f32 %v2368, %v2564
  %v2599 = vmul.f32 %v2369, %v2568
  %v2600 = vmul.f32 %v2370, %v2572
  %v2601 = vmul.f32 %v2371, %v2576
  %v2602 = vmul.f32 %v2372, %v2560
  %v2603 = vmul.f32 %v2373, %v2564
  %v2604 = vmul.f32 %v2374, %v2568
  %v2605 = vmul.f32 %v2375, %v2572
  %v2606 = vmul.f32 %v2376, %v2576
  %v2607 = vmul.f32 %v2377, %v2560
  %v2608 = vmul.f32 %v2378, %v2564
  %v2609 = vmul.f32 %v2379, %v2568
  %v2610 = vmul.f32 %v2380, %v2572
  %v2611 = vmul.f32 %v2381, %v2576
  %v2612 = vlaneseq
  %v2613 = vshrl.u32 %v2612, 7
  %v2614 = vsub.s32 4, %v2613
  %v2615 = vrot.slane %v2382, %v2614
  %v2616 = vlaneseq
  %v2617 = vshrl.u32 %v2616, 7
  %v2618 = vsub.s32 4, %v2617
  %v2619 = vrot.slane %v2383, %v2618
  %v2620 = vlaneseq
  %v2621 = vshrl.u32 %v2620, 7
  %v2622 = vsub.s32 4, %v2621
  %v2623 = vrot.slane %v2384, %v2622
  %v2624 = vlaneseq
  %v2625 = vshrl.u32 %v2624, 7
  %v2626 = vsub.s32 4, %v2625
  %v2627 = vrot.slane %v2385, %v2626
  %v2628 = vlaneseq
  %v2629 = vshrl.u32 %v2628, 7
  %v2630 = vsub.s32 4, %v2629
  %v2631 = vrot.slane %v2386, %v2630
  %v2632 = vmul.f32 %v2347, %v2615
  %v2633 = vmul.f32 %v2348, %v2619
  %v2634 = vmul.f32 %v2349, %v2623
  %v2635 = vmul.f32 %v2350, %v2627
  %v2636 = vmul.f32 %v2351, %v2631
  %v2637 = vmul.f32 %v2352, %v2615
  %v2638 = vmul.f32 %v2353, %v2619
  %v2639 = vmul.f32 %v2354, %v2623
  %v2640 = vmul.f32 %v2355, %v2627
  %v2641 = vmul.f32 %v2356, %v2631
  %v2642 = vmul.f32 %v2357, %v2615
  %v2643 = vmul.f32 %v2358, %v2619
  %v2644 = vmul.f32 %v2359, %v2623
  %v2645 = vmul.f32 %v2360, %v2627
  %v2646 = vmul.f32 %v2361, %v2631
  %v2647 = vmul.f32 %v2362, %v2615
  %v2648 = vmul.f32 %v2363, %v2619
  %v2649 = vmul.f32 %v2364, %v2623
  %v2650 = vmul.f32 %v2365, %v2627
  %v2651 = vmul.f32 %v2366, %v2631
  %v2652 = vmul.f32 %v2367, %v2615
  %v2653 = vmul.f32 %v2368, %v2619
  %v2654 = vmul.f32 %v2369, %v2623
  %v2655 = vmul.f32 %v2370, %v2627
  %v2656 = vmul.f32 %v2371, %v2631
  %v2657 = vmul.f32 %v2372, %v2615
  %v2658 = vmul.f32 %v2373, %v2619
  %v2659 = vmul.f32 %v2374, %v2623
  %v2660 = vmul.f32 %v2375, %v2627
  %v2661 = vmul.f32 %v2376, %v2631
  %v2662 = vmul.f32 %v2377, %v2615
  %v2663 = vmul.f32 %v2378, %v2619
  %v2664 = vmul.f32 %v2379, %v2623
  %v2665 = vmul.f32 %v2380, %v2627
  %v2666 = vmul.f32 %v2381, %v2631
  %v2667 = vlaneseq
  %v2668 = vshrl.u32 %v2667, 7
  %v2669 = vsub.s32 5, %v2668
  %v2670 = vrot.slane %v2382, %v2669
  %v2671 = vlaneseq
  %v2672 = vshrl.u32 %v2671, 7
  %v2673 = vsub.s32 5, %v2672
  %v2674 = vrot.slane %v2383, %v2673
  %v2675 = vlaneseq
  %v2676 = vshrl.u32 %v2675, 7
  %v2677 = vsub.s32 5, %v2676
  %v2678 = vrot.slane %v2384, %v2677
  %v2679 = vlaneseq
  %v2680 = vshrl.u32 %v2679, 7
  %v2681 = vsub.s32 5, %v2680
  %v2682 = vrot.slane %v2385, %v2681
  %v2683 = vlaneseq
  %v2684 = vshrl.u32 %v2683, 7
  %v2685 = vsub.s32 5, %v2684
  %v2686 = vrot.slane %v2386, %v2685
  %v2687 = vmul.f32 %v2347, %v2670
  %v2688 = vmul.f32 %v2348, %v2674
  %v2689 = vmul.f32 %v2349, %v2678
  %v2690 = vmul.f32 %v2350, %v2682
  %v2691 = vmul.f32 %v2351, %v2686
  %v2692 = vmul.f32 %v2352, %v2670
  %v2693 = vmul.f32 %v2353, %v2674
  %v2694 = vmul.f32 %v2354, %v2678
  %v2695 = vmul.f32 %v2355, %v2682
  %v2696 = vmul.f32 %v2356, %v2686
  %v2697 = vmul.f32 %v2357, %v2670
  %v2698 = vmul.f32 %v2358, %v2674
  %v2699 = vmul.f32 %v2359, %v2678
  %v2700 = vmul.f32 %v2360, %v2682
  %v2701 = vmul.f32 %v2361, %v2686
  %v2702 = vmul.f32 %v2362, %v2670
  %v2703 = vmul.f32 %v2363, %v2674
  %v2704 = vmul.f32 %v2364, %v2678
  %v2705 = vmul.f32 %v2365, %v2682
  %v2706 = vmul.f32 %v2366, %v2686
  %v2707 = vmul.f32 %v2367, %v2670
  %v2708 = vmul.f32 %v2368, %v2674
  %v2709 = vmul.f32 %v2369, %v2678
  %v2710 = vmul.f32 %v2370, %v2682
  %v2711 = vmul.f32 %v2371, %v2686
  %v2712 = vmul.f32 %v2372, %v2670
  %v2713 = vmul.f32 %v2373, %v2674
  %v2714 = vmul.f32 %v2374, %v2678
  %v2715 = vmul.f32 %v2375, %v2682
  %v2716 = vmul.f32 %v2376, %v2686
  %v2717 = vmul.f32 %v2377, %v2670
  %v2718 = vmul.f32 %v2378, %v2674
  %v2719 = vmul.f32 %v2379, %v2678
  %v2720 = vmul.f32 %v2380, %v2682
  %v2721 = vmul.f32 %v2381, %v2686
  %v2722 = vlaneseq
  %v2723 = vshrl.u32 %v2722, 7
  %v2724 = vsub.s32 6, %v2723
  %v2725 = vrot.slane %v2382, %v2724
  %v2726 = vlaneseq
  %v2727 = vshrl.u32 %v2726, 7
  %v2728 = vsub.s32 6, %v2727
  %v2729 = vrot.slane %v2383, %v2728
  %v2730 = vlaneseq
  %v2731 = vshrl.u32 %v2730, 7
  %v2732 = vsub.s32 6, %v2731
  %v2733 = vrot.slane %v2384, %v2732
  %v2734 = vlaneseq
  %v2735 = vshrl.u32 %v2734, 7
  %v2736 = vsub.s32 6, %v2735
  %v2737 = vrot.slane %v2385, %v2736
  %v2738 = vlaneseq
  %v2739 = vshrl.u32 %v2738, 7
  %v2740 = vsub.s32 6, %v2739
  %v2741 = vrot.slane %v2386, %v2740
  %v2742 = vmul.f32 %v2347, %v2725
  %v2743 = vmul.f32 %v2348, %v2729
  %v2744 = vmul.f32 %v2349, %v2733
  %v2745 = vmul.f32 %v2350, %v2737
  %v2746 = vmul.f32 %v2351, %v2741
  %v2747 = vmul.f32 %v2352, %v2725
  %v2748 = vmul.f32 %v2353, %v2729
  %v2749 = vmul.f32 %v2354, %v2733
  %v2750 = vmul.f32 %v2355, %v2737
  %v2751 = vmul.f32 %v2356, %v2741
  %v2752 = vmul.f32 %v2357, %v2725
  %v2753 = vmul.f32 %v2358, %v2729
  %v2754 = vmul.f32 %v2359, %v2733
  %v2755 = vmul.f32 %v2360, %v2737
  %v2756 = vmul.f32 %v2361, %v2741
  %v2757 = vmul.f32 %v2362, %v2725
  %v2758 = vmul.f32 %v2363, %v2729
  %v2759 = vmul.f32 %v2364, %v2733
  %v2760 = vmul.f32 %v2365, %v2737
  %v2761 = vmul.f32 %v2366, %v2741
  %v2762 = vmul.f32 %v2367, %v2725
  %v2763 = vmul.f32 %v2368, %v2729
  %v2764 = vmul.f32 %v2369, %v2733
  %v2765 = vmul.f32 %v2370, %v2737
  %v2766 = vmul.f32 %v2371, %v2741
  %v2767 = vmul.f32 %v2372, %v2725
  %v2768 = vmul.f32 %v2373, %v2729
  %v2769 = vmul.f32 %v2374, %v2733
  %v2770 = vmul.f32 %v2375, %v2737
  %v2771 = vmul.f32 %v2376, %v2741
  %v2772 = vmul.f32 %v2377, %v2725
  %v2773 = vmul.f32 %v2378, %v2729
  %v2774 = vmul.f32 %v2379, %v2733
  %v2775 = vmul.f32 %v2380, %v2737
  %v2776 = vmul.f32 %v2381, %v2741
  %v2777 = vlaneseq
  %v2778 = vshrl.u32 %v2777, 7
  %v2779 = vsub.s32 7, %v2778
  %v2780 = vrot.slane %v2382, %v2779
  %v2781 = vlaneseq
  %v2782 = vshrl.u32 %v2781, 7
  %v2783 = vsub.s32 7, %v2782
  %v2784 = vrot.slane %v2383, %v2783
  %v2785 = vlaneseq
  %v2786 = vshrl.u32 %v2785, 7
  %v2787 = vsub.s32 7, %v2786
  %v2788 = vrot.slane %v2384, %v2787
  %v2789 = vlaneseq
  %v2790 = vshrl.u32 %v2789, 7
  %v2791 = vsub.s32 7, %v2790
  %v2792 = vrot.slane %v2385, %v2791
  %v2793 = vlaneseq
  %v2794 = vshrl.u32 %v2793, 7
  %v2795 = vsub.s32 7, %v2794
  %v2796 = vrot.slane %v2386, %v2795
  %v2797 = vmul.f32 %v2347, %v2780
  %v2798 = vmul.f32 %v2348, %v2784
  %v2799 = vmul.f32 %v2349, %v2788
  %v2800 = vmul.f32 %v2350, %v2792
  %v2801 = vmul.f32 %v2351, %v2796
  %v2802 = vmul.f32 %v2352, %v2780
  %v2803 = vmul.f32 %v2353, %v2784
  %v2804 = vmul.f32 %v2354, %v2788
  %v2805 = vmul.f32 %v2355, %v2792
  %v2806 = vmul.f32 %v2356, %v2796
  %v2807 = vmul.f32 %v2357, %v2780
  %v2808 = vmul.f32 %v2358, %v2784
  %v2809 = vmul.f32 %v2359, %v2788
  %v2810 = vmul.f32 %v2360, %v2792
  %v2811 = vmul.f32 %v2361, %v2796
  %v2812 = vmul.f32 %v2362, %v2780
  %v2813 = vmul.f32 %v2363, %v2784
  %v2814 = vmul.f32 %v2364, %v2788
  %v2815 = vmul.f32 %v2365, %v2792
  %v2816 = vmul.f32 %v2366, %v2796
  %v2817 = vmul.f32 %v2367, %v2780
  %v2818 = vmul.f32 %v2368, %v2784
  %v2819 = vmul.f32 %v2369, %v2788
  %v2820 = vmul.f32 %v2370, %v2792
  %v2821 = vmul.f32 %v2371, %v2796
  %v2822 = vmul.f32 %v2372, %v2780
  %v2823 = vmul.f32 %v2373, %v2784
  %v2824 = vmul.f32 %v2374, %v2788
  %v2825 = vmul.f32 %v2375, %v2792
  %v2826 = vmul.f32 %v2376, %v2796
  %v2827 = vmul.f32 %v2377, %v2780
  %v2828 = vmul.f32 %v2378, %v2784
  %v2829 = vmul.f32 %v2379, %v2788
  %v2830 = vmul.f32 %v2380, %v2792
  %v2831 = vmul.f32 %v2381, %v2796
  %v2832 = vlaneseq
  %v2833 = vshrl.u32 %v2832, 7
  %v2834 = vsub.s32 0, %v2833
  %v2835 = vrot.slane %v2387, %v2834
  %v2836 = vlaneseq
  %v2837 = vshrl.u32 %v2836, 7
  %v2838 = vsub.s32 0, %v2837
  %v2839 = vrot.slane %v2388, %v2838
  %v2840 = vlaneseq
  %v2841 = vshrl.u32 %v2840, 7
  %v2842 = vsub.s32 0, %v2841
  %v2843 = vrot.slane %v2389, %v2842
  %v2844 = vlaneseq
  %v2845 = vshrl.u32 %v2844, 7
  %v2846 = vsub.s32 0, %v2845
  %v2847 = vrot.slane %v2390, %v2846
  %v2848 = vlaneseq
  %v2849 = vshrl.u32 %v2848, 7
  %v2850 = vsub.s32 0, %v2849
  %v2851 = vrot.slane %v2391, %v2850
  %v2852 = vmul.f32 %v2347, %v2835
  %v2853 = vmul.f32 %v2348, %v2839
  %v2854 = vmul.f32 %v2349, %v2843
  %v2855 = vmul.f32 %v2350, %v2847
  %v2856 = vmul.f32 %v2351, %v2851
  %v2857 = vmul.f32 %v2352, %v2835
  %v2858 = vmul.f32 %v2353, %v2839
  %v2859 = vmul.f32 %v2354, %v2843
  %v2860 = vmul.f32 %v2355, %v2847
  %v2861 = vmul.f32 %v2356, %v2851
  %v2862 = vmul.f32 %v2357, %v2835
  %v2863 = vmul.f32 %v2358, %v2839
  %v2864 = vmul.f32 %v2359, %v2843
  %v2865 = vmul.f32 %v2360, %v2847
  %v2866 = vmul.f32 %v2361, %v2851
  %v2867 = vmul.f32 %v2362, %v2835
  %v2868 = vmul.f32 %v2363, %v2839
  %v2869 = vmul.f32 %v2364, %v2843
  %v2870 = vmul.f32 %v2365, %v2847
  %v2871 = vmul.f32 %v2366, %v2851
  %v2872 = vmul.f32 %v2367, %v2835
  %v2873 = vmul.f32 %v2368, %v2839
  %v2874 = vmul.f32 %v2369, %v2843
  %v2875 = vmul.f32 %v2370, %v2847
  %v2876 = vmul.f32 %v2371, %v2851
  %v2877 = vmul.f32 %v2372, %v2835
  %v2878 = vmul.f32 %v2373, %v2839
  %v2879 = vmul.f32 %v2374, %v2843
  %v2880 = vmul.f32 %v2375, %v2847
  %v2881 = vmul.f32 %v2376, %v2851
  %v2882 = vmul.f32 %v2377, %v2835
  %v2883 = vmul.f32 %v2378, %v2839
  %v2884 = vmul.f32 %v2379, %v2843
  %v2885 = vmul.f32 %v2380, %v2847
  %v2886 = vmul.f32 %v2381, %v2851
  %v2887 = vpack.c.bf16 %v2417, %v2412
  %v2888 = vpack.c.bf16 %v2418, %v2413
  %v2889 = vpack.c.bf16 %v2419, %v2414
  %v2890 = vpack.c.bf16 %v2420, %v2415
  %v2891 = vpack.c.bf16 %v2421, %v2416
  %v2892 = vpack.c.bf16 %v2427, %v2422
  %v2893 = vpack.c.bf16 %v2428, %v2423
  %v2894 = vpack.c.bf16 %v2429, %v2424
  %v2895 = vpack.c.bf16 %v2430, %v2425
  %v2896 = vpack.c.bf16 %v2431, %v2426
  %v2897 = vpack.c.bf16 %v2437, %v2432
  %v2898 = vpack.c.bf16 %v2438, %v2433
  %v2899 = vpack.c.bf16 %v2439, %v2434
  %v2900 = vpack.c.bf16 %v2440, %v2435
  %v2901 = vpack.c.bf16 %v2441, %v2436
  %v2902 = vpack.c.bf16 %v2467, %v2442
  %v2903 = vpack.c.bf16 %v2468, %v2443
  %v2904 = vpack.c.bf16 %v2469, %v2444
  %v2905 = vpack.c.bf16 %v2470, %v2445
  %v2906 = vpack.c.bf16 %v2471, %v2446
  %v2907 = vpack.c.bf16 %v2477, %v2472
  %v2908 = vpack.c.bf16 %v2478, %v2473
  %v2909 = vpack.c.bf16 %v2479, %v2474
  %v2910 = vpack.c.bf16 %v2480, %v2475
  %v2911 = vpack.c.bf16 %v2481, %v2476
  %v2912 = vpack.c.bf16 %v2487, %v2482
  %v2913 = vpack.c.bf16 %v2488, %v2483
  %v2914 = vpack.c.bf16 %v2489, %v2484
  %v2915 = vpack.c.bf16 %v2490, %v2485
  %v2916 = vpack.c.bf16 %v2491, %v2486
  %v2917 = vpack.c.bf16 %v2497, %v2492
  %v2918 = vpack.c.bf16 %v2498, %v2493
  %v2919 = vpack.c.bf16 %v2499, %v2494
  %v2920 = vpack.c.bf16 %v2500, %v2495
  %v2921 = vpack.c.bf16 %v2501, %v2496
  %v2922 = vpack.c.bf16 %v2527, %v2522
  %v2923 = vpack.c.bf16 %v2528, %v2523
  %v2924 = vpack.c.bf16 %v2529, %v2524
  %v2925 = vpack.c.bf16 %v2530, %v2525
  %v2926 = vpack.c.bf16 %v2531, %v2526
  %v2927 = vpack.c.bf16 %v2537, %v2532
  %v2928 = vpack.c.bf16 %v2538, %v2533
  %v2929 = vpack.c.bf16 %v2539, %v2534
  %v2930 = vpack.c.bf16 %v2540, %v2535
  %v2931 = vpack.c.bf16 %v2541, %v2536
  %v2932 = vpack.c.bf16 %v2547, %v2542
  %v2933 = vpack.c.bf16 %v2548, %v2543
  %v2934 = vpack.c.bf16 %v2549, %v2544
  %v2935 = vpack.c.bf16 %v2550, %v2545
  %v2936 = vpack.c.bf16 %v2551, %v2546
  %v2937 = vpack.c.bf16 %v2577, %v2552
  %v2938 = vpack.c.bf16 %v2578, %v2553
  %v2939 = vpack.c.bf16 %v2579, %v2554
  %v2940 = vpack.c.bf16 %v2580, %v2555
  %v2941 = vpack.c.bf16 %v2581, %v2556
  %v2942 = vpack.c.bf16 %v2587, %v2582
  %v2943 = vpack.c.bf16 %v2588, %v2583
  %v2944 = vpack.c.bf16 %v2589, %v2584
  %v2945 = vpack.c.bf16 %v2590, %v2585
  %v2946 = vpack.c.bf16 %v2591, %v2586
  %v2947 = vpack.c.bf16 %v2597, %v2592
  %v2948 = vpack.c.bf16 %v2598, %v2593
  %v2949 = vpack.c.bf16 %v2599, %v2594
  %v2950 = vpack.c.bf16 %v2600, %v2595
  %v2951 = vpack.c.bf16 %v2601, %v2596
  %v2952 = vpack.c.bf16 %v2607, %v2602
  %v2953 = vpack.c.bf16 %v2608, %v2603
  %v2954 = vpack.c.bf16 %v2609, %v2604
  %v2955 = vpack.c.bf16 %v2610, %v2605
  %v2956 = vpack.c.bf16 %v2611, %v2606
  %v2957 = vpack.c.bf16 %v2637, %v2632
  %v2958 = vpack.c.bf16 %v2638, %v2633
  %v2959 = vpack.c.bf16 %v2639, %v2634
  %v2960 = vpack.c.bf16 %v2640, %v2635
  %v2961 = vpack.c.bf16 %v2641, %v2636
  %v2962 = vpack.c.bf16 %v2647, %v2642
  %v2963 = vpack.c.bf16 %v2648, %v2643
  %v2964 = vpack.c.bf16 %v2649, %v2644
  %v2965 = vpack.c.bf16 %v2650, %v2645
  %v2966 = vpack.c.bf16 %v2651, %v2646
  %v2967 = vpack.c.bf16 %v2657, %v2652
  %v2968 = vpack.c.bf16 %v2658, %v2653
  %v2969 = vpack.c.bf16 %v2659, %v2654
  %v2970 = vpack.c.bf16 %v2660, %v2655
  %v2971 = vpack.c.bf16 %v2661, %v2656
  %v2972 = vpack.c.bf16 %v2687, %v2662
  %v2973 = vpack.c.bf16 %v2688, %v2663
  %v2974 = vpack.c.bf16 %v2689, %v2664
  %v2975 = vpack.c.bf16 %v2690, %v2665
  %v2976 = vpack.c.bf16 %v2691, %v2666
  %v2977 = vpack.c.bf16 %v2697, %v2692
  %v2978 = vpack.c.bf16 %v2698, %v2693
  %v2979 = vpack.c.bf16 %v2699, %v2694
  %v2980 = vpack.c.bf16 %v2700, %v2695
  %v2981 = vpack.c.bf16 %v2701, %v2696
  %v2982 = vpack.c.bf16 %v2707, %v2702
  %v2983 = vpack.c.bf16 %v2708, %v2703
  %v2984 = vpack.c.bf16 %v2709, %v2704
  %v2985 = vpack.c.bf16 %v2710, %v2705
  %v2986 = vpack.c.bf16 %v2711, %v2706
  %v2987 = vpack.c.bf16 %v2717, %v2712
  %v2988 = vpack.c.bf16 %v2718, %v2713
  %v2989 = vpack.c.bf16 %v2719, %v2714
  %v2990 = vpack.c.bf16 %v2720, %v2715
  %v2991 = vpack.c.bf16 %v2721, %v2716
  %v2992 = vpack.c.bf16 %v2747, %v2742
  %v2993 = vpack.c.bf16 %v2748, %v2743
  %v2994 = vpack.c.bf16 %v2749, %v2744
  %v2995 = vpack.c.bf16 %v2750, %v2745
  %v2996 = vpack.c.bf16 %v2751, %v2746
  %v2997 = vpack.c.bf16 %v2757, %v2752
  %v2998 = vpack.c.bf16 %v2758, %v2753
  %v2999 = vpack.c.bf16 %v2759, %v2754
  %v3000 = vpack.c.bf16 %v2760, %v2755
  %v3001 = vpack.c.bf16 %v2761, %v2756
  %v3002 = vpack.c.bf16 %v2767, %v2762
  %v3003 = vpack.c.bf16 %v2768, %v2763
  %v3004 = vpack.c.bf16 %v2769, %v2764
  %v3005 = vpack.c.bf16 %v2770, %v2765
  %v3006 = vpack.c.bf16 %v2771, %v2766
  %v3007 = vpack.c.bf16 %v2797, %v2772
  %v3008 = vpack.c.bf16 %v2798, %v2773
  %v3009 = vpack.c.bf16 %v2799, %v2774
  %v3010 = vpack.c.bf16 %v2800, %v2775
  %v3011 = vpack.c.bf16 %v2801, %v2776
  %v3012 = vpack.c.bf16 %v2807, %v2802
  %v3013 = vpack.c.bf16 %v2808, %v2803
  %v3014 = vpack.c.bf16 %v2809, %v2804
  %v3015 = vpack.c.bf16 %v2810, %v2805
  %v3016 = vpack.c.bf16 %v2811, %v2806
  %v3017 = vpack.c.bf16 %v2817, %v2812
  %v3018 = vpack.c.bf16 %v2818, %v2813
  %v3019 = vpack.c.bf16 %v2819, %v2814
  %v3020 = vpack.c.bf16 %v2820, %v2815
  %v3021 = vpack.c.bf16 %v2821, %v2816
  %v3022 = vpack.c.bf16 %v2827, %v2822
  %v3023 = vpack.c.bf16 %v2828, %v2823
  %v3024 = vpack.c.bf16 %v2829, %v2824
  %v3025 = vpack.c.bf16 %v2830, %v2825
  %v3026 = vpack.c.bf16 %v2831, %v2826
  %v3027 = vpack.c.bf16 %v2857, %v2852
  %v3028 = vpack.c.bf16 %v2858, %v2853
  %v3029 = vpack.c.bf16 %v2859, %v2854
  %v3030 = vpack.c.bf16 %v2860, %v2855
  %v3031 = vpack.c.bf16 %v2861, %v2856
  %v3032 = vpack.c.bf16 %v2867, %v2862
  %v3033 = vpack.c.bf16 %v2868, %v2863
  %v3034 = vpack.c.bf16 %v2869, %v2864
  %v3035 = vpack.c.bf16 %v2870, %v2865
  %v3036 = vpack.c.bf16 %v2871, %v2866
  %v3037 = vpack.c.bf16 %v2877, %v2872
  %v3038 = vpack.c.bf16 %v2878, %v2873
  %v3039 = vpack.c.bf16 %v2879, %v2874
  %v3040 = vpack.c.bf16 %v2880, %v2875
  %v3041 = vpack.c.bf16 %v2881, %v2876
  %v3042 = vpack.c.bf16 %v2882, %v2882
  %v3043 = vpack.c.bf16 %v2883, %v2883
  %v3044 = vpack.c.bf16 %v2884, %v2884
  %v3045 = vpack.c.bf16 %v2885, %v2885
  %v3046 = vpack.c.bf16 %v2886, %v2886
  %v3047 = vld [vmem:[%s1] sm:$0xff]
  %v3048 = vld [vmem:[%s1 + $0x8] sm:$0xff]
  %v3049 = vld [vmem:[%s1 + $0x10] sm:$0xff]
  %v3050 = vld [vmem:[%s1 + $0x18] sm:$0xff]
  %v3051 = vld [vmem:[%s1 + $0x20] sm:$0xff]
  %v3052 = vld [vmem:[%s1 + $0x28] sm:$0xff]
  %v3053 = vld [vmem:[%s1 + $0x30] sm:$0xff]
  %v3054 = vld [vmem:[%s1 + $0x38] sm:$0xff]
  %v3055 = vld [vmem:[%s1 + $0x40] sm:$0xff]
  %v3056 = vld [vmem:[%s1 + $0x48] sm:$0xff]
  %v3057 = vld [vmem:[%s1 + $0x50] sm:$0xff]
  %v3058 = vld [vmem:[%s1 + $0x58] sm:$0xff]
  %v3059 = vld [vmem:[%s1 + $0x60] sm:$0xff]
  %v3060 = vld [vmem:[%s1 + $0x68] sm:$0xff]
  %v3075 = vunpack.c.l.b16 %v3047
  %v3076 = vunpack.c.h.b16 %v3047
  %v3077 = vunpack.c.l.b16 %v3048
  %v3078 = vunpack.c.h.b16 %v3048
  %v3079 = vunpack.c.l.b16 %v3049
  %v3080 = vunpack.c.h.b16 %v3049
  %v3081 = vunpack.c.l.b16 %v3050
  %v3082 = vunpack.c.h.b16 %v3050
  %v3083 = vunpack.c.l.b16 %v3051
  %v3084 = vunpack.c.h.b16 %v3051
  %v3085 = vunpack.c.l.b16 %v3052
  %v3086 = vunpack.c.h.b16 %v3052
  %v3087 = vunpack.c.l.b16 %v3053
  %v3088 = vunpack.c.h.b16 %v3053
  %v3089 = vunpack.c.l.b16 %v3054
  %v3090 = vunpack.c.h.b16 %v3054
  %v3091 = vunpack.c.l.b16 %v3055
  %v3092 = vunpack.c.h.b16 %v3055
  %v3093 = vunpack.c.l.b16 %v3056
  %v3094 = vunpack.c.h.b16 %v3056
  %v3095 = vunpack.c.l.b16 %v3057
  %v3096 = vunpack.c.h.b16 %v3057
  %v3097 = vunpack.c.l.b16 %v3058
  %v3098 = vunpack.c.h.b16 %v3058
  %v3099 = vunpack.c.l.b16 %v3059
  %v3100 = vunpack.c.h.b16 %v3059
  %v3101 = vunpack.c.l.b16 %v3060
  %v3102 = vunpack.c.h.b16 %v3060
  %v3103 = vpack.c.b16 %v3079, %v3075
  %v3104 = vpack.c.b16 %v3080, %v3076
  %v3105 = vpack.c.b16 %v3081, %v3077
  %v3106 = vpack.c.b16 %v3082, %v3078
  %v3107 = vpack.c.b16 %v3087, %v3083
  %v3108 = vpack.c.b16 %v3088, %v3084
  %v3109 = vpack.c.b16 %v3089, %v3085
  %v3110 = vpack.c.b16 %v3090, %v3086
  %v3111 = vpack.c.b16 %v3095, %v3091
  %v3112 = vpack.c.b16 %v3096, %v3092
  %v3113 = vpack.c.b16 %v3097, %v3093
  %v3114 = vpack.c.b16 %v3098, %v3094
  %v3115 = vpack.c.b16 %v3099, %v3099
  %v3116 = vpack.c.b16 %v3100, %v3100
  %v3117 = vpack.c.b16 %v3101, %v3101
  %v3118 = vpack.c.b16 %v3102, %v3102
  %vm3131 = vcmask 982016
  %v3133 = vsel %vm3131, %v3106, 0
  %v3136 = vsel %vm3131, %v3110, 0
  %v3139 = vsel %vm3131, %v3114, 0
  %v3142 = vsel %vm3131, %v3118, 0
  %vm3144 = vcmask 1043456
  %v3146 = vsel %vm3144, %v3042, 0
  %v3149 = vsel %vm3144, %v3043, 0
  %v3152 = vsel %vm3144, %v3044, 0
  %v3155 = vsel %vm3144, %v3045, 0
  %v3158 = vsel %vm3144, %v3046, 0
  %3160 = vmatprep.subr.bf16.mxu0 %v2888
  %3161 = vmatpush1.bf16.msra.mxu0 %v2887
  %3162 = vmatprep.subr.bf16.mxu0 %v2893
  %3163 = vmatpush1.bf16.msra.mxu0 %v2892
  %3164 = vmatprep.subr.bf16.mxu0 %v2898
  %3165 = vmatpush1.bf16.msra.mxu0 %v2897
  %3166 = vmatprep.subr.bf16.mxu0 %v2903
  %3167 = vmatpush1.bf16.msra.mxu0 %v2902
  %3168 = vmatprep.subr.bf16.mxu0 %v2908
  %3169 = vmatpush1.bf16.msra.mxu0 %v2907
  %3170 = vmatprep.subr.bf16.mxu0 %v2913
  %3171 = vmatpush1.bf16.msra.mxu0 %v2912
  %3172 = vmatprep.subr.bf16.mxu0 %v2918
  %3173 = vmatpush1.bf16.msra.mxu0 %v2917
  %3174 = vmatprep.subr.bf16.mxu0 %v2923
  %3175 = vmatpush1.bf16.msra.mxu0 %v2922
  %3176 = vmatprep.subr.bf16.mxu0 %v2928
  %3177 = vmatpush1.bf16.msra.mxu0 %v2927
  %3178 = vmatprep.subr.bf16.mxu0 %v2933
  %3179 = vmatpush1.bf16.msra.mxu0 %v2932
  %3180 = vmatprep.subr.bf16.mxu0 %v2938
  %3181 = vmatpush1.bf16.msra.mxu0 %v2937
  %3182 = vmatprep.subr.bf16.mxu0 %v2943
  %3183 = vmatpush1.bf16.msra.mxu0 %v2942
  %3184 = vmatprep.subr.bf16.mxu0 %v2948
  %3185 = vmatpush1.bf16.msra.mxu0 %v2947
  %3186 = vmatprep.subr.bf16.mxu0 %v2953
  %3187 = vmatpush1.bf16.msra.mxu0 %v2952
  %3188 = vmatprep.subr.bf16.mxu0 %v2958
  %3189 = vmatpush1.bf16.msra.mxu0 %v2957
  %3190 = vmatprep.subr.bf16.mxu0 %v2963
  %3191 = vmatpush1.bf16.msra.mxu0 %v2962
  %3192 = vmatprep.mubr.bf16.mxu0 %v3104
  %3193 = vmatmul.mubr.bf16.gmra.mrb[0].mxu0 %v3103
  %v3194 = vpop.f32.mrb[0].mxu0
  %v3195 = vadd.f32 0.0, %v3194
  %v3196 = vpop.f32.mrb[0].mxu0
  %v3197 = vadd.f32 0.0, %v3196
  %v3198 = vpop.f32.mrb[0].mxu0
  %v3199 = vadd.f32 0.0, %v3198
  %v3200 = vpop.f32.mrb[0].mxu0
  %v3201 = vadd.f32 0.0, %v3200
  %3202 = vmatprep.mubr.bf16.mxu0 %v3108
  %3203 = vmatmul.mubr.bf16.gmra.mrb[0].mxu0 %v3107
  %v3204 = vpop.f32.mrb[0].mxu0
  %v3205 = vadd.f32 0.0, %v3204
  %v3206 = vpop.f32.mrb[0].mxu0
  %v3207 = vadd.f32 0.0, %v3206
  %v3208 = vpop.f32.mrb[0].mxu0
  %v3209 = vadd.f32 0.0, %v3208
  %v3210 = vpop.f32.mrb[0].mxu0
  %v3211 = vadd.f32 0.0, %v3210
  %3212 = vmatprep.mubr.bf16.mxu0 %v3112
  %3213 = vmatmul.mubr.bf16.gmra.mrb[0].mxu0 %v3111
  %v3214 = vpop.f32.mrb[0].mxu0
  %v3215 = vadd.f32 0.0, %v3214
  %v3216 = vpop.f32.mrb[0].mxu0
  %v3217 = vadd.f32 0.0, %v3216
  %v3218 = vpop.f32.mrb[0].mxu0
  %v3219 = vadd.f32 0.0, %v3218
  %v3220 = vpop.f32.mrb[0].mxu0
  %v3221 = vadd.f32 0.0, %v3220
  %3222 = vmatprep.mubr.bf16.mxu0 %v3116
  %3223 = vmatmul.mubr.bf16.gmra.mrb[0].mxu0 %v3115
  %v3224 = vpop.f32.mrb[0].mxu0
  %v3225 = vadd.f32 0.0, %v3224
  %v3226 = vpop.f32.mrb[0].mxu0
  %v3227 = vadd.f32 0.0, %v3226
  %v3228 = vpop.f32.mrb[0].mxu0
  %v3229 = vpop.f32.mrb[0].mxu0
  %3230 = vdwg.mxu0
  %3231 = vmatprep.subr.bf16.mxu0 %v2968
  %3232 = vmatpush1.bf16.msra.mxu0 %v2967
  %3233 = vmatprep.subr.bf16.mxu0 %v2973
  %3234 = vmatpush1.bf16.msra.mxu0 %v2972
  %3235 = vmatprep.subr.bf16.mxu0 %v2978
  %3236 = vmatpush1.bf16.msra.mxu0 %v2977
  %3237 = vmatprep.subr.bf16.mxu0 %v2983
  %3238 = vmatpush1.bf16.msra.mxu0 %v2982
  %3239 = vmatprep.subr.bf16.mxu0 %v2988
  %3240 = vmatpush1.bf16.msra.mxu0 %v2987
  %3241 = vmatprep.subr.bf16.mxu0 %v2993
  %3242 = vmatpush1.bf16.msra.mxu0 %v2992
  %3243 = vmatprep.subr.bf16.mxu0 %v2998
  %3244 = vmatpush1.bf16.msra.mxu0 %v2997
  %3245 = vmatprep.subr.bf16.mxu0 %v3003
  %3246 = vmatpush1.bf16.msra.mxu0 %v3002
  %3247 = vmatprep.subr.bf16.mxu0 %v3008
  %3248 = vmatpush1.bf16.msra.mxu0 %v3007
  %3249 = vmatprep.subr.bf16.mxu0 %v3013
  %3250 = vmatpush1.bf16.msra.mxu0 %v3012
  %3251 = vmatprep.subr.bf16.mxu0 %v3018
  %3252 = vmatpush1.bf16.msra.mxu0 %v3017
  %3253 = vmatprep.subr.bf16.mxu0 %v3023
  %3254 = vmatpush1.bf16.msra.mxu0 %v3022
  %3255 = vmatprep.subr.bf16.mxu0 %v3028
  %3256 = vmatpush1.bf16.msra.mxu0 %v3027
  %3257 = vmatprep.subr.bf16.mxu0 %v3033
  %3258 = vmatpush1.bf16.msra.mxu0 %v3032
  %3259 = vmatprep.subr.bf16.mxu0 %v3038
  %3260 = vmatpush1.bf16.msra.mxu0 %v3037
  %3261 = vmatprep.subr.bf16.mxu0 %v3149
  %3262 = vmatpush1.bf16.msra.mxu0 %v3146
  %3263 = vmatprep.mubr.bf16.mxu0 %v3133
  %3264 = vmatmul.mubr.bf16.gmra.mrb[0].mxu0 %v3105
  %v3265 = vpop.f32.mrb[0].mxu0
  %v3266 = vadd.f32 %v3195, %v3265
  %v3267 = vpop.f32.mrb[0].mxu0
  %v3268 = vadd.f32 %v3197, %v3267
  %v3269 = vpop.f32.mrb[0].mxu0
  %v3270 = vadd.f32 %v3199, %v3269
  %v3271 = vpop.f32.mrb[0].mxu0
  %v3272 = vadd.f32 %v3201, %v3271
  %3273 = vmatprep.mubr.bf16.mxu0 %v3136
  %3274 = vmatmul.mubr.bf16.gmra.mrb[0].mxu0 %v3109
  %v3275 = vpop.f32.mrb[0].mxu0
  %v3276 = vadd.f32 %v3205, %v3275
  %v3277 = vpop.f32.mrb[0].mxu0
  %v3278 = vadd.f32 %v3207, %v3277
  %v3279 = vpop.f32.mrb[0].mxu0
  %v3280 = vadd.f32 %v3209, %v3279
  %v3281 = vpop.f32.mrb[0].mxu0
  %v3282 = vadd.f32 %v3211, %v3281
  %3283 = vmatprep.mubr.bf16.mxu0 %v3139
  %3284 = vmatmul.mubr.bf16.gmra.mrb[0].mxu0 %v3113
  %v3285 = vpop.f32.mrb[0].mxu0
  %v3286 = vadd.f32 %v3215, %v3285
  %v3287 = vpop.f32.mrb[0].mxu0
  %v3288 = vadd.f32 %v3217, %v3287
  %v3289 = vpop.f32.mrb[0].mxu0
  %v3290 = vadd.f32 %v3219, %v3289
  %v3291 = vpop.f32.mrb[0].mxu0
  %v3292 = vadd.f32 %v3221, %v3291
  %3293 = vmatprep.mubr.bf16.mxu0 %v3142
  %3294 = vmatmul.mubr.bf16.gmra.mrb[0].mxu0 %v3117
  %v3295 = vpop.f32.mrb[0].mxu0
  %v3296 = vadd.f32 %v3225, %v3295
  %v3297 = vpop.f32.mrb[0].mxu0
  %v3298 = vadd.f32 %v3227, %v3297
  %v3299 = vpop.f32.mrb[0].mxu0
  %v3300 = vpop.f32.mrb[0].mxu0
  %3301 = vdwg.mxu0
  %3302 = vmatprep.subr.bf16.mxu0 %v2890
  %3303 = vmatpush1.bf16.msra.mxu0 %v2889
  %3304 = vmatprep.subr.bf16.mxu0 %v2895
  %3305 = vmatpush1.bf16.msra.mxu0 %v2894
  %3306 = vmatprep.subr.bf16.mxu0 %v2900
  %3307 = vmatpush1.bf16.msra.mxu0 %v2899
  %3308 = vmatprep.subr.bf16.mxu0 %v2905
  %3309 = vmatpush1.bf16.msra.mxu0 %v2904
  %3310 = vmatprep.subr.bf16.mxu0 %v2910
  %3311 = vmatpush1.bf16.msra.mxu0 %v2909
  %3312 = vmatprep.subr.bf16.mxu0 %v2915
  %3313 = vmatpush1.bf16.msra.mxu0 %v2914
  %3314 = vmatprep.subr.bf16.mxu0 %v2920
  %3315 = vmatpush1.bf16.msra.mxu0 %v2919
  %3316 = vmatprep.subr.bf16.mxu0 %v2925
  %3317 = vmatpush1.bf16.msra.mxu0 %v2924
  %3318 = vmatprep.subr.bf16.mxu0 %v2930
  %3319 = vmatpush1.bf16.msra.mxu0 %v2929
  %3320 = vmatprep.subr.bf16.mxu0 %v2935
  %3321 = vmatpush1.bf16.msra.mxu0 %v2934
  %3322 = vmatprep.subr.bf16.mxu0 %v2940
  %3323 = vmatpush1.bf16.msra.mxu0 %v2939
  %3324 = vmatprep.subr.bf16.mxu0 %v2945
  %3325 = vmatpush1.bf16.msra.mxu0 %v2944
  %3326 = vmatprep.subr.bf16.mxu0 %v2950
  %3327 = vmatpush1.bf16.msra.mxu0 %v2949
  %3328 = vmatprep.subr.bf16.mxu0 %v2955
  %3329 = vmatpush1.bf16.msra.mxu0 %v2954
  %3330 = vmatprep.subr.bf16.mxu0 %v2960
  %3331 = vmatpush1.bf16.msra.mxu0 %v2959
  %3332 = vmatprep.subr.bf16.mxu0 %v2965
  %3333 = vmatpush1.bf16.msra.mxu0 %v2964
  %3334 = vmatprep.mubr.bf16.mxu0 %v3104
  %3335 = vmatmul.mubr.bf16.gmra.mrb[0].mxu0 %v3103
  %v3336 = vpop.f32.mrb[0].mxu0
  %v3337 = vadd.f32 0.0, %v3336
  %v3338 = vpop.f32.mrb[0].mxu0
  %v3339 = vadd.f32 0.0, %v3338
  %v3340 = vpop.f32.mrb[0].mxu0
  %v3341 = vadd.f32 0.0, %v3340
  %v3342 = vpop.f32.mrb[0].mxu0
  %v3343 = vadd.f32 0.0, %v3342
  %3344 = vmatprep.mubr.bf16.mxu0 %v3108
  %3345 = vmatmul.mubr.bf16.gmra.mrb[0].mxu0 %v3107
  %v3346 = vpop.f32.mrb[0].mxu0
  %v3347 = vadd.f32 0.0, %v3346
  %v3348 = vpop.f32.mrb[0].mxu0
  %v3349 = vadd.f32 0.0, %v3348
  %v3350 = vpop.f32.mrb[0].mxu0
  %v3351 = vadd.f32 0.0, %v3350
  %v3352 = vpop.f32.mrb[0].mxu0
  %v3353 = vadd.f32 0.0, %v3352
  %3354 = vmatprep.mubr.bf16.mxu0 %v3112
  %3355 = vmatmul.mubr.bf16.gmra.mrb[0].mxu0 %v3111
  %v3356 = vpop.f32.mrb[0].mxu0
  %v3357 = vadd.f32 0.0, %v3356
  %v3358 = vpop.f32.mrb[0].mxu0
  %v3359 = vadd.f32 0.0, %v3358
  %v3360 = vpop.f32.mrb[0].mxu0
  %v3361 = vadd.f32 0.0, %v3360
  %v3362 = vpop.f32.mrb[0].mxu0
  %v3363 = vadd.f32 0.0, %v3362
  %3364 = vmatprep.mubr.bf16.mxu0 %v3116
  %3365 = vmatmul.mubr.bf16.gmra.mrb[0].mxu0 %v3115
  %v3366 = vpop.f32.mrb[0].mxu0
  %v3367 = vadd.f32 0.0, %v3366
  %v3368 = vpop.f32.mrb[0].mxu0
  %v3369 = vadd.f32 0.0, %v3368
  %v3370 = vpop.f32.mrb[0].mxu0
  %v3371 = vpop.f32.mrb[0].mxu0
  %3372 = vdwg.mxu0
  %3373 = vmatprep.subr.bf16.mxu0 %v2970
  %3374 = vmatpush1.bf16.msra.mxu0 %v2969
  %3375 = vmatprep.subr.bf16.mxu0 %v2975
  %3376 = vmatpush1.bf16.msra.mxu0 %v2974
  %3377 = vmatprep.subr.bf16.mxu0 %v2980
  %3378 = vmatpush1.bf16.msra.mxu0 %v2979
  %3379 = vmatprep.subr.bf16.mxu0 %v2985
  %3380 = vmatpush1.bf16.msra.mxu0 %v2984
  %3381 = vmatprep.subr.bf16.mxu0 %v2990
  %3382 = vmatpush1.bf16.msra.mxu0 %v2989
  %3383 = vmatprep.subr.bf16.mxu0 %v2995
  %3384 = vmatpush1.bf16.msra.mxu0 %v2994
  %3385 = vmatprep.subr.bf16.mxu0 %v3000
  %3386 = vmatpush1.bf16.msra.mxu0 %v2999
  %3387 = vmatprep.subr.bf16.mxu0 %v3005
  %3388 = vmatpush1.bf16.msra.mxu0 %v3004
  %3389 = vmatprep.subr.bf16.mxu0 %v3010
  %3390 = vmatpush1.bf16.msra.mxu0 %v3009
  %3391 = vmatprep.subr.bf16.mxu0 %v3015
  %3392 = vmatpush1.bf16.msra.mxu0 %v3014
  %3393 = vmatprep.subr.bf16.mxu0 %v3020
  %3394 = vmatpush1.bf16.msra.mxu0 %v3019
  %3395 = vmatprep.subr.bf16.mxu0 %v3025
  %3396 = vmatpush1.bf16.msra.mxu0 %v3024
  %3397 = vmatprep.subr.bf16.mxu0 %v3030
  %3398 = vmatpush1.bf16.msra.mxu0 %v3029
  %3399 = vmatprep.subr.bf16.mxu0 %v3035
  %3400 = vmatpush1.bf16.msra.mxu0 %v3034
  %3401 = vmatprep.subr.bf16.mxu0 %v3040
  %3402 = vmatpush1.bf16.msra.mxu0 %v3039
  %3403 = vmatprep.subr.bf16.mxu0 %v3155
  %3404 = vmatpush1.bf16.msra.mxu0 %v3152
  %3405 = vmatprep.mubr.bf16.mxu0 %v3133
  %3406 = vmatmul.mubr.bf16.gmra.mrb[0].mxu0 %v3105
  %v3407 = vpop.f32.mrb[0].mxu0
  %v3408 = vadd.f32 %v3337, %v3407
  %v3409 = vpop.f32.mrb[0].mxu0
  %v3410 = vadd.f32 %v3339, %v3409
  %v3411 = vpop.f32.mrb[0].mxu0
  %v3412 = vadd.f32 %v3341, %v3411
  %v3413 = vpop.f32.mrb[0].mxu0
  %v3414 = vadd.f32 %v3343, %v3413
  %3415 = vmatprep.mubr.bf16.mxu0 %v3136
  %3416 = vmatmul.mubr.bf16.gmra.mrb[0].mxu0 %v3109
  %v3417 = vpop.f32.mrb[0].mxu0
  %v3418 = vadd.f32 %v3347, %v3417
  %v3419 = vpop.f32.mrb[0].mxu0
  %v3420 = vadd.f32 %v3349, %v3419
  %v3421 = vpop.f32.mrb[0].mxu0
  %v3422 = vadd.f32 %v3351, %v3421
  %v3423 = vpop.f32.mrb[0].mxu0
  %v3424 = vadd.f32 %v3353, %v3423
  %3425 = vmatprep.mubr.bf16.mxu0 %v3139
  %3426 = vmatmul.mubr.bf16.gmra.mrb[0].mxu0 %v3113
  %v3427 = vpop.f32.mrb[0].mxu0
  %v3428 = vadd.f32 %v3357, %v3427
  %v3429 = vpop.f32.mrb[0].mxu0
  %v3430 = vadd.f32 %v3359, %v3429
  %v3431 = vpop.f32.mrb[0].mxu0
  %v3432 = vadd.f32 %v3361, %v3431
  %v3433 = vpop.f32.mrb[0].mxu0
  %v3434 = vadd.f32 %v3363, %v3433
  %3435 = vmatprep.mubr.bf16.mxu0 %v3142
  %3436 = vmatmul.mubr.bf16.gmra.mrb[0].mxu0 %v3117
  %v3437 = vpop.f32.mrb[0].mxu0
  %v3438 = vadd.f32 %v3367, %v3437
  %v3439 = vpop.f32.mrb[0].mxu0
  %v3440 = vadd.f32 %v3369, %v3439
  %v3441 = vpop.f32.mrb[0].mxu0
  %v3442 = vpop.f32.mrb[0].mxu0
  %3443 = vdwg.mxu0
  %3444 = vmatprep.subr.bf16.mxu0 0
  %3445 = vmatpush1.bf16.msra.mxu0 %v2891
  %3446 = vmatprep.subr.bf16.mxu0 0
  %3447 = vmatpush1.bf16.msra.mxu0 %v2896
  %3448 = vmatprep.subr.bf16.mxu0 0
  %3449 = vmatpush1.bf16.msra.mxu0 %v2901
  %3450 = vmatprep.subr.bf16.mxu0 0
  %3451 = vmatpush1.bf16.msra.mxu0 %v2906
  %3452 = vmatprep.subr.bf16.mxu0 0
  %3453 = vmatpush1.bf16.msra.mxu0 %v2911
  %3454 = vmatprep.subr.bf16.mxu0 0
  %3455 = vmatpush1.bf16.msra.mxu0 %v2916
  %3456 = vmatprep.subr.bf16.mxu0 0
  %3457 = vmatpush1.bf16.msra.mxu0 %v2921
  %3458 = vmatprep.subr.bf16.mxu0 0
  %3459 = vmatpush1.bf16.msra.mxu0 %v2926
  %3460 = vmatprep.subr.bf16.mxu0 0
  %3461 = vmatpush1.bf16.msra.mxu0 %v2931
  %3462 = vmatprep.subr.bf16.mxu0 0
  %3463 = vmatpush1.bf16.msra.mxu0 %v2936
  %3464 = vmatprep.subr.bf16.mxu0 0
  %3465 = vmatpush1.bf16.msra.mxu0 %v2941
  %3466 = vmatprep.subr.bf16.mxu0 0
  %3467 = vmatpush1.bf16.msra.mxu0 %v2946
  %3468 = vmatprep.subr.bf16.mxu0 0
  %3469 = vmatpush1.bf16.msra.mxu0 %v2951
  %3470 = vmatprep.subr.bf16.mxu0 0
  %3471 = vmatpush1.bf16.msra.mxu0 %v2956
  %3472 = vmatprep.subr.bf16.mxu0 0
  %3473 = vmatpush1.bf16.msra.mxu0 %v2961
  %3474 = vmatprep.subr.bf16.mxu0 0
  %3475 = vmatpush1.bf16.msra.mxu0 %v2966
  %3476 = vmatprep.mubr.bf16.mxu0 %v3104
  %3477 = vmatmul.mubr.bf16.gmra.mrb[0].mxu0 %v3103
  %v3478 = vpop.f32.mrb[0].mxu0
  %v3479 = vadd.f32 0.0, %v3478
  %v3480 = vpop.f32.mrb[0].mxu0
  %v3481 = vpop.f32.mrb[0].mxu0
  %v3482 = vadd.f32 0.0, %v3481
  %v3483 = vpop.f32.mrb[0].mxu0
  %3484 = vmatprep.mubr.bf16.mxu0 %v3108
  %3485 = vmatmul.mubr.bf16.gmra.mrb[0].mxu0 %v3107
  %v3486 = vpop.f32.mrb[0].mxu0
  %v3487 = vadd.f32 0.0, %v3486
  %v3488 = vpop.f32.mrb[0].mxu0
  %v3489 = vpop.f32.mrb[0].mxu0
  %v3490 = vadd.f32 0.0, %v3489
  %v3491 = vpop.f32.mrb[0].mxu0
  %3492 = vmatprep.mubr.bf16.mxu0 %v3112
  %3493 = vmatmul.mubr.bf16.gmra.mrb[0].mxu0 %v3111
  %v3494 = vpop.f32.mrb[0].mxu0
  %v3495 = vadd.f32 0.0, %v3494
  %v3496 = vpop.f32.mrb[0].mxu0
  %v3497 = vpop.f32.mrb[0].mxu0
  %v3498 = vadd.f32 0.0, %v3497
  %v3499 = vpop.f32.mrb[0].mxu0
  %3500 = vmatprep.mubr.bf16.mxu0 %v3116
  %3501 = vmatmul.mubr.bf16.gmra.mrb[0].mxu0 %v3115
  %v3502 = vpop.f32.mrb[0].mxu0
  %v3503 = vadd.f32 0.0, %v3502
  %v3504 = vpop.f32.mrb[0].mxu0
  %v3505 = vpop.f32.mrb[0].mxu0
  %v3506 = vpop.f32.mrb[0].mxu0
  %3507 = vdwg.mxu0
  %3508 = vmatprep.subr.bf16.mxu0 0
  %3509 = vmatpush1.bf16.msra.mxu0 %v2971
  %3510 = vmatprep.subr.bf16.mxu0 0
  %3511 = vmatpush1.bf16.msra.mxu0 %v2976
  %3512 = vmatprep.subr.bf16.mxu0 0
  %3513 = vmatpush1.bf16.msra.mxu0 %v2981
  %3514 = vmatprep.subr.bf16.mxu0 0
  %3515 = vmatpush1.bf16.msra.mxu0 %v2986
  %3516 = vmatprep.subr.bf16.mxu0 0
  %3517 = vmatpush1.bf16.msra.mxu0 %v2991
  %3518 = vmatprep.subr.bf16.mxu0 0
  %3519 = vmatpush1.bf16.msra.mxu0 %v2996
  %3520 = vmatprep.subr.bf16.mxu0 0
  %3521 = vmatpush1.bf16.msra.mxu0 %v3001
  %3522 = vmatprep.subr.bf16.mxu0 0
  %3523 = vmatpush1.bf16.msra.mxu0 %v3006
  %3524 = vmatprep.subr.bf16.mxu0 0
  %3525 = vmatpush1.bf16.msra.mxu0 %v3011
  %3526 = vmatprep.subr.bf16.mxu0 0
  %3527 = vmatpush1.bf16.msra.mxu0 %v3016
  %3528 = vmatprep.subr.bf16.mxu0 0
  %3529 = vmatpush1.bf16.msra.mxu0 %v3021
  %3530 = vmatprep.subr.bf16.mxu0 0
  %3531 = vmatpush1.bf16.msra.mxu0 %v3026
  %3532 = vmatprep.subr.bf16.mxu0 0
  %3533 = vmatpush1.bf16.msra.mxu0 %v3031
  %3534 = vmatprep.subr.bf16.mxu0 0
  %3535 = vmatpush1.bf16.msra.mxu0 %v3036
  %3536 = vmatprep.subr.bf16.mxu0 0
  %3537 = vmatpush1.bf16.msra.mxu0 %v3041
  %3538 = vmatprep.subr.bf16.mxu0 0
  %3539 = vmatpush1.bf16.msra.mxu0 %v3158
  %3540 = vmatprep.mubr.bf16.mxu0 %v3133
  %3541 = vmatmul.mubr.bf16.gmra.mrb[0].mxu0 %v3105
  %v3542 = vpop.f32.mrb[0].mxu0
  %v3543 = vadd.f32 %v3479, %v3542
  %v3544 = vpop.f32.mrb[0].mxu0
  %v3545 = vpop.f32.mrb[0].mxu0
  %v3546 = vadd.f32 %v3482, %v3545
  %v3547 = vpop.f32.mrb[0].mxu0
  %3548 = vmatprep.mubr.bf16.mxu0 %v3136
  %3549 = vmatmul.mubr.bf16.gmra.mrb[0].mxu0 %v3109
  %v3550 = vpop.f32.mrb[0].mxu0
  %v3551 = vadd.f32 %v3487, %v3550
  %v3552 = vpop.f32.mrb[0].mxu0
  %v3553 = vpop.f32.mrb[0].mxu0
  %v3554 = vadd.f32 %v3490, %v3553
  %v3555 = vpop.f32.mrb[0].mxu0
  %3556 = vmatprep.mubr.bf16.mxu0 %v3139
  %3557 = vmatmul.mubr.bf16.gmra.mrb[0].mxu0 %v3113
  %v3558 = vpop.f32.mrb[0].mxu0
  %v3559 = vadd.f32 %v3495, %v3558
  %v3560 = vpop.f32.mrb[0].mxu0
  %v3561 = vpop.f32.mrb[0].mxu0
  %v3562 = vadd.f32 %v3498, %v3561
  %v3563 = vpop.f32.mrb[0].mxu0
  %3564 = vmatprep.mubr.bf16.mxu0 %v3142
  %3565 = vmatmul.mubr.bf16.gmra.mrb[0].mxu0 %v3117
  %v3566 = vpop.f32.mrb[0].mxu0
  %v3567 = vadd.f32 %v3503, %v3566
  %v3568 = vpop.f32.mrb[0].mxu0
  %v3569 = vpop.f32.mrb[0].mxu0
  %v3570 = vpop.f32.mrb[0].mxu0
  %3571 = vdwg.mxu0
  %v3572 = vld [vmem:[%s6] sm:$0x1f]
  %v3573 = vld [vmem:[%s7] sm:$0x1f]
  %v3574 = vadd.f32 %v3266, %v3270
  %v3575 = vadd.f32 %v3574, %v3276
  %v3576 = vadd.f32 %v3575, %v3280
  %v3577 = vadd.f32 %v3576, %v3286
  %v3578 = vadd.f32 %v3577, %v3290
  %v3579 = vadd.f32 %v3578, %v3296
  %v3580 = vrot.slane %v3579, 4
  %v3581 = vadd.f32 %v3579, %v3580
  %v3582 = vrot.slane %v3581, 2
  %v3583 = vadd.f32 %v3581, %v3582
  %v3584 = vrot.slane %v3583, 1
  %v3585 = vadd.f32 %v3583, %v3584
  %v3586 = vadd.f32 %v3268, %v3272
  %v3587 = vadd.f32 %v3586, %v3278
  %v3588 = vadd.f32 %v3587, %v3282
  %v3589 = vadd.f32 %v3588, %v3288
  %v3590 = vadd.f32 %v3589, %v3292
  %v3591 = vadd.f32 %v3590, %v3298
  %v3592 = vrot.slane %v3591, 4
  %v3593 = vadd.f32 %v3591, %v3592
  %v3594 = vrot.slane %v3593, 2
  %v3595 = vadd.f32 %v3593, %v3594
  %v3596 = vrot.slane %v3595, 1
  %v3597 = vadd.f32 %v3595, %v3596
  %v3598 = vadd.f32 %v3408, %v3412
  %v3599 = vadd.f32 %v3598, %v3418
  %v3600 = vadd.f32 %v3599, %v3422
  %v3601 = vadd.f32 %v3600, %v3428
  %v3602 = vadd.f32 %v3601, %v3432
  %v3603 = vadd.f32 %v3602, %v3438
  %v3604 = vrot.slane %v3603, 4
  %v3605 = vadd.f32 %v3603, %v3604
  %v3606 = vrot.slane %v3605, 2
  %v3607 = vadd.f32 %v3605, %v3606
  %v3608 = vrot.slane %v3607, 1
  %v3609 = vadd.f32 %v3607, %v3608
  %v3610 = vadd.f32 %v3410, %v3414
  %v3611 = vadd.f32 %v3610, %v3420
  %v3612 = vadd.f32 %v3611, %v3424
  %v3613 = vadd.f32 %v3612, %v3430
  %v3614 = vadd.f32 %v3613, %v3434
  %v3615 = vadd.f32 %v3614, %v3440
  %v3616 = vrot.slane %v3615, 4
  %v3617 = vadd.f32 %v3615, %v3616
  %v3618 = vrot.slane %v3617, 2
  %v3619 = vadd.f32 %v3617, %v3618
  %v3620 = vrot.slane %v3619, 1
  %v3621 = vadd.f32 %v3619, %v3620
  %v3622 = vsel %vm1997, %v3543, 0.0
  %v3623 = vsel %vm1997, %v3546, 0.0
  %v3624 = vadd.f32 %v3622, %v3623
  %v3625 = vsel %vm1997, %v3551, 0.0
  %v3626 = vadd.f32 %v3624, %v3625
  %v3627 = vsel %vm1997, %v3554, 0.0
  %v3628 = vadd.f32 %v3626, %v3627
  %v3629 = vsel %vm1997, %v3559, 0.0
  %v3630 = vadd.f32 %v3628, %v3629
  %v3631 = vsel %vm1997, %v3562, 0.0
  %v3632 = vadd.f32 %v3630, %v3631
  %v3633 = vsel %vm1997, %v3567, 0.0
  %v3634 = vadd.f32 %v3632, %v3633
  %v3635 = vrot.slane %v3634, 4
  %v3636 = vadd.f32 %v3634, %v3635
  %v3637 = vrot.slane %v3636, 2
  %v3638 = vadd.f32 %v3636, %v3637
  %v3639 = vrot.slane %v3638, 1
  %v3640 = vadd.f32 %v3638, %v3639
  %v3641 = vmul.f32 %v3585, 0.020408163
  %v3642 = vmul.f32 %v3597, 0.020408163
  %v3643 = vmul.f32 %v3609, 0.020408163
  %v3644 = vmul.f32 %v3621, 0.020408163
  %v3645 = vmul.f32 %v3640, 0.020408163
  %v3646 = vmul.f32 %v3266, %v3266
  %v3647 = vmul.f32 %v3268, %v3268
  %v3648 = vmul.f32 %v3408, %v3408
  %v3649 = vmul.f32 %v3410, %v3410
  %v3650 = vmul.f32 %v3543, %v3543
  %v3651 = vmul.f32 %v3270, %v3270
  %v3652 = vmul.f32 %v3272, %v3272
  %v3653 = vmul.f32 %v3412, %v3412
  %v3654 = vmul.f32 %v3414, %v3414
  %v3655 = vmul.f32 %v3546, %v3546
  %v3656 = vmul.f32 %v3276, %v3276
  %v3657 = vmul.f32 %v3278, %v3278
  %v3658 = vmul.f32 %v3418, %v3418
  %v3659 = vmul.f32 %v3420, %v3420
  %v3660 = vmul.f32 %v3551, %v3551
  %v3661 = vmul.f32 %v3280, %v3280
  %v3662 = vmul.f32 %v3282, %v3282
  %v3663 = vmul.f32 %v3422, %v3422
  %v3664 = vmul.f32 %v3424, %v3424
  %v3665 = vmul.f32 %v3554, %v3554
  %v3666 = vmul.f32 %v3286, %v3286
  %v3667 = vmul.f32 %v3288, %v3288
  %v3668 = vmul.f32 %v3428, %v3428
  %v3669 = vmul.f32 %v3430, %v3430
  %v3670 = vmul.f32 %v3559, %v3559
  %v3671 = vmul.f32 %v3290, %v3290
  %v3672 = vmul.f32 %v3292, %v3292
  %v3673 = vmul.f32 %v3432, %v3432
  %v3674 = vmul.f32 %v3434, %v3434
  %v3675 = vmul.f32 %v3562, %v3562
  %v3676 = vmul.f32 %v3296, %v3296
  %v3677 = vmul.f32 %v3298, %v3298
  %v3678 = vmul.f32 %v3438, %v3438
  %v3679 = vmul.f32 %v3440, %v3440
  %v3680 = vmul.f32 %v3567, %v3567
  %v3681 = vadd.f32 %v3646, %v3651
  %v3682 = vadd.f32 %v3681, %v3656
  %v3683 = vadd.f32 %v3682, %v3661
  %v3684 = vadd.f32 %v3683, %v3666
  %v3685 = vadd.f32 %v3684, %v3671
  %v3686 = vadd.f32 %v3685, %v3676
  %v3687 = vrot.slane %v3686, 4
  %v3688 = vadd.f32 %v3686, %v3687
  %v3689 = vrot.slane %v3688, 2
  %v3690 = vadd.f32 %v3688, %v3689
  %v3691 = vrot.slane %v3690, 1
  %v3692 = vadd.f32 %v3690, %v3691
  %v3693 = vadd.f32 %v3647, %v3652
  %v3694 = vadd.f32 %v3693, %v3657
  %v3695 = vadd.f32 %v3694, %v3662
  %v3696 = vadd.f32 %v3695, %v3667
  %v3697 = vadd.f32 %v3696, %v3672
  %v3698 = vadd.f32 %v3697, %v3677
  %v3699 = vrot.slane %v3698, 4
  %v3700 = vadd.f32 %v3698, %v3699
  %v3701 = vrot.slane %v3700, 2
  %v3702 = vadd.f32 %v3700, %v3701
  %v3703 = vrot.slane %v3702, 1
  %v3704 = vadd.f32 %v3702, %v3703
  %v3705 = vadd.f32 %v3648, %v3653
  %v3706 = vadd.f32 %v3705, %v3658
  %v3707 = vadd.f32 %v3706, %v3663
  %v3708 = vadd.f32 %v3707, %v3668
  %v3709 = vadd.f32 %v3708, %v3673
  %v3710 = vadd.f32 %v3709, %v3678
  %v3711 = vrot.slane %v3710, 4
  %v3712 = vadd.f32 %v3710, %v3711
  %v3713 = vrot.slane %v3712, 2
  %v3714 = vadd.f32 %v3712, %v3713
  %v3715 = vrot.slane %v3714, 1
  %v3716 = vadd.f32 %v3714, %v3715
  %v3717 = vadd.f32 %v3649, %v3654
  %v3718 = vadd.f32 %v3717, %v3659
  %v3719 = vadd.f32 %v3718, %v3664
  %v3720 = vadd.f32 %v3719, %v3669
  %v3721 = vadd.f32 %v3720, %v3674
  %v3722 = vadd.f32 %v3721, %v3679
  %v3723 = vrot.slane %v3722, 4
  %v3724 = vadd.f32 %v3722, %v3723
  %v3725 = vrot.slane %v3724, 2
  %v3726 = vadd.f32 %v3724, %v3725
  %v3727 = vrot.slane %v3726, 1
  %v3728 = vadd.f32 %v3726, %v3727
  %v3729 = vsel %vm1997, %v3650, 0.0
  %v3730 = vsel %vm1997, %v3655, 0.0
  %v3731 = vadd.f32 %v3729, %v3730
  %v3732 = vsel %vm1997, %v3660, 0.0
  %v3733 = vadd.f32 %v3731, %v3732
  %v3734 = vsel %vm1997, %v3665, 0.0
  %v3735 = vadd.f32 %v3733, %v3734
  %v3736 = vsel %vm1997, %v3670, 0.0
  %v3737 = vadd.f32 %v3735, %v3736
  %v3738 = vsel %vm1997, %v3675, 0.0
  %v3739 = vadd.f32 %v3737, %v3738
  %v3740 = vsel %vm1997, %v3680, 0.0
  %v3741 = vadd.f32 %v3739, %v3740
  %v3742 = vrot.slane %v3741, 4
  %v3743 = vadd.f32 %v3741, %v3742
  %v3744 = vrot.slane %v3743, 2
  %v3745 = vadd.f32 %v3743, %v3744
  %v3746 = vrot.slane %v3745, 1
  %v3747 = vadd.f32 %v3745, %v3746
  %v3748 = vmul.f32 %v3692, 0.020408163
  %v3749 = vmul.f32 %v3704, 0.020408163
  %v3750 = vmul.f32 %v3716, 0.020408163
  %v3751 = vmul.f32 %v3728, 0.020408163
  %v3752 = vmul.f32 %v3747, 0.020408163
  %v3753 = vmul.f32 %v3641, %v3641
  %v3754 = vmul.f32 %v3642, %v3642
  %v3755 = vmul.f32 %v3643, %v3643
  %v3756 = vmul.f32 %v3644, %v3644
  %v3757 = vmul.f32 %v3645, %v3645
  %v3758 = vsub.f32 %v3748, %v3753
  %v3759 = vsub.f32 %v3749, %v3754
  %v3760 = vsub.f32 %v3750, %v3755
  %v3761 = vsub.f32 %v3751, %v3756
  %v3762 = vsub.f32 %v3752, %v3757
  %v3763 = vadd.f32 %v3758, 1e-05
  %v3764 = vadd.f32 %v3759, 1e-05
  %v3765 = vadd.f32 %v3760, 1e-05
  %v3766 = vadd.f32 %v3761, 1e-05
  %v3767 = vadd.f32 %v3762, 1e-05
  %v3768 = vrsqrt.pop %v3763
  %v3769 = vrsqrt.pop %v3764
  %v3770 = vrsqrt.pop %v3765
  %v3771 = vrsqrt.pop %v3766
  %v3772 = vrsqrt.pop %v3767
  %v3774 = vlaneseq
  %v3775 = vshrl.u32 %v3774, 7
  %v3776 = vsub.s32 0, %v3775
  %v3777 = vrot.slane %v3572, %v3776
  %v3778 = vlaneseq
  %v3779 = vshrl.u32 %v3778, 7
  %v3780 = vsub.s32 1, %v3779
  %v3781 = vrot.slane %v3572, %v3780
  %v3782 = vlaneseq
  %v3783 = vshrl.u32 %v3782, 7
  %v3784 = vsub.s32 2, %v3783
  %v3785 = vrot.slane %v3572, %v3784
  %v3786 = vlaneseq
  %v3787 = vshrl.u32 %v3786, 7
  %v3788 = vsub.s32 3, %v3787
  %v3789 = vrot.slane %v3572, %v3788
  %v3790 = vlaneseq
  %v3791 = vshrl.u32 %v3790, 7
  %v3792 = vsub.s32 4, %v3791
  %v3793 = vrot.slane %v3572, %v3792
  %v3799 = vmul.f32 %v3768, %v3777
  %v3800 = vmul.f32 %v3769, %v3781
  %v3801 = vmul.f32 %v3770, %v3785
  %v3802 = vmul.f32 %v3771, %v3789
  %v3803 = vmul.f32 %v3772, %v3793
  %v3804 = vmul.f32 %v3641, %v3799
  %v3805 = vmul.f32 %v3642, %v3800
  %v3806 = vmul.f32 %v3643, %v3801
  %v3807 = vmul.f32 %v3644, %v3802
  %v3808 = vmul.f32 %v3645, %v3803
  %v3814 = vcombine.low %v3804, %v3805
  %v3815 = vcombine.low %v3806, %v3807
  %v3817 = vunpack.c.l.s4 1966171168
  %v3818 = vunpack.c.0.s8 %v3817
  %v3819 = vlaneseq
  %v3820 = vshrl.u32 %v3819, 7
  %v3821 = vsub.s32 %v3818, %v3820
  %v3822 = vrot.slane %v3814, %v3821
  %v3824 = vunpack.c.l.s4 1966171168
  %v3825 = vunpack.c.0.s8 %v3824
  %v3826 = vlaneseq
  %v3827 = vshrl.u32 %v3826, 7
  %v3828 = vsub.s32 %v3825, %v3827
  %v3829 = vrot.slane %v3815, %v3828
  %v3831 = vunpack.c.l.s4 1966171168
  %v3832 = vunpack.c.0.s8 %v3831
  %v3833 = vlaneseq
  %v3834 = vshrl.u32 %v3833, 7
  %v3835 = vsub.s32 %v3832, %v3834
  %v3836 = vrot.slane %v3808, %v3835
  %v3837 = vcombine.low %v3822, %v3829
  %v3839 = vunpack.c.l.s4 1966171168
  %v3840 = vunpack.c.0.s8 %v3839
  %v3841 = vlaneseq
  %v3842 = vshrl.u32 %v3841, 7
  %v3843 = vsub.s32 %v3840, %v3842
  %v3844 = vrot.slane %v3837, %v3843
  %v3846 = vunpack.c.l.s4 1966171168
  %v3847 = vunpack.c.0.s8 %v3846
  %v3848 = vlaneseq
  %v3849 = vshrl.u32 %v3848, 7
  %v3850 = vsub.s32 %v3847, %v3849
  %v3851 = vrot.slane %v3836, %v3850
  %v3852 = vcombine.low %v3844, %v3851
  %v3854 = vsub.f32 %v3573, %v3852
  %v3855 = vlaneseq
  %v3856 = vshrl.u32 %v3855, 7
  %v3857 = vsub.s32 0, %v3856
  %v3858 = vrot.slane %v3799, %v3857
  %v3859 = vlaneseq
  %v3860 = vshrl.u32 %v3859, 7
  %v3861 = vsub.s32 0, %v3860
  %v3862 = vrot.slane %v3800, %v3861
  %v3863 = vlaneseq
  %v3864 = vshrl.u32 %v3863, 7
  %v3865 = vsub.s32 0, %v3864
  %v3866 = vrot.slane %v3801, %v3865
  %v3867 = vlaneseq
  %v3868 = vshrl.u32 %v3867, 7
  %v3869 = vsub.s32 0, %v3868
  %v3870 = vrot.slane %v3802, %v3869
  %v3871 = vlaneseq
  %v3872 = vshrl.u32 %v3871, 7
  %v3873 = vsub.s32 0, %v3872
  %v3874 = vrot.slane %v3803, %v3873
  %v3875 = vmul.f32 %v3266, %v3858
  %v3876 = vmul.f32 %v3268, %v3862
  %v3877 = vmul.f32 %v3408, %v3866
  %v3878 = vmul.f32 %v3410, %v3870
  %v3879 = vmul.f32 %v3543, %v3874
  %v3880 = vmul.f32 %v3270, %v3858
  %v3881 = vmul.f32 %v3272, %v3862
  %v3882 = vmul.f32 %v3412, %v3866
  %v3883 = vmul.f32 %v3414, %v3870
  %v3884 = vmul.f32 %v3546, %v3874
  %v3885 = vmul.f32 %v3276, %v3858
  %v3886 = vmul.f32 %v3278, %v3862
  %v3887 = vmul.f32 %v3418, %v3866
  %v3888 = vmul.f32 %v3420, %v3870
  %v3889 = vmul.f32 %v3551, %v3874
  %v3890 = vmul.f32 %v3280, %v3858
  %v3891 = vmul.f32 %v3282, %v3862
  %v3892 = vmul.f32 %v3422, %v3866
  %v3893 = vmul.f32 %v3424, %v3870
  %v3894 = vmul.f32 %v3554, %v3874
  %v3895 = vmul.f32 %v3286, %v3858
  %v3896 = vmul.f32 %v3288, %v3862
  %v3897 = vmul.f32 %v3428, %v3866
  %v3898 = vmul.f32 %v3430, %v3870
  %v3899 = vmul.f32 %v3559, %v3874
  %v3900 = vmul.f32 %v3290, %v3858
  %v3901 = vmul.f32 %v3292, %v3862
  %v3902 = vmul.f32 %v3432, %v3866
  %v3903 = vmul.f32 %v3434, %v3870
  %v3904 = vmul.f32 %v3562, %v3874
  %v3905 = vmul.f32 %v3296, %v3858
  %v3906 = vmul.f32 %v3298, %v3862
  %v3907 = vmul.f32 %v3438, %v3866
  %v3908 = vmul.f32 %v3440, %v3870
  %v3909 = vmul.f32 %v3567, %v3874
  %v3911 = vlaneseq
  %v3912 = vshrl.u32 %v3911, 7
  %v3913 = vsub.s32 0, %v3912
  %v3914 = vrot.slane %v3854, %v3913
  %v3915 = vlaneseq
  %v3916 = vshrl.u32 %v3915, 7
  %v3917 = vsub.s32 1, %v3916
  %v3918 = vrot.slane %v3854, %v3917
  %v3919 = vlaneseq
  %v3920 = vshrl.u32 %v3919, 7
  %v3921 = vsub.s32 2, %v3920
  %v3922 = vrot.slane %v3854, %v3921
  %v3923 = vlaneseq
  %v3924 = vshrl.u32 %v3923, 7
  %v3925 = vsub.s32 3, %v3924
  %v3926 = vrot.slane %v3854, %v3925
  %v3927 = vlaneseq
  %v3928 = vshrl.u32 %v3927, 7
  %v3929 = vsub.s32 4, %v3928
  %v3930 = vrot.slane %v3854, %v3929
  %v3936 = vadd.f32 %v3875, %v3914
  %v3937 = vadd.f32 %v3876, %v3918
  %v3938 = vadd.f32 %v3877, %v3922
  %v3939 = vadd.f32 %v3878, %v3926
  %v3940 = vadd.f32 %v3879, %v3930
  %v3941 = vadd.f32 %v3880, %v3914
  %v3942 = vadd.f32 %v3881, %v3918
  %v3943 = vadd.f32 %v3882, %v3922
  %v3944 = vadd.f32 %v3883, %v3926
  %v3945 = vadd.f32 %v3884, %v3930
  %v3946 = vadd.f32 %v3885, %v3914
  %v3947 = vadd.f32 %v3886, %v3918
  %v3948 = vadd.f32 %v3887, %v3922
  %v3949 = vadd.f32 %v3888, %v3926
  %v3950 = vadd.f32 %v3889, %v3930
  %v3951 = vadd.f32 %v3890, %v3914
  %v3952 = vadd.f32 %v3891, %v3918
  %v3953 = vadd.f32 %v3892, %v3922
  %v3954 = vadd.f32 %v3893, %v3926
  %v3955 = vadd.f32 %v3894, %v3930
  %v3956 = vadd.f32 %v3895, %v3914
  %v3957 = vadd.f32 %v3896, %v3918
  %v3958 = vadd.f32 %v3897, %v3922
  %v3959 = vadd.f32 %v3898, %v3926
  %v3960 = vadd.f32 %v3899, %v3930
  %v3961 = vadd.f32 %v3900, %v3914
  %v3962 = vadd.f32 %v3901, %v3918
  %v3963 = vadd.f32 %v3902, %v3922
  %v3964 = vadd.f32 %v3903, %v3926
  %v3965 = vadd.f32 %v3904, %v3930
  %v3966 = vadd.f32 %v3905, %v3914
  %v3967 = vadd.f32 %v3906, %v3918
  %v3968 = vadd.f32 %v3907, %v3922
  %v3969 = vadd.f32 %v3908, %v3926
  %v3970 = vadd.f32 %v3909, %v3930
  %v3971 = vmax.f32 %v3936, 0.0
  %v3972 = vmax.f32 %v3937, 0.0
  %v3973 = vmax.f32 %v3938, 0.0
  %v3974 = vmax.f32 %v3939, 0.0
  %v3975 = vmax.f32 %v3940, 0.0
  %v3976 = vmax.f32 %v3941, 0.0
  %v3977 = vmax.f32 %v3942, 0.0
  %v3978 = vmax.f32 %v3943, 0.0
  %v3979 = vmax.f32 %v3944, 0.0
  %v3980 = vmax.f32 %v3945, 0.0
  %v3981 = vmax.f32 %v3946, 0.0
  %v3982 = vmax.f32 %v3947, 0.0
  %v3983 = vmax.f32 %v3948, 0.0
  %v3984 = vmax.f32 %v3949, 0.0
  %v3985 = vmax.f32 %v3950, 0.0
  %v3986 = vmax.f32 %v3951, 0.0
  %v3987 = vmax.f32 %v3952, 0.0
  %v3988 = vmax.f32 %v3953, 0.0
  %v3989 = vmax.f32 %v3954, 0.0
  %v3990 = vmax.f32 %v3955, 0.0
  %v3991 = vmax.f32 %v3956, 0.0
  %v3992 = vmax.f32 %v3957, 0.0
  %v3993 = vmax.f32 %v3958, 0.0
  %v3994 = vmax.f32 %v3959, 0.0
  %v3995 = vmax.f32 %v3960, 0.0
  %v3996 = vmax.f32 %v3961, 0.0
  %v3997 = vmax.f32 %v3962, 0.0
  %v3998 = vmax.f32 %v3963, 0.0
  %v3999 = vmax.f32 %v3964, 0.0
  %v4000 = vmax.f32 %v3965, 0.0
  %v4001 = vmax.f32 %v3966, 0.0
  %v4002 = vmax.f32 %v3967, 0.0
  %v4003 = vmax.f32 %v3968, 0.0
  %v4004 = vmax.f32 %v3969, 0.0
  %v4005 = vmax.f32 %v3970, 0.0
  %s4006 = smul.u32 4, 72
  %s4007 = smul.u32 %s4006, 2
  %s4008 = sshll.u32 %s4007, 4
  %4009 = dma.done [#allocation4], %s4008
  %v4010 = vpack.c.bf16 %v3976, %v3971
  %v4011 = vpack.c.bf16 %v3977, %v3972
  %v4012 = vpack.c.bf16 %v3978, %v3973
  %v4013 = vpack.c.bf16 %v3979, %v3974
  %v4014 = vpack.c.bf16 %v3980, %v3975
  %v4015 = vpack.c.bf16 %v3986, %v3981
  %v4016 = vpack.c.bf16 %v3987, %v3982
  %v4017 = vpack.c.bf16 %v3988, %v3983
  %v4018 = vpack.c.bf16 %v3989, %v3984
  %v4019 = vpack.c.bf16 %v3990, %v3985
  %v4020 = vpack.c.bf16 %v3996, %v3991
  %v4021 = vpack.c.bf16 %v3997, %v3992
  %v4022 = vpack.c.bf16 %v3998, %v3993
  %v4023 = vpack.c.bf16 %v3999, %v3994
  %v4024 = vpack.c.bf16 %v4000, %v3995
  %v4025 = vpack.c.bf16 %v4001, %v4001
  %v4026 = vpack.c.bf16 %v4002, %v4002
  %v4027 = vpack.c.bf16 %v4003, %v4003
  %v4028 = vpack.c.bf16 %v4004, %v4004
  %v4029 = vpack.c.bf16 %v4005, %v4005
  %v4030 = vld [vmem:[#allocation2] sm:$0xff]
  %v4031 = vld [vmem:[#allocation2 + $0x8] sm:$0xff]
  %v4032 = vld [vmem:[#allocation2 + $0x10] sm:$0xff]
  %v4033 = vld [vmem:[#allocation2 + $0x18] sm:$0xff]
  %v4034 = vld [vmem:[#allocation2 + $0x20] sm:$0xff]
  %v4035 = vld [vmem:[#allocation2 + $0x28] sm:$0xff]
  %v4036 = vld [vmem:[#allocation2 + $0x30] sm:$0xff]
  %v4037 = vld [vmem:[#allocation2 + $0x38] sm:$0xff]
  %v4038 = vld [vmem:[#allocation2 + $0x40] sm:$0xff]
  %v4039 = vld [vmem:[#allocation2 + $0x48] sm:$0xff]
  %v4040 = vld [vmem:[#allocation2 + $0x50] sm:$0xff]
  %v4041 = vld [vmem:[#allocation2 + $0x58] sm:$0xff]
  %v4042 = vld [vmem:[#allocation2 + $0x60] sm:$0xff]
  %v4043 = vld [vmem:[#allocation2 + $0x68] sm:$0xff]
  %v4044 = vld [vmem:[#allocation2 + $0x70] sm:$0xff]
  %v4045 = vld [vmem:[#allocation2 + $0x78] sm:$0xff]
  %v4046 = vld [vmem:[#allocation2 + $0x80] sm:$0xff]
  %v4047 = vld [vmem:[#allocation2 + $0x88] sm:$0xff]
  %v4048 = vld [vmem:[#allocation2 + $0x90] sm:$0xff]
  %v4049 = vld [vmem:[#allocation2 + $0x98] sm:$0xff]
  %v4050 = vld [vmem:[#allocation2 + $0xa0] sm:$0xff]
  %v4051 = vld [vmem:[#allocation2 + $0xa8] sm:$0xff]
  %v4052 = vld [vmem:[#allocation2 + $0xb0] sm:$0xff]
  %v4053 = vld [vmem:[#allocation2 + $0xb8] sm:$0xff]
  %v4054 = vld [vmem:[#allocation2 + $0xc0] sm:$0xff]
  %v4055 = vld [vmem:[#allocation2 + $0xc8] sm:$0xff]
  %v4056 = vld [vmem:[#allocation2 + $0xd0] sm:$0xff]
  %v4057 = vld [vmem:[#allocation2 + $0xd8] sm:$0xff]
  %v4058 = vld [vmem:[#allocation2 + $0xe0] sm:$0xff]
  %v4059 = vld [vmem:[#allocation2 + $0xe8] sm:$0xff]
  %v4060 = vld [vmem:[#allocation2 + $0xf0] sm:$0xff]
  %v4061 = vld [vmem:[#allocation2 + $0xf8] sm:$0xff]
  %v4062 = vld [vmem:[#allocation2 + $0x100] sm:$0xff]
  %v4063 = vld [vmem:[#allocation2 + $0x108] sm:$0xff]
  %v4064 = vld [vmem:[#allocation2 + $0x110] sm:$0xff]
  %v4065 = vld [vmem:[#allocation2 + $0x118] sm:$0xff]
  %v4066 = vld [vmem:[#allocation2 + $0x120] sm:$0xff]
  %v4067 = vld [vmem:[#allocation2 + $0x128] sm:$0xff]
  %v4068 = vld [vmem:[#allocation2 + $0x130] sm:$0xff]
  %v4069 = vld [vmem:[#allocation2 + $0x138] sm:$0xff]
  %v4070 = vld [vmem:[#allocation2 + $0x140] sm:$0xff]
  %v4071 = vld [vmem:[#allocation2 + $0x148] sm:$0xff]
  %v4072 = vld [vmem:[#allocation2 + $0x150] sm:$0xff]
  %v4073 = vld [vmem:[#allocation2 + $0x158] sm:$0xff]
  %v4074 = vld [vmem:[#allocation2 + $0x160] sm:$0xff]
  %v4075 = vld [vmem:[#allocation2 + $0x168] sm:$0xff]
  %v4076 = vld [vmem:[#allocation2 + $0x170] sm:$0xff]
  %v4077 = vld [vmem:[#allocation2 + $0x178] sm:$0xff]
  %v4078 = vld [vmem:[#allocation2 + $0x180] sm:$0xff]
  %v4079 = vld [vmem:[#allocation2 + $0x188] sm:$0xff]
  %v4080 = vld [vmem:[#allocation2 + $0x190] sm:$0xff]
  %v4081 = vld [vmem:[#allocation2 + $0x198] sm:$0xff]
  %v4082 = vld [vmem:[#allocation2 + $0x1a0] sm:$0xff]
  %v4083 = vld [vmem:[#allocation2 + $0x1a8] sm:$0xff]
  %v4084 = vld [vmem:[#allocation2 + $0x1b0] sm:$0xff]
  %v4085 = vld [vmem:[#allocation2 + $0x1b8] sm:$0xff]
  %v4086 = vld [vmem:[#allocation2 + $0x1c0] sm:$0xff]
  %v4087 = vld [vmem:[#allocation2 + $0x1c8] sm:$0xff]
  %v4088 = vld [vmem:[#allocation2 + $0x1d0] sm:$0xff]
  %v4089 = vld [vmem:[#allocation2 + $0x1d8] sm:$0xff]
  %v4090 = vld [vmem:[#allocation2 + $0x1e0] sm:$0xff]
  %v4091 = vld [vmem:[#allocation2 + $0x1e8] sm:$0xff]
  %v4092 = vld [vmem:[#allocation2 + $0x1f0] sm:$0xff]
  %v4093 = vld [vmem:[#allocation2 + $0x1f8] sm:$0xff]
  %v4094 = vld [vmem:[#allocation2 + $0x200] sm:$0xff]
  %v4095 = vld [vmem:[#allocation2 + $0x208] sm:$0xff]
  %v4096 = vld [vmem:[#allocation2 + $0x210] sm:$0xff]
  %v4097 = vld [vmem:[#allocation2 + $0x218] sm:$0xff]
  %v4098 = vld [vmem:[#allocation2 + $0x220] sm:$0xff]
  %v4099 = vld [vmem:[#allocation2 + $0x228] sm:$0xff]
  %v4100 = vld [vmem:[#allocation2 + $0x230] sm:$0xff]
  %v4101 = vld [vmem:[#allocation2 + $0x238] sm:$0xff]
  %v4103 = vsel %vm1997, %v4014, 0
  %v4106 = vsel %vm1997, %v4019, 0
  %v4109 = vsel %vm1997, %v4024, 0
  %v4112 = vsel %vm1997, %v4029, 0
  %4114 = vmatprep.subr.bf16.mxu0 %v4031
  %4115 = vmatpush1.bf16.msra.mxu0 %v4030
  %4116 = vmatprep.subr.bf16.mxu0 %v4033
  %4117 = vmatpush1.bf16.msra.mxu0 %v4032
  %4118 = vmatprep.subr.bf16.mxu0 %v4035
  %4119 = vmatpush1.bf16.msra.mxu0 %v4034
  %4120 = vmatprep.subr.bf16.mxu0 %v4037
  %4121 = vmatpush1.bf16.msra.mxu0 %v4036
  %4122 = vmatprep.subr.bf16.mxu0 %v4039
  %4123 = vmatpush1.bf16.msra.mxu0 %v4038
  %4124 = vmatprep.subr.bf16.mxu0 %v4041
  %4125 = vmatpush1.bf16.msra.mxu0 %v4040
  %4126 = vmatprep.subr.bf16.mxu0 %v4043
  %4127 = vmatpush1.bf16.msra.mxu0 %v4042
  %4128 = vmatprep.subr.bf16.mxu0 %v4045
  %4129 = vmatpush1.bf16.msra.mxu0 %v4044
  %4130 = vmatprep.subr.bf16.mxu0 %v4047
  %4131 = vmatpush1.bf16.msra.mxu0 %v4046
  %4132 = vmatprep.subr.bf16.mxu0 %v4049
  %4133 = vmatpush1.bf16.msra.mxu0 %v4048
  %4134 = vmatprep.subr.bf16.mxu0 %v4051
  %4135 = vmatpush1.bf16.msra.mxu0 %v4050
  %4136 = vmatprep.subr.bf16.mxu0 %v4053
  %4137 = vmatpush1.bf16.msra.mxu0 %v4052
  %4138 = vmatprep.subr.bf16.mxu0 %v4055
  %4139 = vmatpush1.bf16.msra.mxu0 %v4054
  %4140 = vmatprep.subr.bf16.mxu0 %v4057
  %4141 = vmatpush1.bf16.msra.mxu0 %v4056
  %4142 = vmatprep.subr.bf16.mxu0 %v4059
  %4143 = vmatpush1.bf16.msra.mxu0 %v4058
  %4144 = vmatprep.subr.bf16.mxu0 %v4061
  %4145 = vmatpush1.bf16.msra.mxu0 %v4060
  %4146 = vmatprep.mubr.bf16.mxu0 %v4011
  %4147 = vmatmul.mubr.bf16.gmra.mrb[0].mxu0 %v4010
  %v4148 = vpop.f32.mrb[0].mxu0
  %v4149 = vadd.f32 0.0, %v4148
  %v4150 = vpop.f32.mrb[0].mxu0
  %v4151 = vadd.f32 0.0, %v4150
  %v4152 = vpop.f32.mrb[0].mxu0
  %v4153 = vadd.f32 0.0, %v4152
  %v4154 = vpop.f32.mrb[0].mxu0
  %v4155 = vadd.f32 0.0, %v4154
  %4156 = vmatprep.mubr.bf16.mxu0 %v4016
  %4157 = vmatmul.mubr.bf16.gmra.mrb[0].mxu0 %v4015
  %v4158 = vpop.f32.mrb[0].mxu0
  %v4159 = vadd.f32 0.0, %v4158
  %v4160 = vpop.f32.mrb[0].mxu0
  %v4161 = vadd.f32 0.0, %v4160
  %v4162 = vpop.f32.mrb[0].mxu0
  %v4163 = vadd.f32 0.0, %v4162
  %v4164 = vpop.f32.mrb[0].mxu0
  %v4165 = vadd.f32 0.0, %v4164
  %4166 = vmatprep.mubr.bf16.mxu0 %v4021
  %4167 = vmatmul.mubr.bf16.gmra.mrb[0].mxu0 %v4020
  %v4168 = vpop.f32.mrb[0].mxu0
  %v4169 = vadd.f32 0.0, %v4168
  %v4170 = vpop.f32.mrb[0].mxu0
  %v4171 = vadd.f32 0.0, %v4170
  %v4172 = vpop.f32.mrb[0].mxu0
  %v4173 = vadd.f32 0.0, %v4172
  %v4174 = vpop.f32.mrb[0].mxu0
  %v4175 = vadd.f32 0.0, %v4174
  %4176 = vmatprep.mubr.bf16.mxu0 %v4026
  %4177 = vmatmul.mubr.bf16.gmra.mrb[0].mxu0 %v4025
  %v4178 = vpop.f32.mrb[0].mxu0
  %v4179 = vadd.f32 0.0, %v4178
  %v4180 = vpop.f32.mrb[0].mxu0
  %v4181 = vadd.f32 0.0, %v4180
  %v4182 = vpop.f32.mrb[0].mxu0
  %v4183 = vpop.f32.mrb[0].mxu0
  %4184 = vdwg.mxu0
  %4185 = vmatprep.subr.bf16.mxu0 %v4063
  %4186 = vmatpush1.bf16.msra.mxu0 %v4062
  %4187 = vmatprep.subr.bf16.mxu0 %v4065
  %4188 = vmatpush1.bf16.msra.mxu0 %v4064
  %4189 = vmatprep.subr.bf16.mxu0 %v4067
  %4190 = vmatpush1.bf16.msra.mxu0 %v4066
  %4191 = vmatprep.subr.bf16.mxu0 %v4069
  %4192 = vmatpush1.bf16.msra.mxu0 %v4068
  %4193 = vmatprep.subr.bf16.mxu0 %v4071
  %4194 = vmatpush1.bf16.msra.mxu0 %v4070
  %4195 = vmatprep.subr.bf16.mxu0 %v4073
  %4196 = vmatpush1.bf16.msra.mxu0 %v4072
  %4197 = vmatprep.subr.bf16.mxu0 %v4075
  %4198 = vmatpush1.bf16.msra.mxu0 %v4074
  %4199 = vmatprep.subr.bf16.mxu0 %v4077
  %4200 = vmatpush1.bf16.msra.mxu0 %v4076
  %4201 = vmatprep.subr.bf16.mxu0 %v4079
  %4202 = vmatpush1.bf16.msra.mxu0 %v4078
  %4203 = vmatprep.subr.bf16.mxu0 %v4081
  %4204 = vmatpush1.bf16.msra.mxu0 %v4080
  %4205 = vmatprep.subr.bf16.mxu0 %v4083
  %4206 = vmatpush1.bf16.msra.mxu0 %v4082
  %4207 = vmatprep.subr.bf16.mxu0 %v4085
  %4208 = vmatpush1.bf16.msra.mxu0 %v4084
  %4209 = vmatprep.subr.bf16.mxu0 %v4087
  %4210 = vmatpush1.bf16.msra.mxu0 %v4086
  %4211 = vmatprep.subr.bf16.mxu0 %v4089
  %4212 = vmatpush1.bf16.msra.mxu0 %v4088
  %4213 = vmatprep.subr.bf16.mxu0 %v4091
  %4214 = vmatpush1.bf16.msra.mxu0 %v4090
  %4215 = vmatprep.subr.bf16.mxu0 %v4093
  %4216 = vmatpush1.bf16.msra.mxu0 %v4092
  %4217 = vmatprep.mubr.bf16.mxu0 %v4013
  %4218 = vmatmul.mubr.bf16.gmra.mrb[0].mxu0 %v4012
  %v4219 = vpop.f32.mrb[0].mxu0
  %v4220 = vadd.f32 %v4149, %v4219
  %v4221 = vpop.f32.mrb[0].mxu0
  %v4222 = vadd.f32 %v4151, %v4221
  %v4223 = vpop.f32.mrb[0].mxu0
  %v4224 = vadd.f32 %v4153, %v4223
  %v4225 = vpop.f32.mrb[0].mxu0
  %v4226 = vadd.f32 %v4155, %v4225
  %4227 = vmatprep.mubr.bf16.mxu0 %v4018
  %4228 = vmatmul.mubr.bf16.gmra.mrb[0].mxu0 %v4017
  %v4229 = vpop.f32.mrb[0].mxu0
  %v4230 = vadd.f32 %v4159, %v4229
  %v4231 = vpop.f32.mrb[0].mxu0
  %v4232 = vadd.f32 %v4161, %v4231
  %v4233 = vpop.f32.mrb[0].mxu0
  %v4234 = vadd.f32 %v4163, %v4233
  %v4235 = vpop.f32.mrb[0].mxu0
  %v4236 = vadd.f32 %v4165, %v4235
  %4237 = vmatprep.mubr.bf16.mxu0 %v4023
  %4238 = vmatmul.mubr.bf16.gmra.mrb[0].mxu0 %v4022
  %v4239 = vpop.f32.mrb[0].mxu0
  %v4240 = vadd.f32 %v4169, %v4239
  %v4241 = vpop.f32.mrb[0].mxu0
  %v4242 = vadd.f32 %v4171, %v4241
  %v4243 = vpop.f32.mrb[0].mxu0
  %v4244 = vadd.f32 %v4173, %v4243
  %v4245 = vpop.f32.mrb[0].mxu0
  %v4246 = vadd.f32 %v4175, %v4245
  %4247 = vmatprep.mubr.bf16.mxu0 %v4028
  %4248 = vmatmul.mubr.bf16.gmra.mrb[0].mxu0 %v4027
  %v4249 = vpop.f32.mrb[0].mxu0
  %v4250 = vadd.f32 %v4179, %v4249
  %v4251 = vpop.f32.mrb[0].mxu0
  %v4252 = vadd.f32 %v4181, %v4251
  %v4253 = vpop.f32.mrb[0].mxu0
  %v4254 = vpop.f32.mrb[0].mxu0
  %4255 = vdwg.mxu0
  %4256 = vmatprep.subr.bf16.mxu0 %v4095
  %4257 = vmatpush1.bf16.msra.mxu0 %v4094
  %4258 = vmatprep.subr.bf16.mxu0 %v4097
  %4259 = vmatpush1.bf16.msra.mxu0 %v4096
  %4260 = vmatprep.subr.bf16.mxu0 %v4099
  %4261 = vmatpush1.bf16.msra.mxu0 %v4098
  %4262 = vmatprep.subr.bf16.mxu0 %v4101
  %4263 = vmatpush1.bf16.msra.mxu0 %v4100
  %4264 = vmatprep.subr.bf16.mxu0 0
  %4265 = vmatpush1.bf16.msra.mxu0 0
  %4266 = vmatprep.subr.bf16.mxu0 0
  %4267 = vmatpush1.bf16.msra.mxu0 0
  %4268 = vmatprep.subr.bf16.mxu0 0
  %4269 = vmatpush1.bf16.msra.mxu0 0
  %4270 = vmatprep.subr.bf16.mxu0 0
  %4271 = vmatpush1.bf16.msra.mxu0 0
  %4272 = vmatprep.subr.bf16.mxu0 0
  %4273 = vmatpush1.bf16.msra.mxu0 0
  %4274 = vmatprep.subr.bf16.mxu0 0
  %4275 = vmatpush1.bf16.msra.mxu0 0
  %4276 = vmatprep.subr.bf16.mxu0 0
  %4277 = vmatpush1.bf16.msra.mxu0 0
  %4278 = vmatprep.subr.bf16.mxu0 0
  %4279 = vmatpush1.bf16.msra.mxu0 0
  %4280 = vmatprep.subr.bf16.mxu0 0
  %4281 = vmatpush1.bf16.msra.mxu0 0
  %4282 = vmatprep.subr.bf16.mxu0 0
  %4283 = vmatpush1.bf16.msra.mxu0 0
  %4284 = vmatprep.subr.bf16.mxu0 0
  %4285 = vmatpush1.bf16.msra.mxu0 0
  %4286 = vmatprep.subr.bf16.mxu0 0
  %4287 = vmatpush1.bf16.msra.mxu0 0
  %4288 = vmatprep.mubr.bf16.mxu0 0
  %4289 = vmatmul.mubr.bf16.gmra.mrb[0].mxu0 %v4103
  %v4290 = vpop.f32.mrb[0].mxu0
  %v4291 = vadd.f32 %v4220, %v4290
  %v4292 = vpop.f32.mrb[0].mxu0
  %v4293 = vadd.f32 %v4222, %v4292
  %v4294 = vpop.f32.mrb[0].mxu0
  %v4295 = vadd.f32 %v4224, %v4294
  %v4296 = vpop.f32.mrb[0].mxu0
  %v4297 = vadd.f32 %v4226, %v4296
  %4298 = vmatprep.mubr.bf16.mxu0 0
  %4299 = vmatmul.mubr.bf16.gmra.mrb[0].mxu0 %v4106
  %v4300 = vpop.f32.mrb[0].mxu0
  %v4301 = vadd.f32 %v4230, %v4300
  %v4302 = vpop.f32.mrb[0].mxu0
  %v4303 = vadd.f32 %v4232, %v4302
  %v4304 = vpop.f32.mrb[0].mxu0
  %v4305 = vadd.f32 %v4234, %v4304
  %v4306 = vpop.f32.mrb[0].mxu0
  %v4307 = vadd.f32 %v4236, %v4306
  %4308 = vmatprep.mubr.bf16.mxu0 0
  %4309 = vmatmul.mubr.bf16.gmra.mrb[0].mxu0 %v4109
  %v4310 = vpop.f32.mrb[0].mxu0
  %v4311 = vadd.f32 %v4240, %v4310
  %v4312 = vpop.f32.mrb[0].mxu0
  %v4313 = vadd.f32 %v4242, %v4312
  %v4314 = vpop.f32.mrb[0].mxu0
  %v4315 = vadd.f32 %v4244, %v4314
  %v4316 = vpop.f32.mrb[0].mxu0
  %v4317 = vadd.f32 %v4246, %v4316
  %4318 = vmatprep.mubr.bf16.mxu0 0
  %4319 = vmatmul.mubr.bf16.gmra.mrb[0].mxu0 %v4112
  %v4320 = vpop.f32.mrb[0].mxu0
  %v4321 = vadd.f32 %v4250, %v4320
  %v4322 = vpop.f32.mrb[0].mxu0
  %v4323 = vadd.f32 %v4252, %v4322
  %v4324 = vpop.f32.mrb[0].mxu0
  %v4325 = vpop.f32.mrb[0].mxu0
  %4326 = vdwg.mxu0
  %v4327 = vlaneseq
  %v4328 = vshrl.u32 %v4327, 7
  %v4329 = vadd.s32 %v4328, 8
  %v4330 = vadd.s32 %v4328, 16
  %v4331 = vadd.s32 %v4328, 24
  %v4332 = vadd.s32 %v4328, 32
  %v4333 = vadd.s32 %v4328, 40
  %v4334 = vadd.s32 %v4328, 48
  %vm4335 = vcmp.lt.s32.totalorder %v4328, 49
  %vm4336 = vcmp.lt.s32.totalorder %v4329, 49
  %vm4337 = vcmp.lt.s32.totalorder %v4330, 49
  %vm4338 = vcmp.lt.s32.totalorder %v4331, 49
  %vm4339 = vcmp.lt.s32.totalorder %v4332, 49
  %vm4340 = vcmp.lt.s32.totalorder %v4333, 49
  %vm4341 = vcmp.lt.s32.totalorder %v4334, 49
  %v4342 = vsel %vm4335, 1, 0
  %v4343 = vsel %vm4336, 1, 0
  %v4344 = vsel %vm4337, 1, 0
  %v4345 = vsel %vm4338, 1, 0
  %v4346 = vsel %vm4339, 1, 0
  %v4347 = vsel %vm4340, 1, 0
  %v4348 = vsel %vm4341, 1, 0
  %v4349 = vcvt.s32.f32 %v4342
  %v4350 = vcvt.s32.f32 %v4343
  %v4351 = vcvt.s32.f32 %v4344
  %v4352 = vcvt.s32.f32 %v4345
  %v4353 = vcvt.s32.f32 %v4346
  %v4354 = vcvt.s32.f32 %v4347
  %v4355 = vcvt.s32.f32 %v4348
  %v4356 = vmul.f32 %v4291, %v4349
  %v4357 = vmul.f32 %v4293, %v4349
  %v4358 = vmul.f32 %v4295, %v4350
  %v4359 = vmul.f32 %v4297, %v4350
  %v4360 = vmul.f32 %v4301, %v4351
  %v4361 = vmul.f32 %v4303, %v4351
  %v4362 = vmul.f32 %v4305, %v4352
  %v4363 = vmul.f32 %v4307, %v4352
  %v4364 = vmul.f32 %v4311, %v4353
  %v4365 = vmul.f32 %v4313, %v4353
  %v4366 = vmul.f32 %v4315, %v4354
  %v4367 = vmul.f32 %v4317, %v4354
  %v4368 = vmul.f32 %v4321, %v4355
  %v4369 = vmul.f32 %v4323, %v4355
  %v4370 = vld [vmem:[%s8] sm:$0x3]
  %v4371 = vld [vmem:[%s9] sm:$0x3]
  %v4372 = vadd.f32 %v4356, %v4358
  %v4373 = vadd.f32 %v4372, %v4360
  %v4374 = vadd.f32 %v4373, %v4362
  %v4375 = vadd.f32 %v4374, %v4364
  %v4376 = vadd.f32 %v4375, %v4366
  %v4377 = vadd.f32 %v4376, %v4368
  %v4378 = vrot.slane %v4377, 4
  %v4379 = vadd.f32 %v4377, %v4378
  %v4380 = vrot.slane %v4379, 2
  %v4381 = vadd.f32 %v4379, %v4380
  %v4382 = vrot.slane %v4381, 1
  %v4383 = vadd.f32 %v4381, %v4382
  %vm4384 = vcmask 261120
  %v4385 = vsel %vm4384, %v4357, 0.0
  %v4386 = vsel %vm4384, %v4359, 0.0
  %v4387 = vadd.f32 %v4385, %v4386
  %v4388 = vsel %vm4384, %v4361, 0.0
  %v4389 = vadd.f32 %v4387, %v4388
  %v4390 = vsel %vm4384, %v4363, 0.0
  %v4391 = vadd.f32 %v4389, %v4390
  %v4392 = vsel %vm4384, %v4365, 0.0
  %v4393 = vadd.f32 %v4391, %v4392
  %v4394 = vsel %vm4384, %v4367, 0.0
  %v4395 = vadd.f32 %v4393, %v4394
  %v4396 = vsel %vm4384, %v4369, 0.0
  %v4397 = vadd.f32 %v4395, %v4396
  %v4398 = vrot.slane %v4397, 4
  %v4399 = vadd.f32 %v4397, %v4398
  %v4400 = vrot.slane %v4399, 2
  %v4401 = vadd.f32 %v4399, %v4400
  %v4402 = vrot.slane %v4401, 1
  %v4403 = vadd.f32 %v4401, %v4402
  %v4404 = vmul.f32 %v4383, 0.020408163
  %v4405 = vmul.f32 %v4403, 0.020408163
  %v4406 = vmul.f32 %v4356, %v4356
  %v4407 = vmul.f32 %v4357, %v4357
  %v4408 = vmul.f32 %v4358, %v4358
  %v4409 = vmul.f32 %v4359, %v4359
  %v4410 = vmul.f32 %v4360, %v4360
  %v4411 = vmul.f32 %v4361, %v4361
  %v4412 = vmul.f32 %v4362, %v4362
  %v4413 = vmul.f32 %v4363, %v4363
  %v4414 = vmul.f32 %v4364, %v4364
  %v4415 = vmul.f32 %v4365, %v4365
  %v4416 = vmul.f32 %v4366, %v4366
  %v4417 = vmul.f32 %v4367, %v4367
  %v4418 = vmul.f32 %v4368, %v4368
  %v4419 = vmul.f32 %v4369, %v4369
  %v4420 = vadd.f32 %v4406, %v4408
  %v4421 = vadd.f32 %v4420, %v4410
  %v4422 = vadd.f32 %v4421, %v4412
  %v4423 = vadd.f32 %v4422, %v4414
  %v4424 = vadd.f32 %v4423, %v4416
  %v4425 = vadd.f32 %v4424, %v4418
  %v4426 = vrot.slane %v4425, 4
  %v4427 = vadd.f32 %v4425, %v4426
  %v4428 = vrot.slane %v4427, 2
  %v4429 = vadd.f32 %v4427, %v4428
  %v4430 = vrot.slane %v4429, 1
  %v4431 = vadd.f32 %v4429, %v4430
  %v4432 = vsel %vm4384, %v4407, 0.0
  %v4433 = vsel %vm4384, %v4409, 0.0
  %v4434 = vadd.f32 %v4432, %v4433
  %v4435 = vsel %vm4384, %v4411, 0.0
  %v4436 = vadd.f32 %v4434, %v4435
  %v4437 = vsel %vm4384, %v4413, 0.0
  %v4438 = vadd.f32 %v4436, %v4437
  %v4439 = vsel %vm4384, %v4415, 0.0
  %v4440 = vadd.f32 %v4438, %v4439
  %v4441 = vsel %vm4384, %v4417, 0.0
  %v4442 = vadd.f32 %v4440, %v4441
  %v4443 = vsel %vm4384, %v4419, 0.0
  %v4444 = vadd.f32 %v4442, %v4443
  %v4445 = vrot.slane %v4444, 4
  %v4446 = vadd.f32 %v4444, %v4445
  %v4447 = vrot.slane %v4446, 2
  %v4448 = vadd.f32 %v4446, %v4447
  %v4449 = vrot.slane %v4448, 1
  %v4450 = vadd.f32 %v4448, %v4449
  %v4451 = vmul.f32 %v4431, 0.020408163
  %v4452 = vmul.f32 %v4450, 0.020408163
  %v4453 = vmul.f32 %v4404, %v4404
  %v4454 = vmul.f32 %v4405, %v4405
  %v4455 = vsub.f32 %v4451, %v4453
  %v4456 = vsub.f32 %v4452, %v4454
  %v4457 = vadd.f32 %v4455, 1e-05
  %v4458 = vadd.f32 %v4456, 1e-05
  %v4459 = vrsqrt.pop %v4457
  %v4460 = vrsqrt.pop %v4458
  %v4462 = vlaneseq
  %v4463 = vshrl.u32 %v4462, 7
  %v4464 = vsub.s32 0, %v4463
  %v4465 = vrot.slane %v4370, %v4464
  %v4466 = vlaneseq
  %v4467 = vshrl.u32 %v4466, 7
  %v4468 = vsub.s32 1, %v4467
  %v4469 = vrot.slane %v4370, %v4468
  %v4472 = vmul.f32 %v4459, %v4465
  %v4473 = vmul.f32 %v4460, %v4469
  %v4474 = vmul.f32 %v4404, %v4472
  %v4475 = vmul.f32 %v4405, %v4473
  %v4478 = vcombine.low %v4474, %v4475
  %v4480 = vunpack.c.l.s4 1966171168
  %v4481 = vunpack.c.0.s8 %v4480
  %v4482 = vlaneseq
  %v4483 = vshrl.u32 %v4482, 7
  %v4484 = vsub.s32 %v4481, %v4483
  %v4485 = vrot.slane %v4478, %v4484
  %v4487 = vunpack.c.l.s4 1966171168
  %v4488 = vunpack.c.0.s8 %v4487
  %v4489 = vlaneseq
  %v4490 = vshrl.u32 %v4489, 7
  %v4491 = vsub.s32 %v4488, %v4490
  %v4492 = vrot.slane %v4485, %v4491
  %v4494 = vsub.f32 %v4371, %v4492
  %v4495 = vlaneseq
  %v4496 = vshrl.u32 %v4495, 7
  %v4497 = vsub.s32 0, %v4496
  %v4498 = vrot.slane %v4472, %v4497
  %v4499 = vlaneseq
  %v4500 = vshrl.u32 %v4499, 7
  %v4501 = vsub.s32 0, %v4500
  %v4502 = vrot.slane %v4473, %v4501
  %v4503 = vmul.f32 %v4356, %v4498
  %v4504 = vmul.f32 %v4357, %v4502
  %v4505 = vmul.f32 %v4358, %v4498
  %v4506 = vmul.f32 %v4359, %v4502
  %v4507 = vmul.f32 %v4360, %v4498
  %v4508 = vmul.f32 %v4361, %v4502
  %v4509 = vmul.f32 %v4362, %v4498
  %v4510 = vmul.f32 %v4363, %v4502
  %v4511 = vmul.f32 %v4364, %v4498
  %v4512 = vmul.f32 %v4365, %v4502
  %v4513 = vmul.f32 %v4366, %v4498
  %v4514 = vmul.f32 %v4367, %v4502
  %v4515 = vmul.f32 %v4368, %v4498
  %v4516 = vmul.f32 %v4369, %v4502
  %v4518 = vlaneseq
  %v4519 = vshrl.u32 %v4518, 7
  %v4520 = vsub.s32 0, %v4519
  %v4521 = vrot.slane %v4494, %v4520
  %v4522 = vlaneseq
  %v4523 = vshrl.u32 %v4522, 7
  %v4524 = vsub.s32 1, %v4523
  %v4525 = vrot.slane %v4494, %v4524
  %v4528 = vadd.f32 %v4503, %v4521
  %v4529 = vadd.f32 %v4504, %v4525
  %v4530 = vadd.f32 %v4505, %v4521
  %v4531 = vadd.f32 %v4506, %v4525
  %v4532 = vadd.f32 %v4507, %v4521
  %v4533 = vadd.f32 %v4508, %v4525
  %v4534 = vadd.f32 %v4509, %v4521
  %v4535 = vadd.f32 %v4510, %v4525
  %v4536 = vadd.f32 %v4511, %v4521
  %v4537 = vadd.f32 %v4512, %v4525
  %v4538 = vadd.f32 %v4513, %v4521
  %v4539 = vadd.f32 %v4514, %v4525
  %v4540 = vadd.f32 %v4515, %v4521
  %v4541 = vadd.f32 %v4516, %v4525
  %s4542 = smul.u32 4, 20
  %s4543 = smul.u32 %s4542, 10
  %s4544 = sshll.u32 %s4543, 4
  %4545 = dma.done %s662, %s4544
  %v4546 = vpack.c.bf16 %v4530, %v4528
  %v4547 = vpack.c.bf16 %v4531, %v4529
  %v4548 = vpack.c.bf16 %v4534, %v4532
  %v4549 = vpack.c.bf16 %v4535, %v4533
  %v4550 = vpack.c.bf16 %v4538, %v4536
  %v4551 = vpack.c.bf16 %v4539, %v4537
  %v4552 = vpack.c.bf16 %v4540, %v4540
  %v4553 = vpack.c.bf16 %v4541, %v4541
  %v4554 = vld [vmem:[#allocation3] sm:$0xff]
  %v4555 = vld [vmem:[#allocation3 + $0x8] sm:$0xff]
  %v4556 = vld [vmem:[#allocation3 + $0x10] sm:$0xff]
  %v4557 = vld [vmem:[#allocation3 + $0x18] sm:$0xff]
  %v4558 = vld [vmem:[#allocation3 + $0x20] sm:$0xff]
  %v4559 = vld [vmem:[#allocation3 + $0x28] sm:$0xff]
  %v4560 = vld [vmem:[#allocation3 + $0x30] sm:$0xff]
  %v4561 = vld [vmem:[#allocation3 + $0x38] sm:$0xff]
  %v4562 = vld [vmem:[#allocation3 + $0x40] sm:$0xff]
  %v4563 = vld [vmem:[#allocation3 + $0x48] sm:$0xff]
  %v4564 = vld [vmem:[#allocation3 + $0x50] sm:$0xff]
  %v4565 = vld [vmem:[#allocation3 + $0x58] sm:$0xff]
  %v4566 = vld [vmem:[#allocation3 + $0x60] sm:$0xff]
  %v4567 = vld [vmem:[#allocation3 + $0x68] sm:$0xff]
  %v4568 = vld [vmem:[#allocation3 + $0x70] sm:$0xff]
  %v4569 = vld [vmem:[#allocation3 + $0x78] sm:$0xff]
  %v4570 = vld [vmem:[#allocation3 + $0x80] sm:$0xff]
  %v4571 = vld [vmem:[#allocation3 + $0x88] sm:$0xff]
  %v4572 = vld [vmem:[#allocation3 + $0x90] sm:$0xff]
  %v4573 = vld [vmem:[#allocation3 + $0x98] sm:$0xff]
  %v4574 = vld [vmem:[#allocation3 + $0xa0] sm:$0xff]
  %v4575 = vld [vmem:[#allocation3 + $0xa8] sm:$0xff]
  %v4576 = vld [vmem:[#allocation3 + $0xb0] sm:$0xff]
  %v4577 = vld [vmem:[#allocation3 + $0xb8] sm:$0xff]
  %v4578 = vld [vmem:[#allocation3 + $0xc0] sm:$0xff]
  %v4579 = vld [vmem:[#allocation3 + $0xc8] sm:$0xff]
  %v4580 = vld [vmem:[#allocation3 + $0xd0] sm:$0xff]
  %v4581 = vld [vmem:[#allocation3 + $0xd8] sm:$0xff]
  %v4582 = vld [vmem:[#allocation3 + $0xe0] sm:$0xff]
  %v4583 = vld [vmem:[#allocation3 + $0xe8] sm:$0xff]
  %v4584 = vld [vmem:[#allocation3 + $0xf0] sm:$0xff]
  %v4585 = vld [vmem:[#allocation3 + $0xf8] sm:$0xff]
  %v4586 = vld [vmem:[#allocation3 + $0x100] sm:$0xff]
  %v4587 = vld [vmem:[#allocation3 + $0x108] sm:$0xff]
  %v4588 = vld [vmem:[#allocation3 + $0x110] sm:$0xff]
  %v4589 = vld [vmem:[#allocation3 + $0x118] sm:$0xff]
  %v4590 = vld [vmem:[#allocation3 + $0x120] sm:$0xff]
  %v4591 = vld [vmem:[#allocation3 + $0x128] sm:$0xff]
  %v4592 = vld [vmem:[#allocation3 + $0x130] sm:$0xff]
  %v4593 = vld [vmem:[#allocation3 + $0x138] sm:$0xff]
  %v4594 = vld [vmem:[#allocation3 + $0x140] sm:$0xff]
  %v4595 = vld [vmem:[#allocation3 + $0x148] sm:$0xff]
  %v4596 = vld [vmem:[#allocation3 + $0x150] sm:$0xff]
  %v4597 = vld [vmem:[#allocation3 + $0x158] sm:$0xff]
  %v4598 = vld [vmem:[#allocation3 + $0x160] sm:$0xff]
  %v4599 = vld [vmem:[#allocation3 + $0x168] sm:$0xff]
  %v4600 = vld [vmem:[#allocation3 + $0x170] sm:$0xff]
  %v4601 = vld [vmem:[#allocation3 + $0x178] sm:$0xff]
  %v4602 = vld [vmem:[#allocation3 + $0x180] sm:$0xff]
  %v4603 = vld [vmem:[#allocation3 + $0x188] sm:$0xff]
  %v4604 = vld [vmem:[#allocation3 + $0x190] sm:$0xff]
  %v4605 = vld [vmem:[#allocation3 + $0x198] sm:$0xff]
  %v4606 = vld [vmem:[#allocation3 + $0x1a0] sm:$0xff]
  %v4607 = vld [vmem:[#allocation3 + $0x1a8] sm:$0xff]
  %v4608 = vld [vmem:[#allocation3 + $0x1b0] sm:$0xff]
  %v4609 = vld [vmem:[#allocation3 + $0x1b8] sm:$0xff]
  %v4610 = vld [vmem:[#allocation3 + $0x1c0] sm:$0xff]
  %v4611 = vld [vmem:[#allocation3 + $0x1c8] sm:$0xff]
  %v4612 = vld [vmem:[#allocation3 + $0x1d0] sm:$0xff]
  %v4613 = vld [vmem:[#allocation3 + $0x1d8] sm:$0xff]
  %v4614 = vld [vmem:[#allocation3 + $0x1e0] sm:$0xff]
  %v4615 = vld [vmem:[#allocation3 + $0x1e8] sm:$0xff]
  %v4616 = vld [vmem:[#allocation3 + $0x1f0] sm:$0xff]
  %v4617 = vld [vmem:[#allocation3 + $0x1f8] sm:$0xff]
  %v4618 = vld [vmem:[#allocation3 + $0x200] sm:$0xff]
  %v4619 = vld [vmem:[#allocation3 + $0x208] sm:$0xff]
  %v4620 = vld [vmem:[#allocation3 + $0x210] sm:$0xff]
  %v4621 = vld [vmem:[#allocation3 + $0x218] sm:$0xff]
  %v4622 = vld [vmem:[#allocation3 + $0x220] sm:$0xff]
  %v4623 = vld [vmem:[#allocation3 + $0x228] sm:$0xff]
  %v4624 = vld [vmem:[#allocation3 + $0x230] sm:$0xff]
  %v4625 = vld [vmem:[#allocation3 + $0x238] sm:$0xff]
  %v4626 = vld [vmem:[#allocation3 + $0x240] sm:$0xff]
  %v4627 = vld [vmem:[#allocation3 + $0x248] sm:$0xff]
  %v4628 = vld [vmem:[#allocation3 + $0x250] sm:$0xff]
  %v4629 = vld [vmem:[#allocation3 + $0x258] sm:$0xff]
  %v4630 = vld [vmem:[#allocation3 + $0x260] sm:$0xff]
  %v4631 = vld [vmem:[#allocation3 + $0x268] sm:$0xff]
  %v4632 = vld [vmem:[#allocation3 + $0x270] sm:$0xff]
  %v4633 = vld [vmem:[#allocation3 + $0x278] sm:$0xff]
  %v4634 = vld [vmem:[#allocation3 + $0x280] sm:$0xff]
  %v4635 = vld [vmem:[#allocation3 + $0x288] sm:$0xff]
  %v4636 = vld [vmem:[#allocation3 + $0x290] sm:$0xff]
  %v4637 = vld [vmem:[#allocation3 + $0x298] sm:$0xff]
  %v4638 = vld [vmem:[#allocation3 + $0x2a0] sm:$0xff]
  %v4639 = vld [vmem:[#allocation3 + $0x2a8] sm:$0xff]
  %v4640 = vld [vmem:[#allocation3 + $0x2b0] sm:$0xff]
  %v4641 = vld [vmem:[#allocation3 + $0x2b8] sm:$0xff]
  %v4642 = vld [vmem:[#allocation3 + $0x2c0] sm:$0xff]
  %v4643 = vld [vmem:[#allocation3 + $0x2c8] sm:$0xff]
  %v4644 = vld [vmem:[#allocation3 + $0x2d0] sm:$0xff]
  %v4645 = vld [vmem:[#allocation3 + $0x2d8] sm:$0xff]
  %v4646 = vld [vmem:[#allocation3 + $0x2e0] sm:$0xff]
  %v4647 = vld [vmem:[#allocation3 + $0x2e8] sm:$0xff]
  %v4648 = vld [vmem:[#allocation3 + $0x2f0] sm:$0xff]
  %v4649 = vld [vmem:[#allocation3 + $0x2f8] sm:$0xff]
  %v4650 = vld [vmem:[#allocation3 + $0x300] sm:$0xff]
  %v4651 = vld [vmem:[#allocation3 + $0x308] sm:$0xff]
  %v4652 = vld [vmem:[#allocation3 + $0x310] sm:$0xff]
  %v4653 = vld [vmem:[#allocation3 + $0x318] sm:$0xff]
  %v4655 = vsel %vm4384, %v4547, 0
  %v4658 = vsel %vm4384, %v4549, 0
  %v4661 = vsel %vm4384, %v4551, 0
  %v4664 = vsel %vm4384, %v4553, 0
  %4666 = vmatprep.subr.bf16.mxu0 %v4555
  %4667 = vmatpush1.bf16.msra.mxu0 %v4554
  %4668 = vmatprep.subr.bf16.mxu0 %v4565
  %4669 = vmatpush1.bf16.msra.mxu0 %v4564
  %4670 = vmatprep.subr.bf16.mxu0 %v4575
  %4671 = vmatpush1.bf16.msra.mxu0 %v4574
  %4672 = vmatprep.subr.bf16.mxu0 %v4585
  %4673 = vmatpush1.bf16.msra.mxu0 %v4584
  %4674 = vmatprep.subr.bf16.mxu0 %v4595
  %4675 = vmatpush1.bf16.msra.mxu0 %v4594
  %4676 = vmatprep.subr.bf16.mxu0 %v4605
  %4677 = vmatpush1.bf16.msra.mxu0 %v4604
  %4678 = vmatprep.subr.bf16.mxu0 %v4615
  %4679 = vmatpush1.bf16.msra.mxu0 %v4614
  %4680 = vmatprep.subr.bf16.mxu0 %v4625
  %4681 = vmatpush1.bf16.msra.mxu0 %v4624
  %4682 = vmatprep.subr.bf16.mxu0 %v4635
  %4683 = vmatpush1.bf16.msra.mxu0 %v4634
  %4684 = vmatprep.subr.bf16.mxu0 %v4645
  %4685 = vmatpush1.bf16.msra.mxu0 %v4644
  %4686 = vmatprep.subr.bf16.mxu0 0
  %4687 = vmatpush1.bf16.msra.mxu0 0
  %4688 = vmatprep.subr.bf16.mxu0 0
  %4689 = vmatpush1.bf16.msra.mxu0 0
  %4690 = vmatprep.subr.bf16.mxu0 0
  %4691 = vmatpush1.bf16.msra.mxu0 0
  %4692 = vmatprep.subr.bf16.mxu0 0
  %4693 = vmatpush1.bf16.msra.mxu0 0
  %4694 = vmatprep.subr.bf16.mxu0 0
  %4695 = vmatpush1.bf16.msra.mxu0 0
  %4696 = vmatprep.subr.bf16.mxu0 0
  %4697 = vmatpush1.bf16.msra.mxu0 0
  %4698 = vmatprep.mubr.bf16.mxu0 %v4655
  %4699 = vmatmul.mubr.bf16.gmra.mrb[0].mxu0 %v4546
  %v4700 = vpop.f32.mrb[0].mxu0
  %v4701 = vadd.f32 0.0, %v4700
  %v4702 = vpop.f32.mrb[0].mxu0
  %v4703 = vadd.f32 0.0, %v4702
  %v4704 = vpop.f32.mrb[0].mxu0
  %v4705 = vadd.f32 0.0, %v4704
  %v4706 = vpop.f32.mrb[0].mxu0
  %v4707 = vadd.f32 0.0, %v4706
  %4708 = vmatprep.mubr.bf16.mxu0 %v4658
  %4709 = vmatmul.mubr.bf16.gmra.mrb[0].mxu0 %v4548
  %v4710 = vpop.f32.mrb[0].mxu0
  %v4711 = vadd.f32 0.0, %v4710
  %v4712 = vpop.f32.mrb[0].mxu0
  %v4713 = vadd.f32 0.0, %v4712
  %v4714 = vpop.f32.mrb[0].mxu0
  %v4715 = vadd.f32 0.0, %v4714
  %v4716 = vpop.f32.mrb[0].mxu0
  %v4717 = vadd.f32 0.0, %v4716
  %4718 = vmatprep.mubr.bf16.mxu0 %v4661
  %4719 = vmatmul.mubr.bf16.gmra.mrb[0].mxu0 %v4550
  %v4720 = vpop.f32.mrb[0].mxu0
  %v4721 = vadd.f32 0.0, %v4720
  %v4722 = vpop.f32.mrb[0].mxu0
  %v4723 = vadd.f32 0.0, %v4722
  %v4724 = vpop.f32.mrb[0].mxu0
  %v4725 = vadd.f32 0.0, %v4724
  %v4726 = vpop.f32.mrb[0].mxu0
  %v4727 = vadd.f32 0.0, %v4726
  %4728 = vmatprep.mubr.bf16.mxu0 %v4664
  %4729 = vmatmul.mubr.bf16.gmra.mrb[0].mxu0 %v4552
  %v4730 = vpop.f32.mrb[0].mxu0
  %v4731 = vadd.f32 0.0, %v4730
  %v4732 = vpop.f32.mrb[0].mxu0
  %v4733 = vadd.f32 0.0, %v4732
  %v4734 = vpop.f32.mrb[0].mxu0
  %v4735 = vpop.f32.mrb[0].mxu0
  %4736 = vdwg.mxu0
  %4737 = vmatprep.subr.bf16.mxu0 %v4557
  %4738 = vmatpush1.bf16.msra.mxu0 %v4556
  %4739 = vmatprep.subr.bf16.mxu0 %v4567
  %4740 = vmatpush1.bf16.msra.mxu0 %v4566
  %4741 = vmatprep.subr.bf16.mxu0 %v4577
  %4742 = vmatpush1.bf16.msra.mxu0 %v4576
  %4743 = vmatprep.subr.bf16.mxu0 %v4587
  %4744 = vmatpush1.bf16.msra.mxu0 %v4586
  %4745 = vmatprep.subr.bf16.mxu0 %v4597
  %4746 = vmatpush1.bf16.msra.mxu0 %v4596
  %4747 = vmatprep.subr.bf16.mxu0 %v4607
  %4748 = vmatpush1.bf16.msra.mxu0 %v4606
  %4749 = vmatprep.subr.bf16.mxu0 %v4617
  %4750 = vmatpush1.bf16.msra.mxu0 %v4616
  %4751 = vmatprep.subr.bf16.mxu0 %v4627
  %4752 = vmatpush1.bf16.msra.mxu0 %v4626
  %4753 = vmatprep.subr.bf16.mxu0 %v4637
  %4754 = vmatpush1.bf16.msra.mxu0 %v4636
  %4755 = vmatprep.subr.bf16.mxu0 %v4647
  %4756 = vmatpush1.bf16.msra.mxu0 %v4646
  %4757 = vmatprep.subr.bf16.mxu0 0
  %4758 = vmatpush1.bf16.msra.mxu0 0
  %4759 = vmatprep.subr.bf16.mxu0 0
  %4760 = vmatpush1.bf16.msra.mxu0 0
  %4761 = vmatprep.subr.bf16.mxu0 0
  %4762 = vmatpush1.bf16.msra.mxu0 0
  %4763 = vmatprep.subr.bf16.mxu0 0
  %4764 = vmatpush1.bf16.msra.mxu0 0
  %4765 = vmatprep.subr.bf16.mxu0 0
  %4766 = vmatpush1.bf16.msra.mxu0 0
  %4767 = vmatprep.subr.bf16.mxu0 0
  %4768 = vmatpush1.bf16.msra.mxu0 0
  %4769 = vmatprep.mubr.bf16.mxu0 %v4655
  %4770 = vmatmul.mubr.bf16.gmra.mrb[0].mxu0 %v4546
  %v4771 = vpop.f32.mrb[0].mxu0
  %v4772 = vadd.f32 0.0, %v4771
  %v4773 = vpop.f32.mrb[0].mxu0
  %v4774 = vadd.f32 0.0, %v4773
  %v4775 = vpop.f32.mrb[0].mxu0
  %v4776 = vadd.f32 0.0, %v4775
  %v4777 = vpop.f32.mrb[0].mxu0
  %v4778 = vadd.f32 0.0, %v4777
  %4779 = vmatprep.mubr.bf16.mxu0 %v4658
  %4780 = vmatmul.mubr.bf16.gmra.mrb[0].mxu0 %v4548
  %v4781 = vpop.f32.mrb[0].mxu0
  %v4782 = vadd.f32 0.0, %v4781
  %v4783 = vpop.f32.mrb[0].mxu0
  %v4784 = vadd.f32 0.0, %v4783
  %v4785 = vpop.f32.mrb[0].mxu0
  %v4786 = vadd.f32 0.0, %v4785
  %v4787 = vpop.f32.mrb[0].mxu0
  %v4788 = vadd.f32 0.0, %v4787
  %4789 = vmatprep.mubr.bf16.mxu0 %v4661
  %4790 = vmatmul.mubr.bf16.gmra.mrb[0].mxu0 %v4550
  %v4791 = vpop.f32.mrb[0].mxu0
  %v4792 = vadd.f32 0.0, %v4791
  %v4793 = vpop.f32.mrb[0].mxu0
  %v4794 = vadd.f32 0.0, %v4793
  %v4795 = vpop.f32.mrb[0].mxu0
  %v4796 = vadd.f32 0.0, %v4795
  %v4797 = vpop.f32.mrb[0].mxu0
  %v4798 = vadd.f32 0.0, %v4797
  %4799 = vmatprep.mubr.bf16.mxu0 %v4664
  %4800 = vmatmul.mubr.bf16.gmra.mrb[0].mxu0 %v4552
  %v4801 = vpop.f32.mrb[0].mxu0
  %v4802 = vadd.f32 0.0, %v4801
  %v4803 = vpop.f32.mrb[0].mxu0
  %v4804 = vadd.f32 0.0, %v4803
  %v4805 = vpop.f32.mrb[0].mxu0
  %v4806 = vpop.f32.mrb[0].mxu0
  %4807 = vdwg.mxu0
  %4808 = vmatprep.subr.bf16.mxu0 %v4559
  %4809 = vmatpush1.bf16.msra.mxu0 %v4558
  %4810 = vmatprep.subr.bf16.mxu0 %v4569
  %4811 = vmatpush1.bf16.msra.mxu0 %v4568
  %4812 = vmatprep.subr.bf16.mxu0 %v4579
  %4813 = vmatpush1.bf16.msra.mxu0 %v4578
  %4814 = vmatprep.subr.bf16.mxu0 %v4589
  %4815 = vmatpush1.bf16.msra.mxu0 %v4588
  %4816 = vmatprep.subr.bf16.mxu0 %v4599
  %4817 = vmatpush1.bf16.msra.mxu0 %v4598
  %4818 = vmatprep.subr.bf16.mxu0 %v4609
  %4819 = vmatpush1.bf16.msra.mxu0 %v4608
  %4820 = vmatprep.subr.bf16.mxu0 %v4619
  %4821 = vmatpush1.bf16.msra.mxu0 %v4618
  %4822 = vmatprep.subr.bf16.mxu0 %v4629
  %4823 = vmatpush1.bf16.msra.mxu0 %v4628
  %4824 = vmatprep.subr.bf16.mxu0 %v4639
  %4825 = vmatpush1.bf16.msra.mxu0 %v4638
  %4826 = vmatprep.subr.bf16.mxu0 %v4649
  %4827 = vmatpush1.bf16.msra.mxu0 %v4648
  %4828 = vmatprep.subr.bf16.mxu0 0
  %4829 = vmatpush1.bf16.msra.mxu0 0
  %4830 = vmatprep.subr.bf16.mxu0 0
  %4831 = vmatpush1.bf16.msra.mxu0 0
  %4832 = vmatprep.subr.bf16.mxu0 0
  %4833 = vmatpush1.bf16.msra.mxu0 0
  %4834 = vmatprep.subr.bf16.mxu0 0
  %4835 = vmatpush1.bf16.msra.mxu0 0
  %4836 = vmatprep.subr.bf16.mxu0 0
  %4837 = vmatpush1.bf16.msra.mxu0 0
  %4838 = vmatprep.subr.bf16.mxu0 0
  %4839 = vmatpush1.bf16.msra.mxu0 0
  %4840 = vmatprep.mubr.bf16.mxu0 %v4655
  %4841 = vmatmul.mubr.bf16.gmra.mrb[0].mxu0 %v4546
  %v4842 = vpop.f32.mrb[0].mxu0
  %v4843 = vadd.f32 0.0, %v4842
  %v4844 = vpop.f32.mrb[0].mxu0
  %v4845 = vadd.f32 0.0, %v4844
  %v4846 = vpop.f32.mrb[0].mxu0
  %v4847 = vadd.f32 0.0, %v4846
  %v4848 = vpop.f32.mrb[0].mxu0
  %v4849 = vadd.f32 0.0, %v4848
  %4850 = vmatprep.mubr.bf16.mxu0 %v4658
  %4851 = vmatmul.mubr.bf16.gmra.mrb[0].mxu0 %v4548
  %v4852 = vpop.f32.mrb[0].mxu0
  %v4853 = vadd.f32 0.0, %v4852
  %v4854 = vpop.f32.mrb[0].mxu0
  %v4855 = vadd.f32 0.0, %v4854
  %v4856 = vpop.f32.mrb[0].mxu0
  %v4857 = vadd.f32 0.0, %v4856
  %v4858 = vpop.f32.mrb[0].mxu0
  %v4859 = vadd.f32 0.0, %v4858
  %4860 = vmatprep.mubr.bf16.mxu0 %v4661
  %4861 = vmatmul.mubr.bf16.gmra.mrb[0].mxu0 %v4550
  %v4862 = vpop.f32.mrb[0].mxu0
  %v4863 = vadd.f32 0.0, %v4862
  %v4864 = vpop.f32.mrb[0].mxu0
  %v4865 = vadd.f32 0.0, %v4864
  %v4866 = vpop.f32.mrb[0].mxu0
  %v4867 = vadd.f32 0.0, %v4866
  %v4868 = vpop.f32.mrb[0].mxu0
  %v4869 = vadd.f32 0.0, %v4868
  %4870 = vmatprep.mubr.bf16.mxu0 %v4664
  %4871 = vmatmul.mubr.bf16.gmra.mrb[0].mxu0 %v4552
  %v4872 = vpop.f32.mrb[0].mxu0
  %v4873 = vadd.f32 0.0, %v4872
  %v4874 = vpop.f32.mrb[0].mxu0
  %v4875 = vadd.f32 0.0, %v4874
  %v4876 = vpop.f32.mrb[0].mxu0
  %v4877 = vpop.f32.mrb[0].mxu0
  %4878 = vdwg.mxu0
  %4879 = vmatprep.subr.bf16.mxu0 %v4561
  %4880 = vmatpush1.bf16.msra.mxu0 %v4560
  %4881 = vmatprep.subr.bf16.mxu0 %v4571
  %4882 = vmatpush1.bf16.msra.mxu0 %v4570
  %4883 = vmatprep.subr.bf16.mxu0 %v4581
  %4884 = vmatpush1.bf16.msra.mxu0 %v4580
  %4885 = vmatprep.subr.bf16.mxu0 %v4591
  %4886 = vmatpush1.bf16.msra.mxu0 %v4590
  %4887 = vmatprep.subr.bf16.mxu0 %v4601
  %4888 = vmatpush1.bf16.msra.mxu0 %v4600
  %4889 = vmatprep.subr.bf16.mxu0 %v4611
  %4890 = vmatpush1.bf16.msra.mxu0 %v4610
  %4891 = vmatprep.subr.bf16.mxu0 %v4621
  %4892 = vmatpush1.bf16.msra.mxu0 %v4620
  %4893 = vmatprep.subr.bf16.mxu0 %v4631
  %4894 = vmatpush1.bf16.msra.mxu0 %v4630
  %4895 = vmatprep.subr.bf16.mxu0 %v4641
  %4896 = vmatpush1.bf16.msra.mxu0 %v4640
  %4897 = vmatprep.subr.bf16.mxu0 %v4651
  %4898 = vmatpush1.bf16.msra.mxu0 %v4650
  %4899 = vmatprep.subr.bf16.mxu0 0
  %4900 = vmatpush1.bf16.msra.mxu0 0
  %4901 = vmatprep.subr.bf16.mxu0 0
  %4902 = vmatpush1.bf16.msra.mxu0 0
  %4903 = vmatprep.subr.bf16.mxu0 0
  %4904 = vmatpush1.bf16.msra.mxu0 0
  %4905 = vmatprep.subr.bf16.mxu0 0
  %4906 = vmatpush1.bf16.msra.mxu0 0
  %4907 = vmatprep.subr.bf16.mxu0 0
  %4908 = vmatpush1.bf16.msra.mxu0 0
  %4909 = vmatprep.subr.bf16.mxu0 0
  %4910 = vmatpush1.bf16.msra.mxu0 0
  %4911 = vmatprep.mubr.bf16.mxu0 %v4655
  %4912 = vmatmul.mubr.bf16.gmra.mrb[0].mxu0 %v4546
  %v4913 = vpop.f32.mrb[0].mxu0
  %v4914 = vadd.f32 0.0, %v4913
  %v4915 = vpop.f32.mrb[0].mxu0
  %v4916 = vadd.f32 0.0, %v4915
  %v4917 = vpop.f32.mrb[0].mxu0
  %v4918 = vadd.f32 0.0, %v4917
  %v4919 = vpop.f32.mrb[0].mxu0
  %v4920 = vadd.f32 0.0, %v4919
  %4921 = vmatprep.mubr.bf16.mxu0 %v4658
  %4922 = vmatmul.mubr.bf16.gmra.mrb[0].mxu0 %v4548
  %v4923 = vpop.f32.mrb[0].mxu0
  %v4924 = vadd.f32 0.0, %v4923
  %v4925 = vpop.f32.mrb[0].mxu0
  %v4926 = vadd.f32 0.0, %v4925
  %v4927 = vpop.f32.mrb[0].mxu0
  %v4928 = vadd.f32 0.0, %v4927
  %v4929 = vpop.f32.mrb[0].mxu0
  %v4930 = vadd.f32 0.0, %v4929
  %4931 = vmatprep.mubr.bf16.mxu0 %v4661
  %4932 = vmatmul.mubr.bf16.gmra.mrb[0].mxu0 %v4550
  %v4933 = vpop.f32.mrb[0].mxu0
  %v4934 = vadd.f32 0.0, %v4933
  %v4935 = vpop.f32.mrb[0].mxu0
  %v4936 = vadd.f32 0.0, %v4935
  %v4937 = vpop.f32.mrb[0].mxu0
  %v4938 = vadd.f32 0.0, %v4937
  %v4939 = vpop.f32.mrb[0].mxu0
  %v4940 = vadd.f32 0.0, %v4939
  %4941 = vmatprep.mubr.bf16.mxu0 %v4664
  %4942 = vmatmul.mubr.bf16.gmra.mrb[0].mxu0 %v4552
  %v4943 = vpop.f32.mrb[0].mxu0
  %v4944 = vadd.f32 0.0, %v4943
  %v4945 = vpop.f32.mrb[0].mxu0
  %v4946 = vadd.f32 0.0, %v4945
  %v4947 = vpop.f32.mrb[0].mxu0
  %v4948 = vpop.f32.mrb[0].mxu0
  %4949 = vdwg.mxu0
  %4950 = vmatprep.subr.bf16.mxu0 %v4563
  %4951 = vmatpush1.bf16.msra.mxu0 %v4562
  %4952 = vmatprep.subr.bf16.mxu0 %v4573
  %4953 = vmatpush1.bf16.msra.mxu0 %v4572
  %4954 = vmatprep.subr.bf16.mxu0 %v4583
  %4955 = vmatpush1.bf16.msra.mxu0 %v4582
  %4956 = vmatprep.subr.bf16.mxu0 %v4593
  %4957 = vmatpush1.bf16.msra.mxu0 %v4592
  %4958 = vmatprep.subr.bf16.mxu0 %v4603
  %4959 = vmatpush1.bf16.msra.mxu0 %v4602
  %4960 = vmatprep.subr.bf16.mxu0 %v4613
  %4961 = vmatpush1.bf16.msra.mxu0 %v4612
  %4962 = vmatprep.subr.bf16.mxu0 %v4623
  %4963 = vmatpush1.bf16.msra.mxu0 %v4622
  %4964 = vmatprep.subr.bf16.mxu0 %v4633
  %4965 = vmatpush1.bf16.msra.mxu0 %v4632
  %4966 = vmatprep.subr.bf16.mxu0 %v4643
  %4967 = vmatpush1.bf16.msra.mxu0 %v4642
  %4968 = vmatprep.subr.bf16.mxu0 %v4653
  %4969 = vmatpush1.bf16.msra.mxu0 %v4652
  %4970 = vmatprep.subr.bf16.mxu0 0
  %4971 = vmatpush1.bf16.msra.mxu0 0
  %4972 = vmatprep.subr.bf16.mxu0 0
  %4973 = vmatpush1.bf16.msra.mxu0 0
  %4974 = vmatprep.subr.bf16.mxu0 0
  %4975 = vmatpush1.bf16.msra.mxu0 0
  %4976 = vmatprep.subr.bf16.mxu0 0
  %4977 = vmatpush1.bf16.msra.mxu0 0
  %4978 = vmatprep.subr.bf16.mxu0 0
  %4979 = vmatpush1.bf16.msra.mxu0 0
  %4980 = vmatprep.subr.bf16.mxu0 0
  %4981 = vmatpush1.bf16.msra.mxu0 0
  %4982 = vmatprep.mubr.bf16.mxu0 %v4655
  %4983 = vmatmul.mubr.bf16.gmra.mrb[0].mxu0 %v4546
  %v4984 = vpop.f32.mrb[0].mxu0
  %v4985 = vadd.f32 0.0, %v4984
  %v4986 = vpop.f32.mrb[0].mxu0
  %v4987 = vadd.f32 0.0, %v4986
  %v4988 = vpop.f32.mrb[0].mxu0
  %v4989 = vadd.f32 0.0, %v4988
  %v4990 = vpop.f32.mrb[0].mxu0
  %v4991 = vadd.f32 0.0, %v4990
  %4992 = vmatprep.mubr.bf16.mxu0 %v4658
  %4993 = vmatmul.mubr.bf16.gmra.mrb[0].mxu0 %v4548
  %v4994 = vpop.f32.mrb[0].mxu0
  %v4995 = vadd.f32 0.0, %v4994
  %v4996 = vpop.f32.mrb[0].mxu0
  %v4997 = vadd.f32 0.0, %v4996
  %v4998 = vpop.f32.mrb[0].mxu0
  %v4999 = vadd.f32 0.0, %v4998
  %v5000 = vpop.f32.mrb[0].mxu0
  %v5001 = vadd.f32 0.0, %v5000
  %5002 = vmatprep.mubr.bf16.mxu0 %v4661
  %5003 = vmatmul.mubr.bf16.gmra.mrb[0].mxu0 %v4550
  %v5004 = vpop.f32.mrb[0].mxu0
  %v5005 = vadd.f32 0.0, %v5004
  %v5006 = vpop.f32.mrb[0].mxu0
  %v5007 = vadd.f32 0.0, %v5006
  %v5008 = vpop.f32.mrb[0].mxu0
  %v5009 = vadd.f32 0.0, %v5008
  %v5010 = vpop.f32.mrb[0].mxu0
  %v5011 = vadd.f32 0.0, %v5010
  %5012 = vmatprep.mubr.bf16.mxu0 %v4664
  %5013 = vmatmul.mubr.bf16.gmra.mrb[0].mxu0 %v4552
  %v5014 = vpop.f32.mrb[0].mxu0
  %v5015 = vadd.f32 0.0, %v5014
  %v5016 = vpop.f32.mrb[0].mxu0
  %v5017 = vadd.f32 0.0, %v5016
  %v5018 = vpop.f32.mrb[0].mxu0
  %v5019 = vpop.f32.mrb[0].mxu0
  %5020 = vdwg.mxu0
  %5021 = vst [vmem:[%s12] sm:$0xff] %v4701
  %5022 = vst [vmem:[%s12 + $0x8] sm:$0xff] %v4703
  %5023 = vst [vmem:[%s12 + $0x10] sm:$0xff] %v4772
  %5024 = vst [vmem:[%s12 + $0x18] sm:$0xff] %v4774
  %5025 = vst [vmem:[%s12 + $0x20] sm:$0xff] %v4843
  %5026 = vst [vmem:[%s12 + $0x28] sm:$0xff] %v4845
  %5027 = vst [vmem:[%s12 + $0x30] sm:$0xff] %v4914
  %5028 = vst [vmem:[%s12 + $0x38] sm:$0xff] %v4916
  %5029 = vst [vmem:[%s12 + $0x40] sm:$0xff] %v4985
  %5030 = vst [vmem:[%s12 + $0x48] sm:$0xff] %v4987
  %5031 = vst [vmem:[%s12 + $0x50] sm:$0xff] %v4705
  %5032 = vst [vmem:[%s12 + $0x58] sm:$0xff] %v4707
  %5033 = vst [vmem:[%s12 + $0x60] sm:$0xff] %v4776
  %5034 = vst [vmem:[%s12 + $0x68] sm:$0xff] %v4778
  %5035 = vst [vmem:[%s12 + $0x70] sm:$0xff] %v4847
  %5036 = vst [vmem:[%s12 + $0x78] sm:$0xff] %v4849
  %5037 = vst [vmem:[%s12 + $0x80] sm:$0xff] %v4918
  %5038 = vst [vmem:[%s12 + $0x88] sm:$0xff] %v4920
  %5039 = vst [vmem:[%s12 + $0x90] sm:$0xff] %v4989
  %5040 = vst [vmem:[%s12 + $0x98] sm:$0xff] %v4991
  %5041 = vst [vmem:[%s12 + $0xa0] sm:$0xff] %v4711
  %5042 = vst [vmem:[%s12 + $0xa8] sm:$0xff] %v4713
  %5043 = vst [vmem:[%s12 + $0xb0] sm:$0xff] %v4782
  %5044 = vst [vmem:[%s12 + $0xb8] sm:$0xff] %v4784
  %5045 = vst [vmem:[%s12 + $0xc0] sm:$0xff] %v4853
  %5046 = vst [vmem:[%s12 + $0xc8] sm:$0xff] %v4855
  %5047 = vst [vmem:[%s12 + $0xd0] sm:$0xff] %v4924
  %5048 = vst [vmem:[%s12 + $0xd8] sm:$0xff] %v4926
  %5049 = vst [vmem:[%s12 + $0xe0] sm:$0xff] %v4995
  %5050 = vst [vmem:[%s12 + $0xe8] sm:$0xff] %v4997
  %5051 = vst [vmem:[%s12 + $0xf0] sm:$0xff] %v4715
  %5052 = vst [vmem:[%s12 + $0xf8] sm:$0xff] %v4717
  %5053 = vst [vmem:[%s12 + $0x100] sm:$0xff] %v4786
  %5054 = vst [vmem:[%s12 + $0x108] sm:$0xff] %v4788
  %5055 = vst [vmem:[%s12 + $0x110] sm:$0xff] %v4857
  %5056 = vst [vmem:[%s12 + $0x118] sm:$0xff] %v4859
  %5057 = vst [vmem:[%s12 + $0x120] sm:$0xff] %v4928
  %5058 = vst [vmem:[%s12 + $0x128] sm:$0xff] %v4930
  %5059 = vst [vmem:[%s12 + $0x130] sm:$0xff] %v4999
  %5060 = vst [vmem:[%s12 + $0x138] sm:$0xff] %v5001
  %5061 = vst [vmem:[%s12 + $0x140] sm:$0xff] %v4721
  %5062 = vst [vmem:[%s12 + $0x148] sm:$0xff] %v4723
  %5063 = vst [vmem:[%s12 + $0x150] sm:$0xff] %v4792
  %5064 = vst [vmem:[%s12 + $0x158] sm:$0xff] %v4794
  %5065 = vst [vmem:[%s12 + $0x160] sm:$0xff] %v4863
  %5066 = vst [vmem:[%s12 + $0x168] sm:$0xff] %v4865
  %5067 = vst [vmem:[%s12 + $0x170] sm:$0xff] %v4934
  %5068 = vst [vmem:[%s12 + $0x178] sm:$0xff] %v4936
  %5069 = vst [vmem:[%s12 + $0x180] sm:$0xff] %v5005
  %5070 = vst [vmem:[%s12 + $0x188] sm:$0xff] %v5007
  %5071 = vst [vmem:[%s12 + $0x190] sm:$0xff] %v4725
  %5072 = vst [vmem:[%s12 + $0x198] sm:$0xff] %v4727
  %5073 = vst [vmem:[%s12 + $0x1a0] sm:$0xff] %v4796
  %5074 = vst [vmem:[%s12 + $0x1a8] sm:$0xff] %v4798
  %5075 = vst [vmem:[%s12 + $0x1b0] sm:$0xff] %v4867
  %5076 = vst [vmem:[%s12 + $0x1b8] sm:$0xff] %v4869
  %5077 = vst [vmem:[%s12 + $0x1c0] sm:$0xff] %v4938
  %5078 = vst [vmem:[%s12 + $0x1c8] sm:$0xff] %v4940
  %5079 = vst [vmem:[%s12 + $0x1d0] sm:$0xff] %v5009
  %5080 = vst [vmem:[%s12 + $0x1d8] sm:$0xff] %v5011
  %5081 = vst [vmem:[%s12 + $0x1e0] sm:$0xff] %v4731
  %5082 = vst [vmem:[%s12 + $0x1e8] sm:$0xff] %v4733
  %5083 = vst [vmem:[%s12 + $0x1f0] sm:$0xff] %v4802
  %5084 = vst [vmem:[%s12 + $0x1f8] sm:$0xff] %v4804
  %5085 = vst [vmem:[%s12 + $0x200] sm:$0xff] %v4873
  %5086 = vst [vmem:[%s12 + $0x208] sm:$0xff] %v4875
  %5087 = vst [vmem:[%s12 + $0x210] sm:$0xff] %v4944
  %5088 = vst [vmem:[%s12 + $0x218] sm:$0xff] %v4946
  %5089 = vst [vmem:[%s12 + $0x220] sm:$0xff] %v5015
  %5090 = vst [vmem:[%s12 + $0x228] sm:$0xff] %v5017
  // Predicated region
  $region116: #{mnasnet_block.1} parent=0 // pred_check
    _
  $region117: #{mnasnet_block.1} parent=0 // pred_check_branch
    %5092 = sbr.rel (0) target = $region119
  $region118: #{mnasnet_block.1} parent=0 // pred_region
    _
  $region119: #{mnasnet_block.1} parent=0 // pred_fallthru
    _
  // Predicated region
  $region120: #{mnasnet_block.1} parent=0 // pred_check
    _
  $region121: #{mnasnet_block.1} parent=0 // pred_check_branch
    %5094 = sbr.rel (0) target = $region123
  $region122: #{mnasnet_block.1} parent=0 // pred_region
    _
  $region123: #{mnasnet_block.1} parent=0 // pred_fallthru
    _
  %5095 = vsyncmov [#allocation4]
  %s5096 = vpop.sfrf %5095
  %p5097 = scmp.eq.s32.totalorder %s5096, 0
  %p5098 = pneg %p5097
  %5100 = shalt.err (%p5098)
  %s5101 = scalar_lea.sflag [#allocation4], 1
  %5102 = vsyncmov %s5101
  %s5103 = vpop.sfrf %5102
  %p5104 = scmp.eq.s32.totalorder %s5103, 0
  %p5105 = pneg %p5104
  %5107 = shalt.err (%p5105)

</llo_original>
